<compile_context>
chip_gen: v6e
topology: v6e:2x2x1
jax: 0.10.0
libtpu: 0.0.40
codegen_flags: <defaults>
</compile_context>

<pallas_src>
import jax
import jax.numpy as jnp
from jax.experimental import pallas as pl
from jax.experimental.pallas import tpu as pltpu


# ----------------------------------------------------------------------------
# Kernel factory: full CategoricalVAE forward for one batch tile.
#   encoder:  x -> tanh(L0) -> tanh(L1) -> latent            (latent padded to 128 lanes)
#   reparam:  z = softmax(latent + gumbel) / 0.1             (gumbel passed in, pad lanes -1e30)
#   decoder:  z -> tanh(L0) -> tanh(L1) -> fused [mu | log_var] head
#   output :  one lane-dense slab [x_hat | x_hat_var | latent | 0-pad]
# ----------------------------------------------------------------------------
def make_categorical_vae_kernel(latent_dims):
    def kernel(
        x_ref, g_ref,
        ew0_ref, eb0_ref, ew1_ref, eb1_ref, ew2_ref, eb2_ref,
        dw0_ref, db0_ref, dw1_ref, db1_ref, dwh_ref, dbh_ref,
        out_ref,
    ):
        f32 = jnp.float32
        mm = ew0_ref.dtype  # MXU operand dtype (bf16 or f32); accumulation is f32.

        # --- encoder ---
        x = x_ref[...].astype(mm)
        h = jnp.tanh(jnp.dot(x, ew0_ref[...], preferred_element_type=f32) + eb0_ref[...])
        h = jnp.tanh(jnp.dot(h.astype(ew1_ref.dtype), ew1_ref[...],
                             preferred_element_type=f32) + eb1_ref[...])
        # Latent head kept in f32 (ew2 is stored f32) so the returned latent is
        # not degraded on the bf16 operand path.  latent_full is (bb, 128):
        # lanes >= latent_dims carry zero weights/bias.
        latent_full = jnp.dot(h, ew2_ref[...], preferred_element_type=f32) + eb2_ref[...]

        # --- reparameterization: softmax(latent + gumbel, axis=-1) / 0.1 (f32) ---
        # Pad lanes of g are -1e30 -> exp underflows to exactly 0, so the
        # 128-lane softmax equals the 16-lane softmax of the reference module.
        logits = latent_full + g_ref[...]
        m = jnp.max(logits, axis=-1, keepdims=True)
        e = jnp.exp(logits - m)
        s = jnp.sum(e, axis=-1, keepdims=True)
        # Exact divide on a (bb, 1) column (off the critical path); the 1/0.1
        # temperature is folded into the same scale.
        z = e * (10.0 / s)

        # --- decoder with fused [mu | log_var] head ---
        d = jnp.tanh(jnp.dot(z.astype(dw0_ref.dtype), dw0_ref[...],
                             preferred_element_type=f32) + db0_ref[...])
        d = jnp.tanh(jnp.dot(d.astype(dw1_ref.dtype), dw1_ref[...],
                             preferred_element_type=f32) + db1_ref[...])
        head = jnp.dot(d.astype(dwh_ref.dtype), dwh_ref[...],
                       preferred_element_type=f32) + dbh_ref[...]

        # --- pack [x_hat | x_hat_var | latent | 0-pad] into one lane-dense slab ---
        latent = latent_full[:, :latent_dims]
        parts = [head, latent]
        pad = out_ref.shape[-1] - head.shape[-1] - latent.shape[-1]
        if pad:
            parts.append(jnp.zeros((head.shape[0], pad), f32))
        out_ref[...] = jnp.concatenate(parts, axis=-1)

    return kernel


def categorical_vae_forward(x, gumbel, params, *, batch_block=None,
                            mm_dtype=jnp.bfloat16, num_cores=1):
    """x: (B, input_dims) f32; gumbel: (B, latent_dims) f32; params: dict.

    Returns (x_hat, x_hat_var, latent), matching CategoricalVAE.forward
    (non-deterministic path) with the gumbel noise supplied by the caller.

    num_cores: TensorCores per chip the grid should be split over
    (2 on v7x megacore, 1 on v5e/v6e).
    """
    B, D_in = x.shape
    L = gumbel.shape[-1]
    D_out = params["dwm"].shape[-1]
    h1 = params["ew2"].shape[0]

    # --- batch tiling: one big tile per TensorCore, capped to bound vreg pressure ---
    if batch_block is None:
        bb = B // num_cores if (num_cores > 1 and B % num_cores == 0) else B
        batch_block = min(bb, 1024)
        while B % batch_block:
            batch_block = max(1, batch_block // 2)
    batch_block = min(batch_block, B)
    assert B % batch_block == 0, "batch must be divisible by batch_block"
    grid = (B // batch_block,)

    # --- pad latent dim to a full 128-lane vreg through the middle of the pipe ---
    L_pad = ((max(L, 128) + 127) // 128) * 128
    NEG = jnp.float32(-1e30)
    ew2_p = jnp.zeros((h1, L_pad), jnp.float32).at[:, :L].set(params["ew2"])
    eb2_p = jnp.zeros((1, L_pad), jnp.float32).at[:, :L].set(params["eb2"])
    g_p = jnp.full((B, L_pad), NEG, jnp.float32).at[:, :L].set(gumbel)
    dw0_p = jnp.zeros((L_pad, params["dw0"].shape[1]),
                      jnp.float32).at[:L, :].set(params["dw0"])

    # Fused decoder head: [mu | log_var] in one matmul.
    dwh = jnp.concatenate([params["dwm"], params["dwv"]], axis=-1)   # (h0, 2*D_out)
    dbh = jnp.concatenate([params["dbm"], params["dbv"]], axis=-1)   # (1, 2*D_out)

    # Lane-dense packed output width (>=128, multiple of 128).
    W_head = 2 * D_out
    W_out = ((W_head + L + 127) // 128) * 128

    # MXU operands (weights) in mm_dtype (bf16 by default); biases stay f32 so
    # the f32-accumulated matmul result keeps f32 bias adds / tanh on the VPU.
    # ew2 (latent head) stays f32 for latent-output fidelity.
    to_mm = lambda w: w.astype(mm_dtype)
    ordered = [
        to_mm(params["ew0"]), params["eb0"],
        to_mm(params["ew1"]), params["eb1"],
        ew2_p, eb2_p,
        to_mm(dw0_p), params["db0"],
        to_mm(params["dw1"]), params["db1"],
        to_mm(dwh), dbh,
    ]

    # Activation specs: tiled on batch only.
    act = lambda feat: pl.BlockSpec((batch_block, feat), lambda i: (i, 0))

    def run(single_buffer_weights):
        # Parameter specs: whole array, same (constant) block index every grid
        # step -> nothing to double-buffer; Buffered(1) halves weight-resident
        # VMEM (the lever that matters first on v7x's 64 MiB VMEM).
        if single_buffer_weights:
            full = lambda a: pl.BlockSpec(a.shape, lambda i: (0,) * a.ndim,
                                          pipeline_mode=pl.Buffered(1))
        else:
            full = lambda a: pl.BlockSpec(a.shape, lambda i: (0,) * a.ndim)

        in_specs = [act(D_in), act(L_pad)] + [full(p) for p in ordered]
        out_specs = act(W_out)
        out_shape = jax.ShapeDtypeStruct((B, W_out), jnp.float32)

        fn = pl.pallas_call(
            make_categorical_vae_kernel(L),
            out_shape=out_shape,
            grid_spec=pltpu.PrefetchScalarGridSpec(
                num_scalar_prefetch=0,
                grid=grid,
                in_specs=in_specs,
                out_specs=out_specs,
            ),
            compiler_params=pltpu.CompilerParams(
                dimension_semantics=("parallel",),
                vmem_limit_bytes=32 * 1024 * 1024,
            ),
        )
        return fn(x, g_p, *ordered)

    try:
        packed = run(True)
    except Exception:
        # Fall back to default double-buffered weight specs if single-buffering
        # via pipeline_mode is not supported by the installed JAX version.
        packed = run(False)

    # Slice the packed slab back into the module's three outputs (free plumbing).
    x_hat = packed[:, :D_out]
    x_hat_var = packed[:, D_out:2 * D_out]
    latent = packed[:, 2 * D_out:2 * D_out + L]
    return x_hat, x_hat_var, latent


# ----------------------------------------------------------------------------
# Deterministic parameter init (PyTorch-Linear-like uniform fan-in init),
# stored pre-transposed as (in_dim, out_dim); biases as (1, out_dim).
# ----------------------------------------------------------------------------
def init_params(key, input_dims, latent_dims, output_dims, hidden_sizes=(256, 128)):
    def linear(key, fan_in, fan_out):
        kw, kb = jax.random.split(key)
        bound = 1.0 / jnp.sqrt(float(fan_in))
        w = jax.random.uniform(kw, (fan_in, fan_out), jnp.float32, -bound, bound)
        b = jax.random.uniform(kb, (1, fan_out), jnp.float32, -bound, bound)
        return w, b

    keys = jax.random.split(key, 7)
    h0, h1 = hidden_sizes
    p = {}
    # encoder: input -> h0 -> h1 -> latent
    p["ew0"], p["eb0"] = linear(keys[0], input_dims, h0)
    p["ew1"], p["eb1"] = linear(keys[1], h0, h1)
    p["ew2"], p["eb2"] = linear(keys[2], h1, latent_dims)
    # decoder: latent -> h1 -> h0 -> (mu, log_var)
    p["dw0"], p["db0"] = linear(keys[3], latent_dims, h1)
    p["dw1"], p["db1"] = linear(keys[4], h1, h0)
    p["dwm"], p["dbm"] = linear(keys[5], h0, output_dims)
    p["dwv"], p["dbv"] = linear(keys[6], h0, output_dims)
    return p


# Pure-JAX reference for validation (matches the PyTorch module's math,
# including softmax(latent + gumbel) / 0.1, i.e. divide AFTER the softmax).
def reference_forward(x, gumbel, p):
    h = jnp.tanh(x @ p["ew0"] + p["eb0"])
    h = jnp.tanh(h @ p["ew1"] + p["eb1"])
    latent = h @ p["ew2"] + p["eb2"]
    z = jax.nn.softmax(latent + gumbel, axis=-1) / 0.1
    d = jnp.tanh(z @ p["dw0"] + p["db0"])
    d = jnp.tanh(d @ p["dw1"] + p["db1"])
    return d @ p["dwm"] + p["dbm"], d @ p["dwv"] + p["dbv"], latent


if __name__ == "__main__":
    # Small model dims consistent with the module.
    B, input_dims, latent_dims = 256, 32, 16
    output_dims = input_dims

    key = jax.random.PRNGKey(0)
    k_param, k_x, k_u = jax.random.split(key, 3)

    params = init_params(k_param, input_dims, latent_dims, output_dims)
    x = jax.random.normal(k_x, (B, input_dims), jnp.float32)

    # Gumbel noise (matches torch.rand -> -log(-log(u + eps) + eps)); generated
    # host-side for determinism and passed in as an input.
    # TODO(synk): in-module torch.rand sampling has no in-kernel equivalent here;
    # noise is supplied by the caller (could also use pltpu.prng_* in-kernel).
    eps = 1e-10
    u = jax.random.uniform(k_u, (B, latent_dims), jnp.float32)
    gumbel = -jnp.log(-jnp.log(u + eps) + eps)

    rh, rv, rl = reference_forward(x, gumbel, params)

    # Default path: bf16 MXU operands (v5e/v6e/v7x-native), f32 accumulation,
    # single-TC style grid (one tile).
    x_hat, x_hat_var, latent = jax.block_until_ready(
        categorical_vae_forward(x, gumbel, params))
    assert x_hat.shape == (B, output_dims) and latent.shape == (B, latent_dims)
    assert jnp.allclose(x_hat, rh, atol=1e-1, rtol=1e-1)
    assert jnp.allclose(x_hat_var, rv, atol=1e-1, rtol=1e-1)
    assert jnp.allclose(latent, rl, atol=1e-1, rtol=1e-1)

    # f32 MXU-operand path with a 2-step grid (megacore split on v7x);
    # exact softmax divide keeps this tight against the reference.
    xf, vf, lf = jax.block_until_ready(
        categorical_vae_forward(x, gumbel, params, batch_block=128,
                                mm_dtype=jnp.float32, num_cores=2))
    assert jnp.allclose(xf, rh, atol=3e-3, rtol=3e-3)
    assert jnp.allclose(vf, rv, atol=3e-3, rtol=3e-3)
    assert jnp.allclose(lf, rl, atol=3e-3, rtol=3e-3)

    print("KERNEL_OK")
</pallas_src>

<mosaic_0001>
module attributes {stable_mosaic.version = 11 : i64} {
  func.func @kernel(%arg0: i32, %arg1: memref<256x32xf32, #tpu.memory_space<vmem>>, %arg2: memref<256x128xf32, #tpu.memory_space<vmem>>, %arg3: memref<32x256xbf16, #tpu.memory_space<vmem>>, %arg4: memref<1x256xf32, #tpu.memory_space<vmem>>, %arg5: memref<256x128xbf16, #tpu.memory_space<vmem>>, %arg6: memref<1x128xf32, #tpu.memory_space<vmem>>, %arg7: memref<128x128xf32, #tpu.memory_space<vmem>>, %arg8: memref<1x128xf32, #tpu.memory_space<vmem>>, %arg9: memref<128x128xbf16, #tpu.memory_space<vmem>>, %arg10: memref<1x128xf32, #tpu.memory_space<vmem>>, %arg11: memref<128x256xbf16, #tpu.memory_space<vmem>>, %arg12: memref<1x256xf32, #tpu.memory_space<vmem>>, %arg13: memref<256x64xbf16, #tpu.memory_space<vmem>>, %arg14: memref<1x64xf32, #tpu.memory_space<vmem>>, %arg15: memref<256x128xf32, #tpu.memory_space<vmem>>) attributes {dimension_semantics = [#tpu.dimension_semantics<parallel>], iteration_bounds = array<i64: 1>, scalar_prefetch = 0 : i64, scratch_operands = 0 : i64, tpu.core_type = #tpu.core_type<tc>, window_params = [{transform_indices = @transform_0, window_bounds = array<i64: 256, 32>}, {transform_indices = @transform_1, window_bounds = array<i64: 256, 128>}, {pipeline_mode = #tpu.pipeline_mode<synchronous>, transform_indices = @transform_2, window_bounds = array<i64: 32, 256>}, {pipeline_mode = #tpu.pipeline_mode<synchronous>, transform_indices = @transform_3, window_bounds = array<i64: 1, 256>}, {pipeline_mode = #tpu.pipeline_mode<synchronous>, transform_indices = @transform_4, window_bounds = array<i64: 256, 128>}, {pipeline_mode = #tpu.pipeline_mode<synchronous>, transform_indices = @transform_5, window_bounds = array<i64: 1, 128>}, {pipeline_mode = #tpu.pipeline_mode<synchronous>, transform_indices = @transform_6, window_bounds = array<i64: 128, 128>}, {pipeline_mode = #tpu.pipeline_mode<synchronous>, transform_indices = @transform_7, window_bounds = array<i64: 1, 128>}, {pipeline_mode = #tpu.pipeline_mode<synchronous>, transform_indices = @transform_8, window_bounds = array<i64: 128, 128>}, {pipeline_mode = #tpu.pipeline_mode<synchronous>, transform_indices = @transform_9, window_bounds = array<i64: 1, 128>}, {pipeline_mode = #tpu.pipeline_mode<synchronous>, transform_indices = @transform_10, window_bounds = array<i64: 128, 256>}, {pipeline_mode = #tpu.pipeline_mode<synchronous>, transform_indices = @transform_11, window_bounds = array<i64: 1, 256>}, {pipeline_mode = #tpu.pipeline_mode<synchronous>, transform_indices = @transform_12, window_bounds = array<i64: 256, 64>}, {pipeline_mode = #tpu.pipeline_mode<synchronous>, transform_indices = @transform_13, window_bounds = array<i64: 1, 64>}, {transform_indices = @transform_14, window_bounds = array<i64: 256, 128>}]} {
    %c0 = arith.constant 0 : index
    %c0_0 = arith.constant 0 : index
    %0 = vector.load %arg1[%c0, %c0_0] : memref<256x32xf32, #tpu.memory_space<vmem>>, vector<256x32xf32>
    %1 = arith.truncf %0 : vector<256x32xf32> to vector<256x32xbf16>
    %c0_1 = arith.constant 0 : index
    %c0_2 = arith.constant 0 : index
    %2 = vector.load %arg3[%c0_1, %c0_2] : memref<32x256xbf16, #tpu.memory_space<vmem>>, vector<32x256xbf16>
    %cst = arith.constant dense<0.000000e+00> : vector<256x256xf32>
    %3 = tpu.matmul %1, %2, %cst {dimension_numbers = #tpu.dot_dimension_numbers<[1], [0], [0], [1], [0, 0, 1, 1], [], []>} : vector<256x32xbf16>, vector<32x256xbf16>, vector<256x256xf32> -> vector<256x256xf32>
    %c0_3 = arith.constant 0 : index
    %c0_4 = arith.constant 0 : index
    %4 = vector.load %arg4[%c0_3, %c0_4] : memref<1x256xf32, #tpu.memory_space<vmem>>, vector<1x256xf32>
    %5 = vector.broadcast %4 : vector<1x256xf32> to vector<256x256xf32>
    %6 = arith.addf %3, %5 : vector<256x256xf32>
    %7 = math.tanh %6 : vector<256x256xf32>
    %8 = arith.truncf %7 : vector<256x256xf32> to vector<256x256xbf16>
    %c0_5 = arith.constant 0 : index
    %c0_6 = arith.constant 0 : index
    %9 = vector.load %arg5[%c0_5, %c0_6] : memref<256x128xbf16, #tpu.memory_space<vmem>>, vector<256x128xbf16>
    %cst_7 = arith.constant dense<0.000000e+00> : vector<256x128xf32>
    %10 = tpu.matmul %8, %9, %cst_7 {dimension_numbers = #tpu.dot_dimension_numbers<[1], [0], [0], [1], [0, 0, 1, 1], [], []>} : vector<256x256xbf16>, vector<256x128xbf16>, vector<256x128xf32> -> vector<256x128xf32>
    %c0_8 = arith.constant 0 : index
    %c0_9 = arith.constant 0 : index
    %11 = vector.load %arg6[%c0_8, %c0_9] : memref<1x128xf32, #tpu.memory_space<vmem>>, vector<1x128xf32>
    %12 = vector.broadcast %11 : vector<1x128xf32> to vector<256x128xf32>
    %13 = arith.addf %10, %12 : vector<256x128xf32>
    %14 = math.tanh %13 : vector<256x128xf32>
    %c0_10 = arith.constant 0 : index
    %c0_11 = arith.constant 0 : index
    %15 = vector.load %arg7[%c0_10, %c0_11] : memref<128x128xf32, #tpu.memory_space<vmem>>, vector<128x128xf32>
    %cst_12 = arith.constant dense<0.000000e+00> : vector<256x128xf32>
    %16 = tpu.matmul %14, %15, %cst_12 {dimension_numbers = #tpu.dot_dimension_numbers<[1], [0], [0], [1], [0, 0, 1, 1], [], []>} : vector<256x128xf32>, vector<128x128xf32>, vector<256x128xf32> -> vector<256x128xf32>
    %c0_13 = arith.constant 0 : index
    %c0_14 = arith.constant 0 : index
    %17 = vector.load %arg8[%c0_13, %c0_14] : memref<1x128xf32, #tpu.memory_space<vmem>>, vector<1x128xf32>
    %18 = vector.broadcast %17 : vector<1x128xf32> to vector<256x128xf32>
    %19 = arith.addf %16, %18 : vector<256x128xf32>
    %c0_15 = arith.constant 0 : index
    %c0_16 = arith.constant 0 : index
    %20 = vector.load %arg2[%c0_15, %c0_16] : memref<256x128xf32, #tpu.memory_space<vmem>>, vector<256x128xf32>
    %21 = arith.addf %19, %20 : vector<256x128xf32>
    %cst_17 = arith.constant dense<0xFF800000> : vector<256xf32>
    %22 = vector.multi_reduction <maximumf>, %21, %cst_17 [1] : vector<256x128xf32> to vector<256xf32>
    %23 = vector.shape_cast %22 : vector<256xf32> to vector<256x1xf32>
    %24 = vector.broadcast %23 : vector<256x1xf32> to vector<256x128xf32>
    %25 = arith.subf %21, %24 : vector<256x128xf32>
    %26 = math.exp %25 : vector<256x128xf32>
    %cst_18 = arith.constant dense<0.000000e+00> : vector<256xf32>
    %27 = vector.multi_reduction <add>, %26, %cst_18 [1] : vector<256x128xf32> to vector<256xf32>
    %28 = vector.shape_cast %27 : vector<256xf32> to vector<256x1xf32>
    %cst_19 = arith.constant 1.000000e+01 : f32
    %29 = vector.broadcast %cst_19 : f32 to vector<256x1xf32>
    %30 = arith.divf %29, %28 : vector<256x1xf32>
    %31 = vector.broadcast %30 : vector<256x1xf32> to vector<256x128xf32>
    %32 = arith.mulf %26, %31 : vector<256x128xf32>
    %33 = arith.truncf %32 : vector<256x128xf32> to vector<256x128xbf16>
    %c0_20 = arith.constant 0 : index
    %c0_21 = arith.constant 0 : index
    %34 = vector.load %arg9[%c0_20, %c0_21] : memref<128x128xbf16, #tpu.memory_space<vmem>>, vector<128x128xbf16>
    %cst_22 = arith.constant dense<0.000000e+00> : vector<256x128xf32>
    %35 = tpu.matmul %33, %34, %cst_22 {dimension_numbers = #tpu.dot_dimension_numbers<[1], [0], [0], [1], [0, 0, 1, 1], [], []>} : vector<256x128xbf16>, vector<128x128xbf16>, vector<256x128xf32> -> vector<256x128xf32>
    %c0_23 = arith.constant 0 : index
    %c0_24 = arith.constant 0 : index
    %36 = vector.load %arg10[%c0_23, %c0_24] : memref<1x128xf32, #tpu.memory_space<vmem>>, vector<1x128xf32>
    %37 = vector.broadcast %36 : vector<1x128xf32> to vector<256x128xf32>
    %38 = arith.addf %35, %37 : vector<256x128xf32>
    %39 = math.tanh %38 : vector<256x128xf32>
    %40 = arith.truncf %39 : vector<256x128xf32> to vector<256x128xbf16>
    %c0_25 = arith.constant 0 : index
    %c0_26 = arith.constant 0 : index
    %41 = vector.load %arg11[%c0_25, %c0_26] : memref<128x256xbf16, #tpu.memory_space<vmem>>, vector<128x256xbf16>
    %cst_27 = arith.constant dense<0.000000e+00> : vector<256x256xf32>
    %42 = tpu.matmul %40, %41, %cst_27 {dimension_numbers = #tpu.dot_dimension_numbers<[1], [0], [0], [1], [0, 0, 1, 1], [], []>} : vector<256x128xbf16>, vector<128x256xbf16>, vector<256x256xf32> -> vector<256x256xf32>
    %c0_28 = arith.constant 0 : index
    %c0_29 = arith.constant 0 : index
    %43 = vector.load %arg12[%c0_28, %c0_29] : memref<1x256xf32, #tpu.memory_space<vmem>>, vector<1x256xf32>
    %44 = vector.broadcast %43 : vector<1x256xf32> to vector<256x256xf32>
    %45 = arith.addf %42, %44 : vector<256x256xf32>
    %46 = math.tanh %45 : vector<256x256xf32>
    %47 = arith.truncf %46 : vector<256x256xf32> to vector<256x256xbf16>
    %c0_30 = arith.constant 0 : index
    %c0_31 = arith.constant 0 : index
    %48 = vector.load %arg13[%c0_30, %c0_31] : memref<256x64xbf16, #tpu.memory_space<vmem>>, vector<256x64xbf16>
    %cst_32 = arith.constant dense<0.000000e+00> : vector<256x64xf32>
    %49 = tpu.matmul %47, %48, %cst_32 {dimension_numbers = #tpu.dot_dimension_numbers<[1], [0], [0], [1], [0, 0, 1, 1], [], []>} : vector<256x256xbf16>, vector<256x64xbf16>, vector<256x64xf32> -> vector<256x64xf32>
    %c0_33 = arith.constant 0 : index
    %c0_34 = arith.constant 0 : index
    %50 = vector.load %arg14[%c0_33, %c0_34] : memref<1x64xf32, #tpu.memory_space<vmem>>, vector<1x64xf32>
    %51 = vector.broadcast %50 : vector<1x64xf32> to vector<256x64xf32>
    %52 = arith.addf %49, %51 : vector<256x64xf32>
    %53 = vector.extract_strided_slice %19 {offsets = [0, 0], sizes = [256, 16], strides = [1, 1]} : vector<256x128xf32> to vector<256x16xf32>
    %cst_35 = arith.constant 0.000000e+00 : f32
    %54 = vector.broadcast %cst_35 : f32 to vector<256x48xf32>
    %55 = tpu.concatenate %52, %53, %54 in 1 : vector<256x64xf32>, vector<256x16xf32>, vector<256x48xf32> -> vector<256x128xf32>
    %c0_36 = arith.constant 0 : index
    %c0_37 = arith.constant 0 : index
    %56 = vector.load %arg15[%c0_36, %c0_37] : memref<256x128xf32, #tpu.memory_space<vmem>>, vector<256x128xf32>
    tpu.vector_store %arg15[%c0_36, %c0_37], %55 {strides = array<i32>} : memref<256x128xf32, #tpu.memory_space<vmem>>, vector<256x128xf32>,
    return
  }
  func.func @transform_0(%arg0: i32) -> (i32, i32) {
    %c0_i32 = arith.constant 0 : i32
    %c0_i32_0 = arith.constant 0 : i32
    return %arg0, %c0_i32 : i32, i32
  }
  func.func @transform_1(%arg0: i32) -> (i32, i32) {
    %c0_i32 = arith.constant 0 : i32
    %c0_i32_0 = arith.constant 0 : i32
    return %arg0, %c0_i32 : i32, i32
  }
  func.func @transform_2(%arg0: i32) -> (i32, i32) {
    %c0_i32 = arith.constant 0 : i32
    %c0_i32_0 = arith.constant 0 : i32
    %c0_i32_1 = arith.constant 0 : i32
    return %c0_i32, %c0_i32_0 : i32, i32
  }
  func.func @transform_3(%arg0: i32) -> (i32, i32) {
    %c0_i32 = arith.constant 0 : i32
    %c0_i32_0 = arith.constant 0 : i32
    %c0_i32_1 = arith.constant 0 : i32
    return %c0_i32, %c0_i32_0 : i32, i32
  }
  func.func @transform_4(%arg0: i32) -> (i32, i32) {
    %c0_i32 = arith.constant 0 : i32
    %c0_i32_0 = arith.constant 0 : i32
    %c0_i32_1 = arith.constant 0 : i32
    return %c0_i32, %c0_i32_0 : i32, i32
  }
  func.func @transform_5(%arg0: i32) -> (i32, i32) {
    %c0_i32 = arith.constant 0 : i32
    %c0_i32_0 = arith.constant 0 : i32
    %c0_i32_1 = arith.constant 0 : i32
    return %c0_i32, %c0_i32_0 : i32, i32
  }
  func.func @transform_6(%arg0: i32) -> (i32, i32) {
    %c0_i32 = arith.constant 0 : i32
    %c0_i32_0 = arith.constant 0 : i32
    %c0_i32_1 = arith.constant 0 : i32
    return %c0_i32, %c0_i32_0 : i32, i32
  }
  func.func @transform_7(%arg0: i32) -> (i32, i32) {
    %c0_i32 = arith.constant 0 : i32
    %c0_i32_0 = arith.constant 0 : i32
    %c0_i32_1 = arith.constant 0 : i32
    return %c0_i32, %c0_i32_0 : i32, i32
  }
  func.func @transform_8(%arg0: i32) -> (i32, i32) {
    %c0_i32 = arith.constant 0 : i32
    %c0_i32_0 = arith.constant 0 : i32
    %c0_i32_1 = arith.constant 0 : i32
    return %c0_i32, %c0_i32_0 : i32, i32
  }
  func.func @transform_9(%arg0: i32) -> (i32, i32) {
    %c0_i32 = arith.constant 0 : i32
    %c0_i32_0 = arith.constant 0 : i32
    %c0_i32_1 = arith.constant 0 : i32
    return %c0_i32, %c0_i32_0 : i32, i32
  }
  func.func @transform_10(%arg0: i32) -> (i32, i32) {
    %c0_i32 = arith.constant 0 : i32
    %c0_i32_0 = arith.constant 0 : i32
    %c0_i32_1 = arith.constant 0 : i32
    return %c0_i32, %c0_i32_0 : i32, i32
  }
  func.func @transform_11(%arg0: i32) -> (i32, i32) {
    %c0_i32 = arith.constant 0 : i32
    %c0_i32_0 = arith.constant 0 : i32
    %c0_i32_1 = arith.constant 0 : i32
    return %c0_i32, %c0_i32_0 : i32, i32
  }
  func.func @transform_12(%arg0: i32) -> (i32, i32) {
    %c0_i32 = arith.constant 0 : i32
    %c0_i32_0 = arith.constant 0 : i32
    %c0_i32_1 = arith.constant 0 : i32
    return %c0_i32, %c0_i32_0 : i32, i32
  }
  func.func @transform_13(%arg0: i32) -> (i32, i32) {
    %c0_i32 = arith.constant 0 : i32
    %c0_i32_0 = arith.constant 0 : i32
    %c0_i32_1 = arith.constant 0 : i32
    return %c0_i32, %c0_i32_0 : i32, i32
  }
  func.func @transform_14(%arg0: i32) -> (i32, i32) {
    %c0_i32 = arith.constant 0 : i32
    %c0_i32_0 = arith.constant 0 : i32
    return %arg0, %c0_i32 : i32, i32
  }
}

module attributes {stable_mosaic.version = 11 : i64} {
  func.func @kernel(%arg0: i32, %arg1: memref<256x32xf32, #tpu.memory_space<vmem>>, %arg2: memref<256x128xf32, #tpu.memory_space<vmem>>, %arg3: memref<32x256xbf16, #tpu.memory_space<vmem>>, %arg4: memref<1x256xf32, #tpu.memory_space<vmem>>, %arg5: memref<256x128xbf16, #tpu.memory_space<vmem>>, %arg6: memref<1x128xf32, #tpu.memory_space<vmem>>, %arg7: memref<128x128xf32, #tpu.memory_space<vmem>>, %arg8: memref<1x128xf32, #tpu.memory_space<vmem>>, %arg9: memref<128x128xbf16, #tpu.memory_space<vmem>>, %arg10: memref<1x128xf32, #tpu.memory_space<vmem>>, %arg11: memref<128x256xbf16, #tpu.memory_space<vmem>>, %arg12: memref<1x256xf32, #tpu.memory_space<vmem>>, %arg13: memref<256x64xbf16, #tpu.memory_space<vmem>>, %arg14: memref<1x64xf32, #tpu.memory_space<vmem>>, %arg15: memref<256x128xf32, #tpu.memory_space<vmem>>) attributes {dimension_semantics = [#tpu.dimension_semantics<parallel>], iteration_bounds = array<i64: 1>, scalar_prefetch = 0 : i64, scratch_operands = 0 : i64, tpu.core_type = #tpu.core_type<tc>, window_params = [{transform_indices = @transform_0, window_bounds = array<i64: 256, 32>}, {transform_indices = @transform_1, window_bounds = array<i64: 256, 128>}, {pipeline_mode = #tpu.pipeline_mode<synchronous>, transform_indices = @transform_2, window_bounds = array<i64: 32, 256>}, {pipeline_mode = #tpu.pipeline_mode<synchronous>, transform_indices = @transform_3, window_bounds = array<i64: 1, 256>}, {pipeline_mode = #tpu.pipeline_mode<synchronous>, transform_indices = @transform_4, window_bounds = array<i64: 256, 128>}, {pipeline_mode = #tpu.pipeline_mode<synchronous>, transform_indices = @transform_5, window_bounds = array<i64: 1, 128>}, {pipeline_mode = #tpu.pipeline_mode<synchronous>, transform_indices = @transform_6, window_bounds = array<i64: 128, 128>}, {pipeline_mode = #tpu.pipeline_mode<synchronous>, transform_indices = @transform_7, window_bounds = array<i64: 1, 128>}, {pipeline_mode = #tpu.pipeline_mode<synchronous>, transform_indices = @transform_8, window_bounds = array<i64: 128, 128>}, {pipeline_mode = #tpu.pipeline_mode<synchronous>, transform_indices = @transform_9, window_bounds = array<i64: 1, 128>}, {pipeline_mode = #tpu.pipeline_mode<synchronous>, transform_indices = @transform_10, window_bounds = array<i64: 128, 256>}, {pipeline_mode = #tpu.pipeline_mode<synchronous>, transform_indices = @transform_11, window_bounds = array<i64: 1, 256>}, {pipeline_mode = #tpu.pipeline_mode<synchronous>, transform_indices = @transform_12, window_bounds = array<i64: 256, 64>}, {pipeline_mode = #tpu.pipeline_mode<synchronous>, transform_indices = @transform_13, window_bounds = array<i64: 1, 64>}, {transform_indices = @transform_14, window_bounds = array<i64: 256, 128>}]} {
    %c0 = arith.constant 0 : index
    %c0_0 = arith.constant 0 : index
    %0 = vector.load %arg1[%c0, %c0_0] : memref<256x32xf32, #tpu.memory_space<vmem>>, vector<256x32xf32>
    %1 = arith.truncf %0 : vector<256x32xf32> to vector<256x32xbf16>
    %c0_1 = arith.constant 0 : index
    %c0_2 = arith.constant 0 : index
    %2 = vector.load %arg3[%c0_1, %c0_2] : memref<32x256xbf16, #tpu.memory_space<vmem>>, vector<32x256xbf16>
    %cst = arith.constant dense<0.000000e+00> : vector<256x256xf32>
    %3 = tpu.matmul %1, %2, %cst {dimension_numbers = #tpu.dot_dimension_numbers<[1], [0], [0], [1], [0, 0, 1, 1], [], []>} : vector<256x32xbf16>, vector<32x256xbf16>, vector<256x256xf32> -> vector<256x256xf32>
    %c0_3 = arith.constant 0 : index
    %c0_4 = arith.constant 0 : index
    %4 = vector.load %arg4[%c0_3, %c0_4] : memref<1x256xf32, #tpu.memory_space<vmem>>, vector<1x256xf32>
    %5 = vector.broadcast %4 : vector<1x256xf32> to vector<256x256xf32>
    %6 = arith.addf %3, %5 : vector<256x256xf32>
    %7 = math.tanh %6 : vector<256x256xf32>
    %8 = arith.truncf %7 : vector<256x256xf32> to vector<256x256xbf16>
    %c0_5 = arith.constant 0 : index
    %c0_6 = arith.constant 0 : index
    %9 = vector.load %arg5[%c0_5, %c0_6] : memref<256x128xbf16, #tpu.memory_space<vmem>>, vector<256x128xbf16>
    %cst_7 = arith.constant dense<0.000000e+00> : vector<256x128xf32>
    %10 = tpu.matmul %8, %9, %cst_7 {dimension_numbers = #tpu.dot_dimension_numbers<[1], [0], [0], [1], [0, 0, 1, 1], [], []>} : vector<256x256xbf16>, vector<256x128xbf16>, vector<256x128xf32> -> vector<256x128xf32>
    %c0_8 = arith.constant 0 : index
    %c0_9 = arith.constant 0 : index
    %11 = vector.load %arg6[%c0_8, %c0_9] : memref<1x128xf32, #tpu.memory_space<vmem>>, vector<1x128xf32>
    %12 = vector.broadcast %11 : vector<1x128xf32> to vector<256x128xf32>
    %13 = arith.addf %10, %12 : vector<256x128xf32>
    %14 = math.tanh %13 : vector<256x128xf32>
    %c0_10 = arith.constant 0 : index
    %c0_11 = arith.constant 0 : index
    %15 = vector.load %arg7[%c0_10, %c0_11] : memref<128x128xf32, #tpu.memory_space<vmem>>, vector<128x128xf32>
    %cst_12 = arith.constant dense<0.000000e+00> : vector<256x128xf32>
    %16 = tpu.matmul %14, %15, %cst_12 {dimension_numbers = #tpu.dot_dimension_numbers<[1], [0], [0], [1], [0, 0, 1, 1], [], []>} : vector<256x128xf32>, vector<128x128xf32>, vector<256x128xf32> -> vector<256x128xf32>
    %c0_13 = arith.constant 0 : index
    %c0_14 = arith.constant 0 : index
    %17 = vector.load %arg8[%c0_13, %c0_14] : memref<1x128xf32, #tpu.memory_space<vmem>>, vector<1x128xf32>
    %18 = vector.broadcast %17 : vector<1x128xf32> to vector<256x128xf32>
    %19 = arith.addf %16, %18 : vector<256x128xf32>
    %c0_15 = arith.constant 0 : index
    %c0_16 = arith.constant 0 : index
    %20 = vector.load %arg2[%c0_15, %c0_16] : memref<256x128xf32, #tpu.memory_space<vmem>>, vector<256x128xf32>
    %21 = arith.addf %19, %20 : vector<256x128xf32>
    %cst_17 = arith.constant dense<0xFF800000> : vector<256xf32>
    %22 = vector.multi_reduction <maximumf>, %21, %cst_17 [1] : vector<256x128xf32> to vector<256xf32>
    %23 = vector.shape_cast %22 : vector<256xf32> to vector<256x1xf32>
    %24 = vector.broadcast %23 : vector<256x1xf32> to vector<256x128xf32>
    %25 = arith.subf %21, %24 : vector<256x128xf32>
    %26 = math.exp %25 : vector<256x128xf32>
    %cst_18 = arith.constant dense<0.000000e+00> : vector<256xf32>
    %27 = vector.multi_reduction <add>, %26, %cst_18 [1] : vector<256x128xf32> to vector<256xf32>
    %28 = vector.shape_cast %27 : vector<256xf32> to vector<256x1xf32>
    %cst_19 = arith.constant 1.000000e+01 : f32
    %29 = vector.broadcast %cst_19 : f32 to vector<256x1xf32>
    %30 = arith.divf %29, %28 : vector<256x1xf32>
    %31 = vector.broadcast %30 : vector<256x1xf32> to vector<256x128xf32>
    %32 = arith.mulf %26, %31 : vector<256x128xf32>
    %33 = arith.truncf %32 : vector<256x128xf32> to vector<256x128xbf16>
    %c0_20 = arith.constant 0 : index
    %c0_21 = arith.constant 0 : index
    %34 = vector.load %arg9[%c0_20, %c0_21] : memref<128x128xbf16, #tpu.memory_space<vmem>>, vector<128x128xbf16>
    %cst_22 = arith.constant dense<0.000000e+00> : vector<256x128xf32>
    %35 = tpu.matmul %33, %34, %cst_22 {dimension_numbers = #tpu.dot_dimension_numbers<[1], [0], [0], [1], [0, 0, 1, 1], [], []>} : vector<256x128xbf16>, vector<128x128xbf16>, vector<256x128xf32> -> vector<256x128xf32>
    %c0_23 = arith.constant 0 : index
    %c0_24 = arith.constant 0 : index
    %36 = vector.load %arg10[%c0_23, %c0_24] : memref<1x128xf32, #tpu.memory_space<vmem>>, vector<1x128xf32>
    %37 = vector.broadcast %36 : vector<1x128xf32> to vector<256x128xf32>
    %38 = arith.addf %35, %37 : vector<256x128xf32>
    %39 = math.tanh %38 : vector<256x128xf32>
    %40 = arith.truncf %39 : vector<256x128xf32> to vector<256x128xbf16>
    %c0_25 = arith.constant 0 : index
    %c0_26 = arith.constant 0 : index
    %41 = vector.load %arg11[%c0_25, %c0_26] : memref<128x256xbf16, #tpu.memory_space<vmem>>, vector<128x256xbf16>
    %cst_27 = arith.constant dense<0.000000e+00> : vector<256x256xf32>
    %42 = tpu.matmul %40, %41, %cst_27 {dimension_numbers = #tpu.dot_dimension_numbers<[1], [0], [0], [1], [0, 0, 1, 1], [], []>} : vector<256x128xbf16>, vector<128x256xbf16>, vector<256x256xf32> -> vector<256x256xf32>
    %c0_28 = arith.constant 0 : index
    %c0_29 = arith.constant 0 : index
    %43 = vector.load %arg12[%c0_28, %c0_29] : memref<1x256xf32, #tpu.memory_space<vmem>>, vector<1x256xf32>
    %44 = vector.broadcast %43 : vector<1x256xf32> to vector<256x256xf32>
    %45 = arith.addf %42, %44 : vector<256x256xf32>
    %46 = math.tanh %45 : vector<256x256xf32>
    %47 = arith.truncf %46 : vector<256x256xf32> to vector<256x256xbf16>
    %c0_30 = arith.constant 0 : index
    %c0_31 = arith.constant 0 : index
    %48 = vector.load %arg13[%c0_30, %c0_31] : memref<256x64xbf16, #tpu.memory_space<vmem>>, vector<256x64xbf16>
    %cst_32 = arith.constant dense<0.000000e+00> : vector<256x64xf32>
    %49 = tpu.matmul %47, %48, %cst_32 {dimension_numbers = #tpu.dot_dimension_numbers<[1], [0], [0], [1], [0, 0, 1, 1], [], []>} : vector<256x256xbf16>, vector<256x64xbf16>, vector<256x64xf32> -> vector<256x64xf32>
    %c0_33 = arith.constant 0 : index
    %c0_34 = arith.constant 0 : index
    %50 = vector.load %arg14[%c0_33, %c0_34] : memref<1x64xf32, #tpu.memory_space<vmem>>, vector<1x64xf32>
    %51 = vector.broadcast %50 : vector<1x64xf32> to vector<256x64xf32>
    %52 = arith.addf %49, %51 : vector<256x64xf32>
    %53 = vector.extract_strided_slice %19 {offsets = [0, 0], sizes = [256, 16], strides = [1, 1]} : vector<256x128xf32> to vector<256x16xf32>
    %cst_35 = arith.constant 0.000000e+00 : f32
    %54 = vector.broadcast %cst_35 : f32 to vector<256x48xf32>
    %55 = tpu.concatenate %52, %53, %54 in 1 : vector<256x64xf32>, vector<256x16xf32>, vector<256x48xf32> -> vector<256x128xf32>
    %c0_36 = arith.constant 0 : index
    %c0_37 = arith.constant 0 : index
    %56 = vector.load %arg15[%c0_36, %c0_37] : memref<256x128xf32, #tpu.memory_space<vmem>>, vector<256x128xf32>
    tpu.vector_store %arg15[%c0_36, %c0_37], %55 {strides = array<i32>} : memref<256x128xf32, #tpu.memory_space<vmem>>, vector<256x128xf32>,
    return
  }
  func.func @transform_0(%arg0: i32) -> (i32, i32) {
    %c0_i32 = arith.constant 0 : i32
    %c0_i32_0 = arith.constant 0 : i32
    return %arg0, %c0_i32 : i32, i32
  }
  func.func @transform_1(%arg0: i32) -> (i32, i32) {
    %c0_i32 = arith.constant 0 : i32
    %c0_i32_0 = arith.constant 0 : i32
    return %arg0, %c0_i32 : i32, i32
  }
  func.func @transform_2(%arg0: i32) -> (i32, i32) {
    %c0_i32 = arith.constant 0 : i32
    %c0_i32_0 = arith.constant 0 : i32
    %c0_i32_1 = arith.constant 0 : i32
    return %c0_i32, %c0_i32_0 : i32, i32
  }
  func.func @transform_3(%arg0: i32) -> (i32, i32) {
    %c0_i32 = arith.constant 0 : i32
    %c0_i32_0 = arith.constant 0 : i32
    %c0_i32_1 = arith.constant 0 : i32
    return %c0_i32, %c0_i32_0 : i32, i32
  }
  func.func @transform_4(%arg0: i32) -> (i32, i32) {
    %c0_i32 = arith.constant 0 : i32
    %c0_i32_0 = arith.constant 0 : i32
    %c0_i32_1 = arith.constant 0 : i32
    return %c0_i32, %c0_i32_0 : i32, i32
  }
  func.func @transform_5(%arg0: i32) -> (i32, i32) {
    %c0_i32 = arith.constant 0 : i32
    %c0_i32_0 = arith.constant 0 : i32
    %c0_i32_1 = arith.constant 0 : i32
    return %c0_i32, %c0_i32_0 : i32, i32
  }
  func.func @transform_6(%arg0: i32) -> (i32, i32) {
    %c0_i32 = arith.constant 0 : i32
    %c0_i32_0 = arith.constant 0 : i32
    %c0_i32_1 = arith.constant 0 : i32
    return %c0_i32, %c0_i32_0 : i32, i32
  }
  func.func @transform_7(%arg0: i32) -> (i32, i32) {
    %c0_i32 = arith.constant 0 : i32
    %c0_i32_0 = arith.constant 0 : i32
    %c0_i32_1 = arith.constant 0 : i32
    return %c0_i32, %c0_i32_0 : i32, i32
  }
  func.func @transform_8(%arg0: i32) -> (i32, i32) {
    %c0_i32 = arith.constant 0 : i32
    %c0_i32_0 = arith.constant 0 : i32
    %c0_i32_1 = arith.constant 0 : i32
    return %c0_i32, %c0_i32_0 : i32, i32
  }
  func.func @transform_9(%arg0: i32) -> (i32, i32) {
    %c0_i32 = arith.constant 0 : i32
    %c0_i32_0 = arith.constant 0 : i32
    %c0_i32_1 = arith.constant 0 : i32
    return %c0_i32, %c0_i32_0 : i32, i32
  }
  func.func @transform_10(%arg0: i32) -> (i32, i32) {
    %c0_i32 = arith.constant 0 : i32
    %c0_i32_0 = arith.constant 0 : i32
    %c0_i32_1 = arith.constant 0 : i32
    return %c0_i32, %c0_i32_0 : i32, i32
  }
  func.func @transform_11(%arg0: i32) -> (i32, i32) {
    %c0_i32 = arith.constant 0 : i32
    %c0_i32_0 = arith.constant 0 : i32
    %c0_i32_1 = arith.constant 0 : i32
    return %c0_i32, %c0_i32_0 : i32, i32
  }
  func.func @transform_12(%arg0: i32) -> (i32, i32) {
    %c0_i32 = arith.constant 0 : i32
    %c0_i32_0 = arith.constant 0 : i32
    %c0_i32_1 = arith.constant 0 : i32
    return %c0_i32, %c0_i32_0 : i32, i32
  }
  func.func @transform_13(%arg0: i32) -> (i32, i32) {
    %c0_i32 = arith.constant 0 : i32
    %c0_i32_0 = arith.constant 0 : i32
    %c0_i32_1 = arith.constant 0 : i32
    return %c0_i32, %c0_i32_0 : i32, i32
  }
  func.func @transform_14(%arg0: i32) -> (i32, i32) {
    %c0_i32 = arith.constant 0 : i32
    %c0_i32_0 = arith.constant 0 : i32
    return %arg0, %c0_i32 : i32, i32
  }
}

</mosaic_0001>

<llo_original>
// kernel: tpu_custom_call.1
$region0: #{tpu_custom_call.1}
  #allocation0 [shape = 'u32[]', space=smem, size = 0x4, offset = 0x4, fixed_abs, tag = 'smem constant byte address 0x4 - core index']
  #allocation1 [shape = 'u32[144,128]{1,0:T(1,128)}', space=vmem, size = 0x12000, scoped, tag = 'internal scratch']
  %s0 = inlined_call_operand.vmem [shape: f32[256,32], index: 0, kind: input, shape index: {}]
  %s1 = inlined_call_operand.vmem [shape: f32[256,128], index: 1, kind: input, shape index: {}]
  %s2 = inlined_call_operand.hbm [shape: bf16[32,256], index: 2, kind: input, shape index: {}]
  %s3 = inlined_call_operand.vmem [shape: f32[1,256], index: 3, kind: input, shape index: {}]
  %s4 = inlined_call_operand.vmem [shape: bf16[256,128], index: 4, kind: input, shape index: {}]
  %s5 = inlined_call_operand.vmem [shape: f32[1,128], index: 5, kind: input, shape index: {}]
  %s6 = inlined_call_operand.vmem [shape: f32[128,128], index: 6, kind: input, shape index: {}]
  %s7 = inlined_call_operand.vmem [shape: f32[1,128], index: 7, kind: input, shape index: {}]
  %s8 = inlined_call_operand.hbm [shape: bf16[128,128], index: 8, kind: input, shape index: {}]
  %s9 = inlined_call_operand.vmem [shape: f32[1,128], index: 9, kind: input, shape index: {}]
  %s10 = inlined_call_operand.hbm [shape: bf16[128,256], index: 10, kind: input, shape index: {}]
  %s11 = inlined_call_operand.vmem [shape: f32[1,256], index: 11, kind: input, shape index: {}]
  %s12 = inlined_call_operand.vmem [shape: bf16[256,64], index: 12, kind: input, shape index: {}]
  %s13 = inlined_call_operand.vmem [shape: f32[1,64], index: 13, kind: input, shape index: {}]
  %s14 = inlined_call_operand.hbm [shape: f32[256,128], index: 14, kind: output, shape index: {}]
  %s15 = sld [smem:[#allocation0]]
  $region78: #{tpu_custom_call.1} parent=0
    _
  %s17 = ssub.s32 1, %s15
  %s18 = scalar_select 0, %s17, %s15
  $region1: #{tpu_custom_call.1} parent=0
    #allocation2 [shape = 'u8[16384]{0}', space=vmem, size = 0x4000, scoped, tag = 'input window, operand 2, single buffered']
    #allocation3 [shape = 's32[1]{0}', space=sflag, size = 0x4, scoped, tag = 'scoped memory for tpu_custom_call.1']
    #allocation4 [shape = 's32[1]{0}', space=sflag, size = 0x4, scoped, tag = 'scoped memory for tpu_custom_call.1']
    #allocation5 [shape = 'u8[32768]{0}', space=vmem, size = 0x8000, scoped, tag = 'input window, operand 8, single buffered']
    #allocation6 [shape = 's32[1]{0}', space=sflag, size = 0x4, scoped, tag = 'scoped memory for tpu_custom_call.1']
    #allocation7 [shape = 'u8[65536]{0}', space=vmem, size = 0x10000, scoped, tag = 'input window, operand 10, single buffered']
    #allocation8 [shape = 'u8[131072]{0}', space=vmem, size = 0x20000, scoped, tag = 'output window, operand 0, single buffered']
    %19 = vsyncpa [#allocation3], 0
    %20 = vsyncpa [#allocation6], 0
    %21 = vsyncpa [#allocation4], 0
    // Predicated region
    $region2: #{tpu_custom_call.1} parent=1 // pred_check
      _
    $region3: #{tpu_custom_call.1} parent=1 // pred_check_branch
      %23 = sbr.rel (0) target = $region5
    $region4: #{tpu_custom_call.1} parent=1 // pred_region
      _
    $region5: #{tpu_custom_call.1} parent=1 // pred_fallthru
      _
    // Predicated region
    $region6: #{tpu_custom_call.1} parent=1 // pred_check
      _
    $region7: #{tpu_custom_call.1} parent=1 // pred_check_branch
      %25 = sbr.rel (0) target = $region9
    $region8: #{tpu_custom_call.1} parent=1 // pred_region
      _
    $region9: #{tpu_custom_call.1} parent=1 // pred_fallthru
      _
    // Predicated region
    $region10: #{tpu_custom_call.1} parent=1 // pred_check
      _
    $region11: #{tpu_custom_call.1} parent=1 // pred_check_branch
      %27 = sbr.rel (0) target = $region13
    $region12: #{tpu_custom_call.1} parent=1 // pred_region
      %s29 = ssub.s32 512, 512
      %30 = vsyncadd [#allocation3], %s29
      %s31 = sshll.u32 [#allocation2], 4
      %s32 = int_to_ptr.vmem [resolvable:$true] %s31
      %37 = dma.hbm_to_vmem [thread:$0]  %s2, 512, %s32, [#allocation3], 128, 128, 8
    $region13: #{tpu_custom_call.1} parent=1 // pred_fallthru
      _
    // Predicated region
    $region14: #{tpu_custom_call.1} parent=1 // pred_check
      _
    $region15: #{tpu_custom_call.1} parent=1 // pred_check_branch
      %39 = sbr.rel (0) target = $region17
    $region16: #{tpu_custom_call.1} parent=1 // pred_region
      _
    $region17: #{tpu_custom_call.1} parent=1 // pred_fallthru
      _
    // Predicated region
    $region18: #{tpu_custom_call.1} parent=1 // pred_check
      _
    $region19: #{tpu_custom_call.1} parent=1 // pred_check_branch
      %41 = sbr.rel (0) target = $region21
    $region20: #{tpu_custom_call.1} parent=1 // pred_region
      _
    $region21: #{tpu_custom_call.1} parent=1 // pred_fallthru
      _
    // Predicated region
    $region22: #{tpu_custom_call.1} parent=1 // pred_check
      _
    $region23: #{tpu_custom_call.1} parent=1 // pred_check_branch
      %43 = sbr.rel (0) target = $region25
    $region24: #{tpu_custom_call.1} parent=1 // pred_region
      _
    $region25: #{tpu_custom_call.1} parent=1 // pred_fallthru
      _
    // Predicated region
    $region26: #{tpu_custom_call.1} parent=1 // pred_check
      _
    $region27: #{tpu_custom_call.1} parent=1 // pred_check_branch
      %45 = sbr.rel (0) target = $region29
    $region28: #{tpu_custom_call.1} parent=1 // pred_region
      _
    $region29: #{tpu_custom_call.1} parent=1 // pred_fallthru
      _
    // Predicated region
    $region30: #{tpu_custom_call.1} parent=1 // pred_check
      _
    $region31: #{tpu_custom_call.1} parent=1 // pred_check_branch
      %47 = sbr.rel (0) target = $region33
    $region32: #{tpu_custom_call.1} parent=1 // pred_region
      _
    $region33: #{tpu_custom_call.1} parent=1 // pred_fallthru
      _
    // Predicated region
    $region34: #{tpu_custom_call.1} parent=1 // pred_check
      _
    $region35: #{tpu_custom_call.1} parent=1 // pred_check_branch
      %49 = sbr.rel (0) target = $region37
    $region36: #{tpu_custom_call.1} parent=1 // pred_region
      %s51 = ssub.s32 1024, 1024
      %52 = vsyncadd [#allocation6], %s51
      %s53 = sshll.u32 [#allocation5], 4
      %s54 = int_to_ptr.vmem [resolvable:$true] %s53
      %59 = dma.hbm_to_vmem [thread:$0]  %s8, 1024, %s54, [#allocation6], 64, 64, 4
    $region37: #{tpu_custom_call.1} parent=1 // pred_fallthru
      _
    // Predicated region
    $region38: #{tpu_custom_call.1} parent=1 // pred_check
      _
    $region39: #{tpu_custom_call.1} parent=1 // pred_check_branch
      %61 = sbr.rel (0) target = $region41
    $region40: #{tpu_custom_call.1} parent=1 // pred_region
      _
    $region41: #{tpu_custom_call.1} parent=1 // pred_fallthru
      _
    // Predicated region
    $region42: #{tpu_custom_call.1} parent=1 // pred_check
      _
    $region43: #{tpu_custom_call.1} parent=1 // pred_check_branch
      %63 = sbr.rel (0) target = $region45
    $region44: #{tpu_custom_call.1} parent=1 // pred_region
      %s65 = ssub.s32 2048, 2048
      %66 = vsyncadd [#allocation6], %s65
      %s67 = sshll.u32 [#allocation7], 4
      %s68 = int_to_ptr.vmem [resolvable:$true] %s67
      %73 = dma.hbm_to_vmem [thread:$0]  %s10, 2048, %s68, [#allocation6], 128, 128, 8
    $region45: #{tpu_custom_call.1} parent=1 // pred_fallthru
      _
    // Predicated region
    $region46: #{tpu_custom_call.1} parent=1 // pred_check
      _
    $region47: #{tpu_custom_call.1} parent=1 // pred_check_branch
      %75 = sbr.rel (0) target = $region49
    $region48: #{tpu_custom_call.1} parent=1 // pred_region
      _
    $region49: #{tpu_custom_call.1} parent=1 // pred_fallthru
      _
    // Predicated region
    $region50: #{tpu_custom_call.1} parent=1 // pred_check
      _
    $region51: #{tpu_custom_call.1} parent=1 // pred_check_branch
      %77 = sbr.rel (0) target = $region53
    $region52: #{tpu_custom_call.1} parent=1 // pred_region
      _
    $region53: #{tpu_custom_call.1} parent=1 // pred_fallthru
      _
    // Predicated region
    $region54: #{tpu_custom_call.1} parent=1 // pred_check
      _
    $region55: #{tpu_custom_call.1} parent=1 // pred_check_branch
      %79 = sbr.rel (0) target = $region57
    $region56: #{tpu_custom_call.1} parent=1 // pred_region
      _
    $region57: #{tpu_custom_call.1} parent=1 // pred_fallthru
      _
    // Predicated region
    $region58: #{tpu_custom_call.1} parent=1 // pred_check
      _
    $region59: #{tpu_custom_call.1} parent=1 // pred_check_branch
      %81 = sbr.rel (0) target = $region61
    $region60: #{tpu_custom_call.1} parent=1 // pred_region
      %82 = dma.done [#allocation3], 512
    $region61: #{tpu_custom_call.1} parent=1 // pred_fallthru
      _
    // Predicated region
    $region62: #{tpu_custom_call.1} parent=1 // pred_check
      _
    $region63: #{tpu_custom_call.1} parent=1 // pred_check_branch
      %84 = sbr.rel (0) target = $region65
    $region64: #{tpu_custom_call.1} parent=1 // pred_region
      %85 = dma.done [#allocation6], 1024
    $region65: #{tpu_custom_call.1} parent=1 // pred_fallthru
      _
    // Predicated region
    $region66: #{tpu_custom_call.1} parent=1 // pred_check
      _
    $region67: #{tpu_custom_call.1} parent=1 // pred_check_branch
      %87 = sbr.rel (0) target = $region69
    $region68: #{tpu_custom_call.1} parent=1 // pred_region
      %88 = dma.done [#allocation6], 2048
    $region69: #{tpu_custom_call.1} parent=1 // pred_fallthru
      _
    %v90 = vld [vmem:[%s0] sm:$0xff]
    %v91 = vld [vmem:[%s0 + $0x8] sm:$0xff]
    %v92 = vld [vmem:[%s0 + $0x10] sm:$0xff]
    %v93 = vld [vmem:[%s0 + $0x18] sm:$0xff]
    %v94 = vld [vmem:[%s0 + $0x20] sm:$0xff]
    %v95 = vld [vmem:[%s0 + $0x28] sm:$0xff]
    %v96 = vld [vmem:[%s0 + $0x30] sm:$0xff]
    %v97 = vld [vmem:[%s0 + $0x38] sm:$0xff]
    %v98 = vld [vmem:[%s0 + $0x40] sm:$0xff]
    %v99 = vld [vmem:[%s0 + $0x48] sm:$0xff]
    %v100 = vld [vmem:[%s0 + $0x50] sm:$0xff]
    %v101 = vld [vmem:[%s0 + $0x58] sm:$0xff]
    %v102 = vld [vmem:[%s0 + $0x60] sm:$0xff]
    %v103 = vld [vmem:[%s0 + $0x68] sm:$0xff]
    %v104 = vld [vmem:[%s0 + $0x70] sm:$0xff]
    %v105 = vld [vmem:[%s0 + $0x78] sm:$0xff]
    %v106 = vld [vmem:[%s0 + $0x80] sm:$0xff]
    %v107 = vld [vmem:[%s0 + $0x88] sm:$0xff]
    %v108 = vld [vmem:[%s0 + $0x90] sm:$0xff]
    %v109 = vld [vmem:[%s0 + $0x98] sm:$0xff]
    %v110 = vld [vmem:[%s0 + $0xa0] sm:$0xff]
    %v111 = vld [vmem:[%s0 + $0xa8] sm:$0xff]
    %v112 = vld [vmem:[%s0 + $0xb0] sm:$0xff]
    %v113 = vld [vmem:[%s0 + $0xb8] sm:$0xff]
    %v114 = vld [vmem:[%s0 + $0xc0] sm:$0xff]
    %v115 = vld [vmem:[%s0 + $0xc8] sm:$0xff]
    %v116 = vld [vmem:[%s0 + $0xd0] sm:$0xff]
    %v117 = vld [vmem:[%s0 + $0xd8] sm:$0xff]
    %v118 = vld [vmem:[%s0 + $0xe0] sm:$0xff]
    %v119 = vld [vmem:[%s0 + $0xe8] sm:$0xff]
    %v120 = vld [vmem:[%s0 + $0xf0] sm:$0xff]
    %v121 = vld [vmem:[%s0 + $0xf8] sm:$0xff]
    %v122 = vpack.c.bf16 %v91, %v90
    %v123 = vpack.c.bf16 %v93, %v92
    %v124 = vpack.c.bf16 %v95, %v94
    %v125 = vpack.c.bf16 %v97, %v96
    %v126 = vpack.c.bf16 %v99, %v98
    %v127 = vpack.c.bf16 %v101, %v100
    %v128 = vpack.c.bf16 %v103, %v102
    %v129 = vpack.c.bf16 %v105, %v104
    %v130 = vpack.c.bf16 %v107, %v106
    %v131 = vpack.c.bf16 %v109, %v108
    %v132 = vpack.c.bf16 %v111, %v110
    %v133 = vpack.c.bf16 %v113, %v112
    %v134 = vpack.c.bf16 %v115, %v114
    %v135 = vpack.c.bf16 %v117, %v116
    %v136 = vpack.c.bf16 %v119, %v118
    %v137 = vpack.c.bf16 %v121, %v120
    %v138 = vld [vmem:[#allocation2] sm:$0xff]
    %v139 = vld [vmem:[#allocation2 + $0x8] sm:$0xff]
    %v140 = vld [vmem:[#allocation2 + $0x10] sm:$0xff]
    %v141 = vld [vmem:[#allocation2 + $0x18] sm:$0xff]
    %v142 = vld [vmem:[%s3] sm:$0x3]
    %v144 = vlaneseq
    %v145 = vshrl.u32 %v144, 7
    %v146 = vsub.s32 0, %v145
    %v147 = vrot.slane %v142, %v146
    %v148 = vlaneseq
    %v149 = vshrl.u32 %v148, 7
    %v150 = vsub.s32 1, %v149
    %v151 = vrot.slane %v142, %v150
    %v158 = vunpack.c.l.b16 %v138
    %v159 = vunpack.c.h.b16 %v138
    %v160 = vunpack.c.l.b16 %v139
    %v161 = vunpack.c.h.b16 %v139
    %v162 = vunpack.c.l.b16 %v140
    %v163 = vunpack.c.h.b16 %v140
    %v164 = vunpack.c.l.b16 %v141
    %v165 = vunpack.c.h.b16 %v141
    %v166 = vpack.c.b16 %v160, %v158
    %v167 = vpack.c.b16 %v161, %v159
    %v168 = vpack.c.b16 %v164, %v162
    %v169 = vpack.c.b16 %v165, %v163
    %vm174 = vcmask 261120
    %v176 = vsel %vm174, %v122, 0
    %v179 = vsel %vm174, %v123, 0
    %v182 = vsel %vm174, %v124, 0
    %v185 = vsel %vm174, %v125, 0
    %v188 = vsel %vm174, %v126, 0
    %v191 = vsel %vm174, %v127, 0
    %v194 = vsel %vm174, %v128, 0
    %v197 = vsel %vm174, %v129, 0
    %v200 = vsel %vm174, %v130, 0
    %v203 = vsel %vm174, %v131, 0
    %v206 = vsel %vm174, %v132, 0
    %v209 = vsel %vm174, %v133, 0
    %v212 = vsel %vm174, %v134, 0
    %v215 = vsel %vm174, %v135, 0
    %v218 = vsel %vm174, %v136, 0
    %v221 = vsel %vm174, %v137, 0
    %223 = vmatprep.subr.bf16.mxu0 0
    %224 = vmatpush1.bf16.msra.mxu0 0
    %225 = vmatprep.subr.bf16.mxu0 0
    %226 = vmatpush1.bf16.msra.mxu0 0
    %227 = vmatprep.subr.bf16.mxu0 0
    %228 = vmatpush1.bf16.msra.mxu0 0
    %229 = vmatprep.subr.bf16.mxu0 0
    %230 = vmatpush1.bf16.msra.mxu0 0
    %231 = vmatprep.subr.bf16.mxu0 0
    %232 = vmatpush1.bf16.msra.mxu0 0
    %233 = vmatprep.subr.bf16.mxu0 0
    %234 = vmatpush1.bf16.msra.mxu0 0
    %235 = vmatprep.subr.bf16.mxu0 %v169
    %236 = vmatpush1.bf16.msra.mxu0 %v168
    %237 = vmatprep.subr.bf16.mxu0 %v167
    %238 = vmatpush1.bf16.msra.mxu0 %v166
    %239 = vmatprep.subr.bf16.mxu0 0
    %240 = vmatpush2.bf16.msra.mxu0 0
    %241 = vmatprep.subr.bf16.mxu0 0
    %242 = vmatpush2.bf16.msra.mxu0 0
    %243 = vmatprep.subr.bf16.mxu0 0
    %244 = vmatpush2.bf16.msra.mxu0 0
    %245 = vmatprep.subr.bf16.mxu0 0
    %246 = vmatpush2.bf16.msra.mxu0 0
    %247 = vmatprep.subr.bf16.mxu0 0
    %248 = vmatpush2.bf16.msra.mxu0 0
    %249 = vmatprep.subr.bf16.mxu0 0
    %250 = vmatpush2.bf16.msra.mxu0 0
    %251 = vmatprep.subr.bf16.mxu0 0
    %252 = vmatpush2.bf16.msra.mxu0 0
    %253 = vmatprep.subr.bf16.mxu0 0
    %254 = vmatpush2.bf16.msra.mxu0 0
    %255 = vmatprep.mubr.bf16.mxu0 0
    %256 = vmatmul.mubr.bf16.gmra.mxu0 %v176
    %v257 = vpop.f32.mrf.mxu0
    %v258 = vadd.f32 %v147, %v257
    %v259 = vpop.f32.mrf.mxu0
    %v260 = vadd.f32 %v151, %v259
    %v261 = vpop.f32.mrf.mxu0
    %v262 = vadd.f32 %v147, %v261
    %v263 = vpop.f32.mrf.mxu0
    %v264 = vadd.f32 %v151, %v263
    %265 = vmatprep.mubr.bf16.mxu0 0
    %266 = vmatmul.mubr.bf16.gmra.mxu0 %v179
    %v267 = vpop.f32.mrf.mxu0
    %v268 = vadd.f32 %v147, %v267
    %v269 = vpop.f32.mrf.mxu0
    %v270 = vadd.f32 %v151, %v269
    %v271 = vpop.f32.mrf.mxu0
    %v272 = vadd.f32 %v147, %v271
    %v273 = vpop.f32.mrf.mxu0
    %v274 = vadd.f32 %v151, %v273
    %275 = vmatprep.mubr.bf16.mxu0 0
    %276 = vmatmul.mubr.bf16.gmra.mxu0 %v182
    %v277 = vpop.f32.mrf.mxu0
    %v278 = vadd.f32 %v147, %v277
    %v279 = vpop.f32.mrf.mxu0
    %v280 = vadd.f32 %v151, %v279
    %v281 = vpop.f32.mrf.mxu0
    %v282 = vadd.f32 %v147, %v281
    %v283 = vpop.f32.mrf.mxu0
    %v284 = vadd.f32 %v151, %v283
    %285 = vmatprep.mubr.bf16.mxu0 0
    %286 = vmatmul.mubr.bf16.gmra.mxu0 %v185
    %v287 = vpop.f32.mrf.mxu0
    %v288 = vadd.f32 %v147, %v287
    %v289 = vpop.f32.mrf.mxu0
    %v290 = vadd.f32 %v151, %v289
    %v291 = vpop.f32.mrf.mxu0
    %v292 = vadd.f32 %v147, %v291
    %v293 = vpop.f32.mrf.mxu0
    %v294 = vadd.f32 %v151, %v293
    %295 = vmatprep.mubr.bf16.mxu0 0
    %296 = vmatmul.mubr.bf16.gmra.mxu0 %v188
    %v297 = vpop.f32.mrf.mxu0
    %v298 = vadd.f32 %v147, %v297
    %v299 = vpop.f32.mrf.mxu0
    %v300 = vadd.f32 %v151, %v299
    %v301 = vpop.f32.mrf.mxu0
    %v302 = vadd.f32 %v147, %v301
    %v303 = vpop.f32.mrf.mxu0
    %v304 = vadd.f32 %v151, %v303
    %305 = vmatprep.mubr.bf16.mxu0 0
    %306 = vmatmul.mubr.bf16.gmra.mxu0 %v191
    %v307 = vpop.f32.mrf.mxu0
    %v308 = vadd.f32 %v147, %v307
    %v309 = vpop.f32.mrf.mxu0
    %v310 = vadd.f32 %v151, %v309
    %v311 = vpop.f32.mrf.mxu0
    %v312 = vadd.f32 %v147, %v311
    %v313 = vpop.f32.mrf.mxu0
    %v314 = vadd.f32 %v151, %v313
    %315 = vmatprep.mubr.bf16.mxu0 0
    %316 = vmatmul.mubr.bf16.gmra.mxu0 %v194
    %v317 = vpop.f32.mrf.mxu0
    %v318 = vadd.f32 %v147, %v317
    %v319 = vpop.f32.mrf.mxu0
    %v320 = vadd.f32 %v151, %v319
    %v321 = vpop.f32.mrf.mxu0
    %v322 = vadd.f32 %v147, %v321
    %v323 = vpop.f32.mrf.mxu0
    %v324 = vadd.f32 %v151, %v323
    %325 = vmatprep.mubr.bf16.mxu0 0
    %326 = vmatmul.mubr.bf16.gmra.mxu0 %v197
    %v327 = vpop.f32.mrf.mxu0
    %v328 = vadd.f32 %v147, %v327
    %v329 = vpop.f32.mrf.mxu0
    %v330 = vadd.f32 %v151, %v329
    %v331 = vpop.f32.mrf.mxu0
    %v332 = vadd.f32 %v147, %v331
    %v333 = vpop.f32.mrf.mxu0
    %v334 = vadd.f32 %v151, %v333
    %335 = vmatprep.mubr.bf16.mxu0 0
    %336 = vmatmul.mubr.bf16.gmra.mxu0 %v200
    %v337 = vpop.f32.mrf.mxu0
    %v338 = vadd.f32 %v147, %v337
    %v339 = vpop.f32.mrf.mxu0
    %v340 = vadd.f32 %v151, %v339
    %v341 = vpop.f32.mrf.mxu0
    %v342 = vadd.f32 %v147, %v341
    %v343 = vpop.f32.mrf.mxu0
    %v344 = vadd.f32 %v151, %v343
    %345 = vmatprep.mubr.bf16.mxu0 0
    %346 = vmatmul.mubr.bf16.gmra.mxu0 %v203
    %v347 = vpop.f32.mrf.mxu0
    %v348 = vadd.f32 %v147, %v347
    %v349 = vpop.f32.mrf.mxu0
    %v350 = vadd.f32 %v151, %v349
    %v351 = vpop.f32.mrf.mxu0
    %v352 = vadd.f32 %v147, %v351
    %v353 = vpop.f32.mrf.mxu0
    %v354 = vadd.f32 %v151, %v353
    %355 = vmatprep.mubr.bf16.mxu0 0
    %356 = vmatmul.mubr.bf16.gmra.mxu0 %v206
    %v357 = vpop.f32.mrf.mxu0
    %v358 = vadd.f32 %v147, %v357
    %v359 = vpop.f32.mrf.mxu0
    %v360 = vadd.f32 %v151, %v359
    %v361 = vpop.f32.mrf.mxu0
    %v362 = vadd.f32 %v147, %v361
    %v363 = vpop.f32.mrf.mxu0
    %v364 = vadd.f32 %v151, %v363
    %365 = vmatprep.mubr.bf16.mxu0 0
    %366 = vmatmul.mubr.bf16.gmra.mxu0 %v209
    %v367 = vpop.f32.mrf.mxu0
    %v368 = vadd.f32 %v147, %v367
    %v369 = vpop.f32.mrf.mxu0
    %v370 = vadd.f32 %v151, %v369
    %v371 = vpop.f32.mrf.mxu0
    %v372 = vadd.f32 %v147, %v371
    %v373 = vpop.f32.mrf.mxu0
    %v374 = vadd.f32 %v151, %v373
    %375 = vmatprep.mubr.bf16.mxu0 0
    %376 = vmatmul.mubr.bf16.gmra.mxu0 %v212
    %v377 = vpop.f32.mrf.mxu0
    %v378 = vadd.f32 %v147, %v377
    %v379 = vpop.f32.mrf.mxu0
    %v380 = vadd.f32 %v151, %v379
    %v381 = vpop.f32.mrf.mxu0
    %v382 = vadd.f32 %v147, %v381
    %v383 = vpop.f32.mrf.mxu0
    %v384 = vadd.f32 %v151, %v383
    %385 = vmatprep.mubr.bf16.mxu0 0
    %386 = vmatmul.mubr.bf16.gmra.mxu0 %v215
    %v387 = vpop.f32.mrf.mxu0
    %v388 = vadd.f32 %v147, %v387
    %v389 = vpop.f32.mrf.mxu0
    %v390 = vadd.f32 %v151, %v389
    %v391 = vpop.f32.mrf.mxu0
    %v392 = vadd.f32 %v147, %v391
    %v393 = vpop.f32.mrf.mxu0
    %v394 = vadd.f32 %v151, %v393
    %395 = vmatprep.mubr.bf16.mxu0 0
    %396 = vmatmul.mubr.bf16.gmra.mxu0 %v218
    %v397 = vpop.f32.mrf.mxu0
    %v398 = vadd.f32 %v147, %v397
    %v399 = vpop.f32.mrf.mxu0
    %v400 = vadd.f32 %v151, %v399
    %v401 = vpop.f32.mrf.mxu0
    %v402 = vadd.f32 %v147, %v401
    %v403 = vpop.f32.mrf.mxu0
    %v404 = vadd.f32 %v151, %v403
    %405 = vmatprep.mubr.bf16.mxu0 0
    %406 = vmatmul.mubr.bf16.gmra.mxu0 %v221
    %v407 = vpop.f32.mrf.mxu0
    %v408 = vadd.f32 %v147, %v407
    %v409 = vpop.f32.mrf.mxu0
    %v410 = vadd.f32 %v151, %v409
    %v411 = vpop.f32.mrf.mxu0
    %v412 = vadd.f32 %v147, %v411
    %v413 = vpop.f32.mrf.mxu0
    %v414 = vadd.f32 %v151, %v413
    %415 = vdwg.mxu0
    %v416 = vtanh.pop %v258
    %v417 = vtanh.pop %v260
    %v418 = vtanh.pop %v262
    %v419 = vtanh.pop %v264
    %v420 = vtanh.pop %v268
    %v421 = vtanh.pop %v270
    %v422 = vtanh.pop %v272
    %v423 = vtanh.pop %v274
    %v424 = vtanh.pop %v278
    %v425 = vtanh.pop %v280
    %v426 = vtanh.pop %v282
    %v427 = vtanh.pop %v284
    %v428 = vtanh.pop %v288
    %v429 = vtanh.pop %v290
    %v430 = vtanh.pop %v292
    %v431 = vtanh.pop %v294
    %v432 = vtanh.pop %v298
    %v433 = vtanh.pop %v300
    %v434 = vtanh.pop %v302
    %v435 = vtanh.pop %v304
    %v436 = vtanh.pop %v308
    %v437 = vtanh.pop %v310
    %v438 = vtanh.pop %v312
    %v439 = vtanh.pop %v314
    %v440 = vtanh.pop %v318
    %v441 = vtanh.pop %v320
    %v442 = vtanh.pop %v322
    %v443 = vtanh.pop %v324
    %v444 = vtanh.pop %v328
    %v445 = vtanh.pop %v330
    %v446 = vtanh.pop %v332
    %v447 = vtanh.pop %v334
    %v448 = vtanh.pop %v338
    %v449 = vtanh.pop %v340
    %v450 = vtanh.pop %v342
    %v451 = vtanh.pop %v344
    %v452 = vtanh.pop %v348
    %v453 = vtanh.pop %v350
    %v454 = vtanh.pop %v352
    %v455 = vtanh.pop %v354
    %v456 = vtanh.pop %v358
    %v457 = vtanh.pop %v360
    %v458 = vtanh.pop %v362
    %v459 = vtanh.pop %v364
    %v460 = vtanh.pop %v368
    %v461 = vtanh.pop %v370
    %v462 = vtanh.pop %v372
    %v463 = vtanh.pop %v374
    %v464 = vtanh.pop %v378
    %v465 = vtanh.pop %v380
    %v466 = vtanh.pop %v382
    %v467 = vtanh.pop %v384
    %v468 = vtanh.pop %v388
    %v469 = vtanh.pop %v390
    %v470 = vtanh.pop %v392
    %v471 = vtanh.pop %v394
    %v472 = vtanh.pop %v398
    %v473 = vtanh.pop %v400
    %v474 = vtanh.pop %v402
    %v475 = vtanh.pop %v404
    %v476 = vtanh.pop %v408
    %v477 = vtanh.pop %v410
    %v478 = vtanh.pop %v412
    %v479 = vtanh.pop %v414
    %v480 = vpack.c.bf16 %v418, %v416
    %v481 = vpack.c.bf16 %v419, %v417
    %v482 = vpack.c.bf16 %v422, %v420
    %v483 = vpack.c.bf16 %v423, %v421
    %v484 = vpack.c.bf16 %v426, %v424
    %v485 = vpack.c.bf16 %v427, %v425
    %v486 = vpack.c.bf16 %v430, %v428
    %v487 = vpack.c.bf16 %v431, %v429
    %v488 = vpack.c.bf16 %v434, %v432
    %v489 = vpack.c.bf16 %v435, %v433
    %v490 = vpack.c.bf16 %v438, %v436
    %v491 = vpack.c.bf16 %v439, %v437
    %v492 = vpack.c.bf16 %v442, %v440
    %v493 = vpack.c.bf16 %v443, %v441
    %v494 = vpack.c.bf16 %v446, %v444
    %v495 = vpack.c.bf16 %v447, %v445
    %v496 = vpack.c.bf16 %v450, %v448
    %v497 = vpack.c.bf16 %v451, %v449
    %v498 = vpack.c.bf16 %v454, %v452
    %v499 = vpack.c.bf16 %v455, %v453
    %v500 = vpack.c.bf16 %v458, %v456
    %v501 = vpack.c.bf16 %v459, %v457
    %v502 = vpack.c.bf16 %v462, %v460
    %v503 = vpack.c.bf16 %v463, %v461
    %v504 = vpack.c.bf16 %v466, %v464
    %v505 = vpack.c.bf16 %v467, %v465
    %v506 = vpack.c.bf16 %v470, %v468
    %v507 = vpack.c.bf16 %v471, %v469
    %v508 = vpack.c.bf16 %v474, %v472
    %v509 = vpack.c.bf16 %v475, %v473
    %v510 = vpack.c.bf16 %v478, %v476
    %v511 = vpack.c.bf16 %v479, %v477
    %v512 = vld [vmem:[%s4] sm:$0xf]
    %v513 = vld [vmem:[%s4 + $0x4] sm:$0xf]
    %v514 = vld [vmem:[%s4 + $0x8] sm:$0xf]
    %v515 = vld [vmem:[%s4 + $0xc] sm:$0xf]
    %v516 = vld [vmem:[%s4 + $0x10] sm:$0xf]
    %v517 = vld [vmem:[%s4 + $0x14] sm:$0xf]
    %v518 = vld [vmem:[%s4 + $0x18] sm:$0xf]
    %v519 = vld [vmem:[%s4 + $0x1c] sm:$0xf]
    %v520 = vld [vmem:[%s4 + $0x20] sm:$0xf]
    %v521 = vld [vmem:[%s4 + $0x24] sm:$0xf]
    %v522 = vld [vmem:[%s4 + $0x28] sm:$0xf]
    %v523 = vld [vmem:[%s4 + $0x2c] sm:$0xf]
    %v524 = vld [vmem:[%s4 + $0x30] sm:$0xf]
    %v525 = vld [vmem:[%s4 + $0x34] sm:$0xf]
    %v526 = vld [vmem:[%s4 + $0x38] sm:$0xf]
    %v527 = vld [vmem:[%s4 + $0x3c] sm:$0xf]
    %v528 = vld [vmem:[%s4 + $0x40] sm:$0xf]
    %v529 = vld [vmem:[%s4 + $0x44] sm:$0xf]
    %v530 = vld [vmem:[%s4 + $0x48] sm:$0xf]
    %v531 = vld [vmem:[%s4 + $0x4c] sm:$0xf]
    %v532 = vld [vmem:[%s4 + $0x50] sm:$0xf]
    %v533 = vld [vmem:[%s4 + $0x54] sm:$0xf]
    %v534 = vld [vmem:[%s4 + $0x58] sm:$0xf]
    %v535 = vld [vmem:[%s4 + $0x5c] sm:$0xf]
    %v536 = vld [vmem:[%s4 + $0x60] sm:$0xf]
    %v537 = vld [vmem:[%s4 + $0x64] sm:$0xf]
    %v538 = vld [vmem:[%s4 + $0x68] sm:$0xf]
    %v539 = vld [vmem:[%s4 + $0x6c] sm:$0xf]
    %v540 = vld [vmem:[%s4 + $0x70] sm:$0xf]
    %v541 = vld [vmem:[%s4 + $0x74] sm:$0xf]
    %v542 = vld [vmem:[%s4 + $0x78] sm:$0xf]
    %v543 = vld [vmem:[%s4 + $0x7c] sm:$0xf]
    %v544 = vld [vmem:[%s5] sm:$0x1]
    %v546 = vlaneseq
    %v547 = vshrl.u32 %v546, 7
    %v548 = vsub.s32 0, %v547
    %v549 = vrot.slane %v544, %v548
    %v583 = vunpack.c.l.b16 %v512
    %v584 = vunpack.c.l.b16 %v513
    %v585 = vunpack.c.l.b16 %v514
    %v586 = vunpack.c.l.b16 %v515
    %v587 = vunpack.c.l.b16 %v516
    %v588 = vunpack.c.l.b16 %v517
    %v589 = vunpack.c.l.b16 %v518
    %v590 = vunpack.c.l.b16 %v519
    %v591 = vunpack.c.l.b16 %v520
    %v592 = vunpack.c.l.b16 %v521
    %v593 = vunpack.c.l.b16 %v522
    %v594 = vunpack.c.l.b16 %v523
    %v595 = vunpack.c.l.b16 %v524
    %v596 = vunpack.c.l.b16 %v525
    %v597 = vunpack.c.l.b16 %v526
    %v598 = vunpack.c.l.b16 %v527
    %v599 = vunpack.c.l.b16 %v528
    %v600 = vunpack.c.l.b16 %v529
    %v601 = vunpack.c.l.b16 %v530
    %v602 = vunpack.c.l.b16 %v531
    %v603 = vunpack.c.l.b16 %v532
    %v604 = vunpack.c.l.b16 %v533
    %v605 = vunpack.c.l.b16 %v534
    %v606 = vunpack.c.l.b16 %v535
    %v607 = vunpack.c.l.b16 %v536
    %v608 = vunpack.c.l.b16 %v537
    %v609 = vunpack.c.l.b16 %v538
    %v610 = vunpack.c.l.b16 %v539
    %v611 = vunpack.c.l.b16 %v540
    %v612 = vunpack.c.l.b16 %v541
    %v613 = vunpack.c.l.b16 %v542
    %v614 = vunpack.c.l.b16 %v543
    %v615 = vpack.c.b16 %v584, %v583
    %v616 = vpack.c.b16 %v586, %v585
    %v617 = vpack.c.b16 %v588, %v587
    %v618 = vpack.c.b16 %v590, %v589
    %v619 = vpack.c.b16 %v592, %v591
    %v620 = vpack.c.b16 %v594, %v593
    %v621 = vpack.c.b16 %v596, %v595
    %v622 = vpack.c.b16 %v598, %v597
    %v623 = vpack.c.b16 %v600, %v599
    %v624 = vpack.c.b16 %v602, %v601
    %v625 = vpack.c.b16 %v604, %v603
    %v626 = vpack.c.b16 %v606, %v605
    %v627 = vpack.c.b16 %v608, %v607
    %v628 = vpack.c.b16 %v610, %v609
    %v629 = vpack.c.b16 %v612, %v611
    %v630 = vpack.c.b16 %v614, %v613
    %647 = vmatprep.subr.bf16.mxu0 0
    %648 = vmatpush1.bf16.msra.mxu0 %v622
    %649 = vmatprep.subr.bf16.mxu0 0
    %650 = vmatpush1.bf16.msra.mxu0 %v621
    %651 = vmatprep.subr.bf16.mxu0 0
    %652 = vmatpush1.bf16.msra.mxu0 %v620
    %653 = vmatprep.subr.bf16.mxu0 0
    %654 = vmatpush1.bf16.msra.mxu0 %v619
    %655 = vmatprep.subr.bf16.mxu0 0
    %656 = vmatpush1.bf16.msra.mxu0 %v618
    %657 = vmatprep.subr.bf16.mxu0 0
    %658 = vmatpush1.bf16.msra.mxu0 %v617
    %659 = vmatprep.subr.bf16.mxu0 0
    %660 = vmatpush1.bf16.msra.mxu0 %v616
    %661 = vmatprep.subr.bf16.mxu0 0
    %662 = vmatpush1.bf16.msra.mxu0 %v615
    %663 = vmatprep.subr.bf16.mxu0 0
    %664 = vmatpush2.bf16.msra.mxu0 %v630
    %665 = vmatprep.subr.bf16.mxu0 0
    %666 = vmatpush2.bf16.msra.mxu0 %v629
    %667 = vmatprep.subr.bf16.mxu0 0
    %668 = vmatpush2.bf16.msra.mxu0 %v628
    %669 = vmatprep.subr.bf16.mxu0 0
    %670 = vmatpush2.bf16.msra.mxu0 %v627
    %671 = vmatprep.subr.bf16.mxu0 0
    %672 = vmatpush2.bf16.msra.mxu0 %v626
    %673 = vmatprep.subr.bf16.mxu0 0
    %674 = vmatpush2.bf16.msra.mxu0 %v625
    %675 = vmatprep.subr.bf16.mxu0 0
    %676 = vmatpush2.bf16.msra.mxu0 %v624
    %677 = vmatprep.subr.bf16.mxu0 0
    %678 = vmatpush2.bf16.msra.mxu0 %v623
    %679 = vmatprep.mubr.bf16.mxu0 %v481
    %680 = vmatmul.mubr.bf16.gmra.mxu0 %v480
    %v681 = vpop.f32.mrf.mxu0
    %v682 = vadd.f32 %v549, %v681
    %v683 = vpop.f32.mrf.mxu0
    %v684 = vpop.f32.mrf.mxu0
    %v685 = vadd.f32 %v549, %v684
    %v686 = vpop.f32.mrf.mxu0
    %687 = vmatprep.mubr.bf16.mxu0 %v483
    %688 = vmatmul.mubr.bf16.gmra.mxu0 %v482
    %v689 = vpop.f32.mrf.mxu0
    %v690 = vadd.f32 %v549, %v689
    %v691 = vpop.f32.mrf.mxu0
    %v692 = vpop.f32.mrf.mxu0
    %v693 = vadd.f32 %v549, %v692
    %v694 = vpop.f32.mrf.mxu0
    %695 = vmatprep.mubr.bf16.mxu0 %v485
    %696 = vmatmul.mubr.bf16.gmra.mxu0 %v484
    %v697 = vpop.f32.mrf.mxu0
    %v698 = vadd.f32 %v549, %v697
    %v699 = vpop.f32.mrf.mxu0
    %v700 = vpop.f32.mrf.mxu0
    %v701 = vadd.f32 %v549, %v700
    %v702 = vpop.f32.mrf.mxu0
    %703 = vmatprep.mubr.bf16.mxu0 %v487
    %704 = vmatmul.mubr.bf16.gmra.mxu0 %v486
    %v705 = vpop.f32.mrf.mxu0
    %v706 = vadd.f32 %v549, %v705
    %v707 = vpop.f32.mrf.mxu0
    %v708 = vpop.f32.mrf.mxu0
    %v709 = vadd.f32 %v549, %v708
    %v710 = vpop.f32.mrf.mxu0
    %711 = vmatprep.mubr.bf16.mxu0 %v489
    %712 = vmatmul.mubr.bf16.gmra.mxu0 %v488
    %v713 = vpop.f32.mrf.mxu0
    %v714 = vadd.f32 %v549, %v713
    %v715 = vpop.f32.mrf.mxu0
    %v716 = vpop.f32.mrf.mxu0
    %v717 = vadd.f32 %v549, %v716
    %v718 = vpop.f32.mrf.mxu0
    %719 = vmatprep.mubr.bf16.mxu0 %v491
    %720 = vmatmul.mubr.bf16.gmra.mxu0 %v490
    %v721 = vpop.f32.mrf.mxu0
    %v722 = vadd.f32 %v549, %v721
    %v723 = vpop.f32.mrf.mxu0
    %v724 = vpop.f32.mrf.mxu0
    %v725 = vadd.f32 %v549, %v724
    %v726 = vpop.f32.mrf.mxu0
    %727 = vmatprep.mubr.bf16.mxu0 %v493
    %728 = vmatmul.mubr.bf16.gmra.mxu0 %v492
    %v729 = vpop.f32.mrf.mxu0
    %v730 = vadd.f32 %v549, %v729
    %v731 = vpop.f32.mrf.mxu0
    %v732 = vpop.f32.mrf.mxu0
    %v733 = vadd.f32 %v549, %v732
    %v734 = vpop.f32.mrf.mxu0
    %735 = vmatprep.mubr.bf16.mxu0 %v495
    %736 = vmatmul.mubr.bf16.gmra.mxu0 %v494
    %v737 = vpop.f32.mrf.mxu0
    %v738 = vadd.f32 %v549, %v737
    %v739 = vpop.f32.mrf.mxu0
    %v740 = vpop.f32.mrf.mxu0
    %v741 = vadd.f32 %v549, %v740
    %v742 = vpop.f32.mrf.mxu0
    %743 = vmatprep.mubr.bf16.mxu0 %v497
    %744 = vmatmul.mubr.bf16.gmra.mxu0 %v496
    %v745 = vpop.f32.mrf.mxu0
    %v746 = vadd.f32 %v549, %v745
    %v747 = vpop.f32.mrf.mxu0
    %v748 = vpop.f32.mrf.mxu0
    %v749 = vadd.f32 %v549, %v748
    %v750 = vpop.f32.mrf.mxu0
    %751 = vmatprep.mubr.bf16.mxu0 %v499
    %752 = vmatmul.mubr.bf16.gmra.mxu0 %v498
    %v753 = vpop.f32.mrf.mxu0
    %v754 = vadd.f32 %v549, %v753
    %v755 = vpop.f32.mrf.mxu0
    %v756 = vpop.f32.mrf.mxu0
    %v757 = vadd.f32 %v549, %v756
    %v758 = vpop.f32.mrf.mxu0
    %759 = vmatprep.mubr.bf16.mxu0 %v501
    %760 = vmatmul.mubr.bf16.gmra.mxu0 %v500
    %v761 = vpop.f32.mrf.mxu0
    %v762 = vadd.f32 %v549, %v761
    %v763 = vpop.f32.mrf.mxu0
    %v764 = vpop.f32.mrf.mxu0
    %v765 = vadd.f32 %v549, %v764
    %v766 = vpop.f32.mrf.mxu0
    %767 = vmatprep.mubr.bf16.mxu0 %v503
    %768 = vmatmul.mubr.bf16.gmra.mxu0 %v502
    %v769 = vpop.f32.mrf.mxu0
    %v770 = vadd.f32 %v549, %v769
    %v771 = vpop.f32.mrf.mxu0
    %v772 = vpop.f32.mrf.mxu0
    %v773 = vadd.f32 %v549, %v772
    %v774 = vpop.f32.mrf.mxu0
    %775 = vmatprep.mubr.bf16.mxu0 %v505
    %776 = vmatmul.mubr.bf16.gmra.mxu0 %v504
    %v777 = vpop.f32.mrf.mxu0
    %v778 = vadd.f32 %v549, %v777
    %v779 = vpop.f32.mrf.mxu0
    %v780 = vpop.f32.mrf.mxu0
    %v781 = vadd.f32 %v549, %v780
    %v782 = vpop.f32.mrf.mxu0
    %783 = vmatprep.mubr.bf16.mxu0 %v507
    %784 = vmatmul.mubr.bf16.gmra.mxu0 %v506
    %v785 = vpop.f32.mrf.mxu0
    %v786 = vadd.f32 %v549, %v785
    %v787 = vpop.f32.mrf.mxu0
    %v788 = vpop.f32.mrf.mxu0
    %v789 = vadd.f32 %v549, %v788
    %v790 = vpop.f32.mrf.mxu0
    %791 = vmatprep.mubr.bf16.mxu0 %v509
    %792 = vmatmul.mubr.bf16.gmra.mxu0 %v508
    %v793 = vpop.f32.mrf.mxu0
    %v794 = vadd.f32 %v549, %v793
    %v795 = vpop.f32.mrf.mxu0
    %v796 = vpop.f32.mrf.mxu0
    %v797 = vadd.f32 %v549, %v796
    %v798 = vpop.f32.mrf.mxu0
    %799 = vmatprep.mubr.bf16.mxu0 %v511
    %800 = vmatmul.mubr.bf16.gmra.mxu0 %v510
    %v801 = vpop.f32.mrf.mxu0
    %v802 = vadd.f32 %v549, %v801
    %v803 = vpop.f32.mrf.mxu0
    %v804 = vpop.f32.mrf.mxu0
    %v805 = vadd.f32 %v549, %v804
    %v806 = vpop.f32.mrf.mxu0
    %807 = vdwg.mxu0
    %v808 = vtanh.pop %v682
    %v809 = vtanh.pop %v685
    %v810 = vtanh.pop %v690
    %v811 = vtanh.pop %v693
    %v812 = vtanh.pop %v698
    %v813 = vtanh.pop %v701
    %v814 = vtanh.pop %v706
    %v815 = vtanh.pop %v709
    %v816 = vtanh.pop %v714
    %v817 = vtanh.pop %v717
    %v818 = vtanh.pop %v722
    %v819 = vtanh.pop %v725
    %v820 = vtanh.pop %v730
    %v821 = vtanh.pop %v733
    %v822 = vtanh.pop %v738
    %v823 = vtanh.pop %v741
    %v824 = vtanh.pop %v746
    %v825 = vtanh.pop %v749
    %v826 = vtanh.pop %v754
    %v827 = vtanh.pop %v757
    %v828 = vtanh.pop %v762
    %v829 = vtanh.pop %v765
    %v830 = vtanh.pop %v770
    %v831 = vtanh.pop %v773
    %v832 = vtanh.pop %v778
    %v833 = vtanh.pop %v781
    %v834 = vtanh.pop %v786
    %v835 = vtanh.pop %v789
    %v836 = vtanh.pop %v794
    %v837 = vtanh.pop %v797
    %v838 = vtanh.pop %v802
    %v839 = vtanh.pop %v805
    %v840 = vld [vmem:[%s6] sm:$0xff]
    %v841 = vld [vmem:[%s6 + $0x8] sm:$0xff]
    %v842 = vld [vmem:[%s6 + $0x10] sm:$0xff]
    %v843 = vld [vmem:[%s6 + $0x18] sm:$0xff]
    %v844 = vld [vmem:[%s6 + $0x20] sm:$0xff]
    %v845 = vld [vmem:[%s6 + $0x28] sm:$0xff]
    %v846 = vld [vmem:[%s6 + $0x30] sm:$0xff]
    %v847 = vld [vmem:[%s6 + $0x38] sm:$0xff]
    %v848 = vld [vmem:[%s6 + $0x40] sm:$0xff]
    %v849 = vld [vmem:[%s6 + $0x48] sm:$0xff]
    %v850 = vld [vmem:[%s6 + $0x50] sm:$0xff]
    %v851 = vld [vmem:[%s6 + $0x58] sm:$0xff]
    %v852 = vld [vmem:[%s6 + $0x60] sm:$0xff]
    %v853 = vld [vmem:[%s6 + $0x68] sm:$0xff]
    %v854 = vld [vmem:[%s6 + $0x70] sm:$0xff]
    %v855 = vld [vmem:[%s6 + $0x78] sm:$0xff]
    %v856 = vld [vmem:[%s7] sm:$0x1]
    %v858 = vlaneseq
    %v859 = vshrl.u32 %v858, 7
    %v860 = vsub.s32 0, %v859
    %v861 = vrot.slane %v856, %v860
    %863 = vmatprep.subr.mxu0 0.0
    %864 = vmatpush1.msra.mxu0 %v855
    %865 = vmatprep.subr.mxu0 0.0
    %866 = vmatpush1.msra.mxu0 %v854
    %867 = vmatprep.subr.mxu0 0.0
    %868 = vmatpush1.msra.mxu0 %v853
    %869 = vmatprep.subr.mxu0 0.0
    %870 = vmatpush1.msra.mxu0 %v852
    %871 = vmatprep.subr.mxu0 0.0
    %872 = vmatpush1.msra.mxu0 %v851
    %873 = vmatprep.subr.mxu0 0.0
    %874 = vmatpush1.msra.mxu0 %v850
    %875 = vmatprep.subr.mxu0 0.0
    %876 = vmatpush1.msra.mxu0 %v849
    %877 = vmatprep.subr.mxu0 0.0
    %878 = vmatpush1.msra.mxu0 %v848
    %879 = vmatprep.subr.mxu0 0.0
    %880 = vmatpush1.msra.mxu0 %v847
    %881 = vmatprep.subr.mxu0 0.0
    %882 = vmatpush1.msra.mxu0 %v846
    %883 = vmatprep.subr.mxu0 0.0
    %884 = vmatpush1.msra.mxu0 %v845
    %885 = vmatprep.subr.mxu0 0.0
    %886 = vmatpush1.msra.mxu0 %v844
    %887 = vmatprep.subr.mxu0 0.0
    %888 = vmatpush1.msra.mxu0 %v843
    %889 = vmatprep.subr.mxu0 0.0
    %890 = vmatpush1.msra.mxu0 %v842
    %891 = vmatprep.subr.mxu0 0.0
    %892 = vmatpush1.msra.mxu0 %v841
    %893 = vmatprep.subr.mxu0 0.0
    %894 = vmatpush1.msra.mxu0 %v840
    %895 = vmatprep.subr.mxu0 0.0
    %896 = vmatpush2.msra.mxu0 0.0
    %897 = vmatprep.subr.mxu0 0.0
    %898 = vmatpush2.msra.mxu0 0.0
    %899 = vmatprep.subr.mxu0 0.0
    %900 = vmatpush2.msra.mxu0 0.0
    %901 = vmatprep.subr.mxu0 0.0
    %902 = vmatpush2.msra.mxu0 0.0
    %903 = vmatprep.subr.mxu0 0.0
    %904 = vmatpush2.msra.mxu0 0.0
    %905 = vmatprep.subr.mxu0 0.0
    %906 = vmatpush2.msra.mxu0 0.0
    %907 = vmatprep.subr.mxu0 0.0
    %908 = vmatpush2.msra.mxu0 0.0
    %909 = vmatprep.subr.mxu0 0.0
    %910 = vmatpush2.msra.mxu0 0.0
    %911 = vmatprep.subr.mxu0 0.0
    %912 = vmatpush2.msra.mxu0 0.0
    %913 = vmatprep.subr.mxu0 0.0
    %914 = vmatpush2.msra.mxu0 0.0
    %915 = vmatprep.subr.mxu0 0.0
    %916 = vmatpush2.msra.mxu0 0.0
    %917 = vmatprep.subr.mxu0 0.0
    %918 = vmatpush2.msra.mxu0 0.0
    %919 = vmatprep.subr.mxu0 0.0
    %920 = vmatpush2.msra.mxu0 0.0
    %921 = vmatprep.subr.mxu0 0.0
    %922 = vmatpush2.msra.mxu0 0.0
    %923 = vmatprep.subr.mxu0 0.0
    %924 = vmatpush2.msra.mxu0 0.0
    %925 = vmatprep.subr.mxu0 0.0
    %926 = vmatpush2.msra.mxu0 0.0
    %927 = vmatprep.mubr.f32.mxu0 0.0
    %928 = vmatmul.mubr.f32.gmra.mxu0 %v808
    %v929 = vpop.f32.mrf.mxu0
    %v930 = vadd.f32 %v861, %v929
    %v931 = vpop.f32.mrf.mxu0
    %932 = vmatprep.mubr.f32.mxu0 0.0
    %933 = vmatmul.mubr.f32.gmra.mxu0 %v809
    %v934 = vpop.f32.mrf.mxu0
    %v935 = vadd.f32 %v861, %v934
    %v936 = vpop.f32.mrf.mxu0
    %937 = vmatprep.mubr.f32.mxu0 0.0
    %938 = vmatmul.mubr.f32.gmra.mxu0 %v810
    %v939 = vpop.f32.mrf.mxu0
    %v940 = vadd.f32 %v861, %v939
    %v941 = vpop.f32.mrf.mxu0
    %942 = vmatprep.mubr.f32.mxu0 0.0
    %943 = vmatmul.mubr.f32.gmra.mxu0 %v811
    %v944 = vpop.f32.mrf.mxu0
    %v945 = vadd.f32 %v861, %v944
    %v946 = vpop.f32.mrf.mxu0
    %947 = vmatprep.mubr.f32.mxu0 0.0
    %948 = vmatmul.mubr.f32.gmra.mxu0 %v812
    %v949 = vpop.f32.mrf.mxu0
    %v950 = vadd.f32 %v861, %v949
    %v951 = vpop.f32.mrf.mxu0
    %952 = vmatprep.mubr.f32.mxu0 0.0
    %953 = vmatmul.mubr.f32.gmra.mxu0 %v813
    %v954 = vpop.f32.mrf.mxu0
    %v955 = vadd.f32 %v861, %v954
    %v956 = vpop.f32.mrf.mxu0
    %957 = vmatprep.mubr.f32.mxu0 0.0
    %958 = vmatmul.mubr.f32.gmra.mxu0 %v814
    %v959 = vpop.f32.mrf.mxu0
    %v960 = vadd.f32 %v861, %v959
    %v961 = vpop.f32.mrf.mxu0
    %962 = vmatprep.mubr.f32.mxu0 0.0
    %963 = vmatmul.mubr.f32.gmra.mxu0 %v815
    %v964 = vpop.f32.mrf.mxu0
    %v965 = vadd.f32 %v861, %v964
    %v966 = vpop.f32.mrf.mxu0
    %967 = vmatprep.mubr.f32.mxu0 0.0
    %968 = vmatmul.mubr.f32.gmra.mxu0 %v816
    %v969 = vpop.f32.mrf.mxu0
    %v970 = vadd.f32 %v861, %v969
    %v971 = vpop.f32.mrf.mxu0
    %972 = vmatprep.mubr.f32.mxu0 0.0
    %973 = vmatmul.mubr.f32.gmra.mxu0 %v817
    %v974 = vpop.f32.mrf.mxu0
    %v975 = vadd.f32 %v861, %v974
    %v976 = vpop.f32.mrf.mxu0
    %977 = vmatprep.mubr.f32.mxu0 0.0
    %978 = vmatmul.mubr.f32.gmra.mxu0 %v818
    %v979 = vpop.f32.mrf.mxu0
    %v980 = vadd.f32 %v861, %v979
    %v981 = vpop.f32.mrf.mxu0
    %982 = vmatprep.mubr.f32.mxu0 0.0
    %983 = vmatmul.mubr.f32.gmra.mxu0 %v819
    %v984 = vpop.f32.mrf.mxu0
    %v985 = vadd.f32 %v861, %v984
    %v986 = vpop.f32.mrf.mxu0
    %987 = vmatprep.mubr.f32.mxu0 0.0
    %988 = vmatmul.mubr.f32.gmra.mxu0 %v820
    %v989 = vpop.f32.mrf.mxu0
    %v990 = vadd.f32 %v861, %v989
    %v991 = vpop.f32.mrf.mxu0
    %992 = vmatprep.mubr.f32.mxu0 0.0
    %993 = vmatmul.mubr.f32.gmra.mxu0 %v821
    %v994 = vpop.f32.mrf.mxu0
    %v995 = vadd.f32 %v861, %v994
    %v996 = vpop.f32.mrf.mxu0
    %997 = vmatprep.mubr.f32.mxu0 0.0
    %998 = vmatmul.mubr.f32.gmra.mxu0 %v822
    %v999 = vpop.f32.mrf.mxu0
    %v1000 = vadd.f32 %v861, %v999
    %v1001 = vpop.f32.mrf.mxu0
    %1002 = vmatprep.mubr.f32.mxu0 0.0
    %1003 = vmatmul.mubr.f32.gmra.mxu0 %v823
    %v1004 = vpop.f32.mrf.mxu0
    %v1005 = vadd.f32 %v861, %v1004
    %v1006 = vpop.f32.mrf.mxu0
    %1007 = vmatprep.mubr.f32.mxu0 0.0
    %1008 = vmatmul.mubr.f32.gmra.mxu0 %v824
    %v1009 = vpop.f32.mrf.mxu0
    %v1010 = vadd.f32 %v861, %v1009
    %v1011 = vpop.f32.mrf.mxu0
    %1012 = vmatprep.mubr.f32.mxu0 0.0
    %1013 = vmatmul.mubr.f32.gmra.mxu0 %v825
    %v1014 = vpop.f32.mrf.mxu0
    %v1015 = vadd.f32 %v861, %v1014
    %v1016 = vpop.f32.mrf.mxu0
    %1017 = vmatprep.mubr.f32.mxu0 0.0
    %1018 = vmatmul.mubr.f32.gmra.mxu0 %v826
    %v1019 = vpop.f32.mrf.mxu0
    %v1020 = vadd.f32 %v861, %v1019
    %v1021 = vpop.f32.mrf.mxu0
    %1022 = vmatprep.mubr.f32.mxu0 0.0
    %1023 = vmatmul.mubr.f32.gmra.mxu0 %v827
    %v1024 = vpop.f32.mrf.mxu0
    %v1025 = vadd.f32 %v861, %v1024
    %v1026 = vpop.f32.mrf.mxu0
    %1027 = vmatprep.mubr.f32.mxu0 0.0
    %1028 = vmatmul.mubr.f32.gmra.mxu0 %v828
    %v1029 = vpop.f32.mrf.mxu0
    %v1030 = vadd.f32 %v861, %v1029
    %v1031 = vpop.f32.mrf.mxu0
    %1032 = vmatprep.mubr.f32.mxu0 0.0
    %1033 = vmatmul.mubr.f32.gmra.mxu0 %v829
    %v1034 = vpop.f32.mrf.mxu0
    %v1035 = vadd.f32 %v861, %v1034
    %v1036 = vpop.f32.mrf.mxu0
    %1037 = vmatprep.mubr.f32.mxu0 0.0
    %1038 = vmatmul.mubr.f32.gmra.mxu0 %v830
    %v1039 = vpop.f32.mrf.mxu0
    %v1040 = vadd.f32 %v861, %v1039
    %v1041 = vpop.f32.mrf.mxu0
    %1042 = vmatprep.mubr.f32.mxu0 0.0
    %1043 = vmatmul.mubr.f32.gmra.mxu0 %v831
    %v1044 = vpop.f32.mrf.mxu0
    %v1045 = vadd.f32 %v861, %v1044
    %v1046 = vpop.f32.mrf.mxu0
    %1047 = vmatprep.mubr.f32.mxu0 0.0
    %1048 = vmatmul.mubr.f32.gmra.mxu0 %v832
    %v1049 = vpop.f32.mrf.mxu0
    %v1050 = vadd.f32 %v861, %v1049
    %v1051 = vpop.f32.mrf.mxu0
    %1052 = vmatprep.mubr.f32.mxu0 0.0
    %1053 = vmatmul.mubr.f32.gmra.mxu0 %v833
    %v1054 = vpop.f32.mrf.mxu0
    %v1055 = vadd.f32 %v861, %v1054
    %v1056 = vpop.f32.mrf.mxu0
    %1057 = vmatprep.mubr.f32.mxu0 0.0
    %1058 = vmatmul.mubr.f32.gmra.mxu0 %v834
    %v1059 = vpop.f32.mrf.mxu0
    %v1060 = vadd.f32 %v861, %v1059
    %v1061 = vpop.f32.mrf.mxu0
    %1062 = vmatprep.mubr.f32.mxu0 0.0
    %1063 = vmatmul.mubr.f32.gmra.mxu0 %v835
    %v1064 = vpop.f32.mrf.mxu0
    %v1065 = vadd.f32 %v861, %v1064
    %v1066 = vpop.f32.mrf.mxu0
    %1067 = vmatprep.mubr.f32.mxu0 0.0
    %1068 = vmatmul.mubr.f32.gmra.mxu0 %v836
    %v1069 = vpop.f32.mrf.mxu0
    %v1070 = vadd.f32 %v861, %v1069
    %v1071 = vpop.f32.mrf.mxu0
    %1072 = vmatprep.mubr.f32.mxu0 0.0
    %1073 = vmatmul.mubr.f32.gmra.mxu0 %v837
    %v1074 = vpop.f32.mrf.mxu0
    %v1075 = vadd.f32 %v861, %v1074
    %v1076 = vpop.f32.mrf.mxu0
    %1077 = vmatprep.mubr.f32.mxu0 0.0
    %1078 = vmatmul.mubr.f32.gmra.mxu0 %v838
    %v1079 = vpop.f32.mrf.mxu0
    %v1080 = vadd.f32 %v861, %v1079
    %v1081 = vpop.f32.mrf.mxu0
    %1082 = vmatprep.mubr.f32.mxu0 0.0
    %1083 = vmatmul.mubr.f32.gmra.mxu0 %v839
    %v1084 = vpop.f32.mrf.mxu0
    %v1085 = vadd.f32 %v861, %v1084
    %v1086 = vpop.f32.mrf.mxu0
    %1087 = vdwg.mxu0
    %v1088 = vld [vmem:[%s1] sm:$0xff]
    %v1089 = vld [vmem:[%s1 + $0x8] sm:$0xff]
    %v1090 = vld [vmem:[%s1 + $0x10] sm:$0xff]
    %v1091 = vld [vmem:[%s1 + $0x18] sm:$0xff]
    %v1092 = vld [vmem:[%s1 + $0x20] sm:$0xff]
    %v1093 = vld [vmem:[%s1 + $0x28] sm:$0xff]
    %v1094 = vld [vmem:[%s1 + $0x30] sm:$0xff]
    %v1095 = vld [vmem:[%s1 + $0x38] sm:$0xff]
    %v1096 = vld [vmem:[%s1 + $0x40] sm:$0xff]
    %v1097 = vld [vmem:[%s1 + $0x48] sm:$0xff]
    %v1098 = vld [vmem:[%s1 + $0x50] sm:$0xff]
    %v1099 = vld [vmem:[%s1 + $0x58] sm:$0xff]
    %v1100 = vld [vmem:[%s1 + $0x60] sm:$0xff]
    %v1101 = vld [vmem:[%s1 + $0x68] sm:$0xff]
    %v1102 = vld [vmem:[%s1 + $0x70] sm:$0xff]
    %v1103 = vld [vmem:[%s1 + $0x78] sm:$0xff]
    %v1104 = vld [vmem:[%s1 + $0x80] sm:$0xff]
    %v1105 = vld [vmem:[%s1 + $0x88] sm:$0xff]
    %v1106 = vld [vmem:[%s1 + $0x90] sm:$0xff]
    %v1107 = vld [vmem:[%s1 + $0x98] sm:$0xff]
    %v1108 = vld [vmem:[%s1 + $0xa0] sm:$0xff]
    %v1109 = vld [vmem:[%s1 + $0xa8] sm:$0xff]
    %v1110 = vld [vmem:[%s1 + $0xb0] sm:$0xff]
    %v1111 = vld [vmem:[%s1 + $0xb8] sm:$0xff]
    %v1112 = vld [vmem:[%s1 + $0xc0] sm:$0xff]
    %v1113 = vld [vmem:[%s1 + $0xc8] sm:$0xff]
    %v1114 = vld [vmem:[%s1 + $0xd0] sm:$0xff]
    %v1115 = vld [vmem:[%s1 + $0xd8] sm:$0xff]
    %v1116 = vld [vmem:[%s1 + $0xe0] sm:$0xff]
    %v1117 = vld [vmem:[%s1 + $0xe8] sm:$0xff]
    %v1118 = vld [vmem:[%s1 + $0xf0] sm:$0xff]
    %v1119 = vld [vmem:[%s1 + $0xf8] sm:$0xff]
    %v1120 = vadd.f32 %v930, %v1088
    %v1121 = vadd.f32 %v935, %v1089
    %v1122 = vadd.f32 %v940, %v1090
    %v1123 = vadd.f32 %v945, %v1091
    %v1124 = vadd.f32 %v950, %v1092
    %v1125 = vadd.f32 %v955, %v1093
    %v1126 = vadd.f32 %v960, %v1094
    %v1127 = vadd.f32 %v965, %v1095
    %v1128 = vadd.f32 %v970, %v1096
    %v1129 = vadd.f32 %v975, %v1097
    %v1130 = vadd.f32 %v980, %v1098
    %v1131 = vadd.f32 %v985, %v1099
    %v1132 = vadd.f32 %v990, %v1100
    %v1133 = vadd.f32 %v995, %v1101
    %v1134 = vadd.f32 %v1000, %v1102
    %v1135 = vadd.f32 %v1005, %v1103
    %v1136 = vadd.f32 %v1010, %v1104
    %v1137 = vadd.f32 %v1015, %v1105
    %v1138 = vadd.f32 %v1020, %v1106
    %v1139 = vadd.f32 %v1025, %v1107
    %v1140 = vadd.f32 %v1030, %v1108
    %v1141 = vadd.f32 %v1035, %v1109
    %v1142 = vadd.f32 %v1040, %v1110
    %v1143 = vadd.f32 %v1045, %v1111
    %v1144 = vadd.f32 %v1050, %v1112
    %v1145 = vadd.f32 %v1055, %v1113
    %v1146 = vadd.f32 %v1060, %v1114
    %v1147 = vadd.f32 %v1065, %v1115
    %v1148 = vadd.f32 %v1070, %v1116
    %v1149 = vadd.f32 %v1075, %v1117
    %v1150 = vadd.f32 %v1080, %v1118
    %v1151 = vadd.f32 %v1085, %v1119
    %1152 = vmax.xlane.f32.xlu0 %v1120
    %v1153 = vpop.xlane.xlu0 %1152
    %1154 = vmax.xlane.f32.xlu0 %v1121
    %v1155 = vpop.xlane.xlu0 %1154
    %1156 = vmax.xlane.f32.xlu0 %v1122
    %v1157 = vpop.xlane.xlu0 %1156
    %1158 = vmax.xlane.f32.xlu0 %v1123
    %v1159 = vpop.xlane.xlu0 %1158
    %1160 = vmax.xlane.f32.xlu0 %v1124
    %v1161 = vpop.xlane.xlu0 %1160
    %1162 = vmax.xlane.f32.xlu0 %v1125
    %v1163 = vpop.xlane.xlu0 %1162
    %1164 = vmax.xlane.f32.xlu0 %v1126
    %v1165 = vpop.xlane.xlu0 %1164
    %1166 = vmax.xlane.f32.xlu0 %v1127
    %v1167 = vpop.xlane.xlu0 %1166
    %1168 = vmax.xlane.f32.xlu0 %v1128
    %v1169 = vpop.xlane.xlu0 %1168
    %1170 = vmax.xlane.f32.xlu0 %v1129
    %v1171 = vpop.xlane.xlu0 %1170
    %1172 = vmax.xlane.f32.xlu0 %v1130
    %v1173 = vpop.xlane.xlu0 %1172
    %1174 = vmax.xlane.f32.xlu0 %v1131
    %v1175 = vpop.xlane.xlu0 %1174
    %1176 = vmax.xlane.f32.xlu0 %v1132
    %v1177 = vpop.xlane.xlu0 %1176
    %1178 = vmax.xlane.f32.xlu0 %v1133
    %v1179 = vpop.xlane.xlu0 %1178
    %1180 = vmax.xlane.f32.xlu0 %v1134
    %v1181 = vpop.xlane.xlu0 %1180
    %1182 = vmax.xlane.f32.xlu0 %v1135
    %v1183 = vpop.xlane.xlu0 %1182
    %1184 = vmax.xlane.f32.xlu0 %v1136
    %v1185 = vpop.xlane.xlu0 %1184
    %1186 = vmax.xlane.f32.xlu0 %v1137
    %v1187 = vpop.xlane.xlu0 %1186
    %1188 = vmax.xlane.f32.xlu0 %v1138
    %v1189 = vpop.xlane.xlu0 %1188
    %1190 = vmax.xlane.f32.xlu0 %v1139
    %v1191 = vpop.xlane.xlu0 %1190
    %1192 = vmax.xlane.f32.xlu0 %v1140
    %v1193 = vpop.xlane.xlu0 %1192
    %1194 = vmax.xlane.f32.xlu0 %v1141
    %v1195 = vpop.xlane.xlu0 %1194
    %1196 = vmax.xlane.f32.xlu0 %v1142
    %v1197 = vpop.xlane.xlu0 %1196
    %1198 = vmax.xlane.f32.xlu0 %v1143
    %v1199 = vpop.xlane.xlu0 %1198
    %1200 = vmax.xlane.f32.xlu0 %v1144
    %v1201 = vpop.xlane.xlu0 %1200
    %1202 = vmax.xlane.f32.xlu0 %v1145
    %v1203 = vpop.xlane.xlu0 %1202
    %1204 = vmax.xlane.f32.xlu0 %v1146
    %v1205 = vpop.xlane.xlu0 %1204
    %1206 = vmax.xlane.f32.xlu0 %v1147
    %v1207 = vpop.xlane.xlu0 %1206
    %1208 = vmax.xlane.f32.xlu0 %v1148
    %v1209 = vpop.xlane.xlu0 %1208
    %1210 = vmax.xlane.f32.xlu0 %v1149
    %v1211 = vpop.xlane.xlu0 %1210
    %1212 = vmax.xlane.f32.xlu0 %v1150
    %v1213 = vpop.xlane.xlu0 %1212
    %1214 = vmax.xlane.f32.xlu0 %v1151
    %v1215 = vpop.xlane.xlu0 %1214
    %v1216 = vsub.f32 %v1120, %v1153
    %v1217 = vsub.f32 %v1121, %v1155
    %v1218 = vsub.f32 %v1122, %v1157
    %v1219 = vsub.f32 %v1123, %v1159
    %v1220 = vsub.f32 %v1124, %v1161
    %v1221 = vsub.f32 %v1125, %v1163
    %v1222 = vsub.f32 %v1126, %v1165
    %v1223 = vsub.f32 %v1127, %v1167
    %v1224 = vsub.f32 %v1128, %v1169
    %v1225 = vsub.f32 %v1129, %v1171
    %v1226 = vsub.f32 %v1130, %v1173
    %v1227 = vsub.f32 %v1131, %v1175
    %v1228 = vsub.f32 %v1132, %v1177
    %v1229 = vsub.f32 %v1133, %v1179
    %v1230 = vsub.f32 %v1134, %v1181
    %v1231 = vsub.f32 %v1135, %v1183
    %v1232 = vsub.f32 %v1136, %v1185
    %v1233 = vsub.f32 %v1137, %v1187
    %v1234 = vsub.f32 %v1138, %v1189
    %v1235 = vsub.f32 %v1139, %v1191
    %v1236 = vsub.f32 %v1140, %v1193
    %v1237 = vsub.f32 %v1141, %v1195
    %v1238 = vsub.f32 %v1142, %v1197
    %v1239 = vsub.f32 %v1143, %v1199
    %v1240 = vsub.f32 %v1144, %v1201
    %v1241 = vsub.f32 %v1145, %v1203
    %v1242 = vsub.f32 %v1146, %v1205
    %v1243 = vsub.f32 %v1147, %v1207
    %v1244 = vsub.f32 %v1148, %v1209
    %v1245 = vsub.f32 %v1149, %v1211
    %v1246 = vsub.f32 %v1150, %v1213
    %v1247 = vsub.f32 %v1151, %v1215
    %v1248 = vmul.f32 %v1216, 1.442695
    %v1249 = vpow.pop %v1248
    %v1250 = vmul.f32 %v1217, 1.442695
    %v1251 = vpow.pop %v1250
    %v1252 = vmul.f32 %v1218, 1.442695
    %v1253 = vpow.pop %v1252
    %v1254 = vmul.f32 %v1219, 1.442695
    %v1255 = vpow.pop %v1254
    %v1256 = vmul.f32 %v1220, 1.442695
    %v1257 = vpow.pop %v1256
    %v1258 = vmul.f32 %v1221, 1.442695
    %v1259 = vpow.pop %v1258
    %v1260 = vmul.f32 %v1222, 1.442695
    %v1261 = vpow.pop %v1260
    %v1262 = vmul.f32 %v1223, 1.442695
    %v1263 = vpow.pop %v1262
    %v1264 = vmul.f32 %v1224, 1.442695
    %v1265 = vpow.pop %v1264
    %v1266 = vmul.f32 %v1225, 1.442695
    %v1267 = vpow.pop %v1266
    %v1268 = vmul.f32 %v1226, 1.442695
    %v1269 = vpow.pop %v1268
    %v1270 = vmul.f32 %v1227, 1.442695
    %v1271 = vpow.pop %v1270
    %v1272 = vmul.f32 %v1228, 1.442695
    %v1273 = vpow.pop %v1272
    %v1274 = vmul.f32 %v1229, 1.442695
    %v1275 = vpow.pop %v1274
    %v1276 = vmul.f32 %v1230, 1.442695
    %v1277 = vpow.pop %v1276
    %v1278 = vmul.f32 %v1231, 1.442695
    %v1279 = vpow.pop %v1278
    %v1280 = vmul.f32 %v1232, 1.442695
    %v1281 = vpow.pop %v1280
    %v1282 = vmul.f32 %v1233, 1.442695
    %v1283 = vpow.pop %v1282
    %v1284 = vmul.f32 %v1234, 1.442695
    %v1285 = vpow.pop %v1284
    %v1286 = vmul.f32 %v1235, 1.442695
    %v1287 = vpow.pop %v1286
    %v1288 = vmul.f32 %v1236, 1.442695
    %v1289 = vpow.pop %v1288
    %v1290 = vmul.f32 %v1237, 1.442695
    %v1291 = vpow.pop %v1290
    %v1292 = vmul.f32 %v1238, 1.442695
    %v1293 = vpow.pop %v1292
    %v1294 = vmul.f32 %v1239, 1.442695
    %v1295 = vpow.pop %v1294
    %v1296 = vmul.f32 %v1240, 1.442695
    %v1297 = vpow.pop %v1296
    %v1298 = vmul.f32 %v1241, 1.442695
    %v1299 = vpow.pop %v1298
    %v1300 = vmul.f32 %v1242, 1.442695
    %v1301 = vpow.pop %v1300
    %v1302 = vmul.f32 %v1243, 1.442695
    %v1303 = vpow.pop %v1302
    %v1304 = vmul.f32 %v1244, 1.442695
    %v1305 = vpow.pop %v1304
    %v1306 = vmul.f32 %v1245, 1.442695
    %v1307 = vpow.pop %v1306
    %v1308 = vmul.f32 %v1246, 1.442695
    %v1309 = vpow.pop %v1308
    %v1310 = vmul.f32 %v1247, 1.442695
    %v1311 = vpow.pop %v1310
    %1312 = vadd.xlane.f32.xlu0 %v1249
    %v1313 = vpop.xlane.xlu0 %1312
    %1314 = vadd.xlane.f32.xlu0 %v1251
    %v1315 = vpop.xlane.xlu0 %1314
    %1316 = vadd.xlane.f32.xlu0 %v1253
    %v1317 = vpop.xlane.xlu0 %1316
    %1318 = vadd.xlane.f32.xlu0 %v1255
    %v1319 = vpop.xlane.xlu0 %1318
    %1320 = vadd.xlane.f32.xlu0 %v1257
    %v1321 = vpop.xlane.xlu0 %1320
    %1322 = vadd.xlane.f32.xlu0 %v1259
    %v1323 = vpop.xlane.xlu0 %1322
    %1324 = vadd.xlane.f32.xlu0 %v1261
    %v1325 = vpop.xlane.xlu0 %1324
    %1326 = vadd.xlane.f32.xlu0 %v1263
    %v1327 = vpop.xlane.xlu0 %1326
    %1328 = vadd.xlane.f32.xlu0 %v1265
    %v1329 = vpop.xlane.xlu0 %1328
    %1330 = vadd.xlane.f32.xlu0 %v1267
    %v1331 = vpop.xlane.xlu0 %1330
    %1332 = vadd.xlane.f32.xlu0 %v1269
    %v1333 = vpop.xlane.xlu0 %1332
    %1334 = vadd.xlane.f32.xlu0 %v1271
    %v1335 = vpop.xlane.xlu0 %1334
    %1336 = vadd.xlane.f32.xlu0 %v1273
    %v1337 = vpop.xlane.xlu0 %1336
    %1338 = vadd.xlane.f32.xlu0 %v1275
    %v1339 = vpop.xlane.xlu0 %1338
    %1340 = vadd.xlane.f32.xlu0 %v1277
    %v1341 = vpop.xlane.xlu0 %1340
    %1342 = vadd.xlane.f32.xlu0 %v1279
    %v1343 = vpop.xlane.xlu0 %1342
    %1344 = vadd.xlane.f32.xlu0 %v1281
    %v1345 = vpop.xlane.xlu0 %1344
    %1346 = vadd.xlane.f32.xlu0 %v1283
    %v1347 = vpop.xlane.xlu0 %1346
    %1348 = vadd.xlane.f32.xlu0 %v1285
    %v1349 = vpop.xlane.xlu0 %1348
    %1350 = vadd.xlane.f32.xlu0 %v1287
    %v1351 = vpop.xlane.xlu0 %1350
    %1352 = vadd.xlane.f32.xlu0 %v1289
    %v1353 = vpop.xlane.xlu0 %1352
    %1354 = vadd.xlane.f32.xlu0 %v1291
    %v1355 = vpop.xlane.xlu0 %1354
    %1356 = vadd.xlane.f32.xlu0 %v1293
    %v1357 = vpop.xlane.xlu0 %1356
    %1358 = vadd.xlane.f32.xlu0 %v1295
    %v1359 = vpop.xlane.xlu0 %1358
    %1360 = vadd.xlane.f32.xlu0 %v1297
    %v1361 = vpop.xlane.xlu0 %1360
    %1362 = vadd.xlane.f32.xlu0 %v1299
    %v1363 = vpop.xlane.xlu0 %1362
    %1364 = vadd.xlane.f32.xlu0 %v1301
    %v1365 = vpop.xlane.xlu0 %1364
    %1366 = vadd.xlane.f32.xlu0 %v1303
    %v1367 = vpop.xlane.xlu0 %1366
    %1368 = vadd.xlane.f32.xlu0 %v1305
    %v1369 = vpop.xlane.xlu0 %1368
    %1370 = vadd.xlane.f32.xlu0 %v1307
    %v1371 = vpop.xlane.xlu0 %1370
    %1372 = vadd.xlane.f32.xlu0 %v1309
    %v1373 = vpop.xlane.xlu0 %1372
    %1374 = vadd.xlane.f32.xlu0 %v1311
    %v1375 = vpop.xlane.xlu0 %1374
    %v1376 = vrcp.pop %v1313
    %v1377 = vmul.f32 10.0, %v1376
    %v1378 = vrcp.pop %v1315
    %v1379 = vmul.f32 10.0, %v1378
    %v1380 = vrcp.pop %v1317
    %v1381 = vmul.f32 10.0, %v1380
    %v1382 = vrcp.pop %v1319
    %v1383 = vmul.f32 10.0, %v1382
    %v1384 = vrcp.pop %v1321
    %v1385 = vmul.f32 10.0, %v1384
    %v1386 = vrcp.pop %v1323
    %v1387 = vmul.f32 10.0, %v1386
    %v1388 = vrcp.pop %v1325
    %v1389 = vmul.f32 10.0, %v1388
    %v1390 = vrcp.pop %v1327
    %v1391 = vmul.f32 10.0, %v1390
    %v1392 = vrcp.pop %v1329
    %v1393 = vmul.f32 10.0, %v1392
    %v1394 = vrcp.pop %v1331
    %v1395 = vmul.f32 10.0, %v1394
    %v1396 = vrcp.pop %v1333
    %v1397 = vmul.f32 10.0, %v1396
    %v1398 = vrcp.pop %v1335
    %v1399 = vmul.f32 10.0, %v1398
    %v1400 = vrcp.pop %v1337
    %v1401 = vmul.f32 10.0, %v1400
    %v1402 = vrcp.pop %v1339
    %v1403 = vmul.f32 10.0, %v1402
    %v1404 = vrcp.pop %v1341
    %v1405 = vmul.f32 10.0, %v1404
    %v1406 = vrcp.pop %v1343
    %v1407 = vmul.f32 10.0, %v1406
    %v1408 = vrcp.pop %v1345
    %v1409 = vmul.f32 10.0, %v1408
    %v1410 = vrcp.pop %v1347
    %v1411 = vmul.f32 10.0, %v1410
    %v1412 = vrcp.pop %v1349
    %v1413 = vmul.f32 10.0, %v1412
    %v1414 = vrcp.pop %v1351
    %v1415 = vmul.f32 10.0, %v1414
    %v1416 = vrcp.pop %v1353
    %v1417 = vmul.f32 10.0, %v1416
    %v1418 = vrcp.pop %v1355
    %v1419 = vmul.f32 10.0, %v1418
    %v1420 = vrcp.pop %v1357
    %v1421 = vmul.f32 10.0, %v1420
    %v1422 = vrcp.pop %v1359
    %v1423 = vmul.f32 10.0, %v1422
    %v1424 = vrcp.pop %v1361
    %v1425 = vmul.f32 10.0, %v1424
    %v1426 = vrcp.pop %v1363
    %v1427 = vmul.f32 10.0, %v1426
    %v1428 = vrcp.pop %v1365
    %v1429 = vmul.f32 10.0, %v1428
    %v1430 = vrcp.pop %v1367
    %v1431 = vmul.f32 10.0, %v1430
    %v1432 = vrcp.pop %v1369
    %v1433 = vmul.f32 10.0, %v1432
    %v1434 = vrcp.pop %v1371
    %v1435 = vmul.f32 10.0, %v1434
    %v1436 = vrcp.pop %v1373
    %v1437 = vmul.f32 10.0, %v1436
    %v1438 = vrcp.pop %v1375
    %v1439 = vmul.f32 10.0, %v1438
    %v1440 = vmul.f32 %v1249, %v1377
    %v1441 = vmul.f32 %v1251, %v1379
    %v1442 = vmul.f32 %v1253, %v1381
    %v1443 = vmul.f32 %v1255, %v1383
    %v1444 = vmul.f32 %v1257, %v1385
    %v1445 = vmul.f32 %v1259, %v1387
    %v1446 = vmul.f32 %v1261, %v1389
    %v1447 = vmul.f32 %v1263, %v1391
    %v1448 = vmul.f32 %v1265, %v1393
    %v1449 = vmul.f32 %v1267, %v1395
    %v1450 = vmul.f32 %v1269, %v1397
    %v1451 = vmul.f32 %v1271, %v1399
    %v1452 = vmul.f32 %v1273, %v1401
    %v1453 = vmul.f32 %v1275, %v1403
    %v1454 = vmul.f32 %v1277, %v1405
    %v1455 = vmul.f32 %v1279, %v1407
    %v1456 = vmul.f32 %v1281, %v1409
    %v1457 = vmul.f32 %v1283, %v1411
    %v1458 = vmul.f32 %v1285, %v1413
    %v1459 = vmul.f32 %v1287, %v1415
    %v1460 = vmul.f32 %v1289, %v1417
    %v1461 = vmul.f32 %v1291, %v1419
    %v1462 = vmul.f32 %v1293, %v1421
    %v1463 = vmul.f32 %v1295, %v1423
    %v1464 = vmul.f32 %v1297, %v1425
    %v1465 = vmul.f32 %v1299, %v1427
    %v1466 = vmul.f32 %v1301, %v1429
    %v1467 = vmul.f32 %v1303, %v1431
    %v1468 = vmul.f32 %v1305, %v1433
    %v1469 = vmul.f32 %v1307, %v1435
    %v1470 = vmul.f32 %v1309, %v1437
    %v1471 = vmul.f32 %v1311, %v1439
    %v1472 = vpack.c.bf16 %v1441, %v1440
    %v1473 = vpack.c.bf16 %v1443, %v1442
    %v1474 = vpack.c.bf16 %v1445, %v1444
    %v1475 = vpack.c.bf16 %v1447, %v1446
    %v1476 = vpack.c.bf16 %v1449, %v1448
    %v1477 = vpack.c.bf16 %v1451, %v1450
    %v1478 = vpack.c.bf16 %v1453, %v1452
    %v1479 = vpack.c.bf16 %v1455, %v1454
    %v1480 = vpack.c.bf16 %v1457, %v1456
    %v1481 = vpack.c.bf16 %v1459, %v1458
    %v1482 = vpack.c.bf16 %v1461, %v1460
    %v1483 = vpack.c.bf16 %v1463, %v1462
    %v1484 = vpack.c.bf16 %v1465, %v1464
    %v1485 = vpack.c.bf16 %v1467, %v1466
    %v1486 = vpack.c.bf16 %v1469, %v1468
    %v1487 = vpack.c.bf16 %v1471, %v1470
    %v1488 = vld [vmem:[#allocation5] sm:$0xf]
    %v1489 = vld [vmem:[#allocation5 + $0x4] sm:$0xf]
    %v1490 = vld [vmem:[#allocation5 + $0x8] sm:$0xf]
    %v1491 = vld [vmem:[#allocation5 + $0xc] sm:$0xf]
    %v1492 = vld [vmem:[#allocation5 + $0x10] sm:$0xf]
    %v1493 = vld [vmem:[#allocation5 + $0x14] sm:$0xf]
    %v1494 = vld [vmem:[#allocation5 + $0x18] sm:$0xf]
    %v1495 = vld [vmem:[#allocation5 + $0x1c] sm:$0xf]
    %v1496 = vld [vmem:[#allocation5 + $0x20] sm:$0xf]
    %v1497 = vld [vmem:[#allocation5 + $0x24] sm:$0xf]
    %v1498 = vld [vmem:[#allocation5 + $0x28] sm:$0xf]
    %v1499 = vld [vmem:[#allocation5 + $0x2c] sm:$0xf]
    %v1500 = vld [vmem:[#allocation5 + $0x30] sm:$0xf]
    %v1501 = vld [vmem:[#allocation5 + $0x34] sm:$0xf]
    %v1502 = vld [vmem:[#allocation5 + $0x38] sm:$0xf]
    %v1503 = vld [vmem:[#allocation5 + $0x3c] sm:$0xf]
    %v1504 = vld [vmem:[%s9] sm:$0x1]
    %v1506 = vlaneseq
    %v1507 = vshrl.u32 %v1506, 7
    %v1508 = vsub.s32 0, %v1507
    %v1509 = vrot.slane %v1504, %v1508
    %v1527 = vunpack.c.l.b16 %v1488
    %v1528 = vunpack.c.l.b16 %v1489
    %v1529 = vunpack.c.l.b16 %v1490
    %v1530 = vunpack.c.l.b16 %v1491
    %v1531 = vunpack.c.l.b16 %v1492
    %v1532 = vunpack.c.l.b16 %v1493
    %v1533 = vunpack.c.l.b16 %v1494
    %v1534 = vunpack.c.l.b16 %v1495
    %v1535 = vunpack.c.l.b16 %v1496
    %v1536 = vunpack.c.l.b16 %v1497
    %v1537 = vunpack.c.l.b16 %v1498
    %v1538 = vunpack.c.l.b16 %v1499
    %v1539 = vunpack.c.l.b16 %v1500
    %v1540 = vunpack.c.l.b16 %v1501
    %v1541 = vunpack.c.l.b16 %v1502
    %v1542 = vunpack.c.l.b16 %v1503
    %v1543 = vpack.c.b16 %v1528, %v1527
    %v1544 = vpack.c.b16 %v1530, %v1529
    %v1545 = vpack.c.b16 %v1532, %v1531
    %v1546 = vpack.c.b16 %v1534, %v1533
    %v1547 = vpack.c.b16 %v1536, %v1535
    %v1548 = vpack.c.b16 %v1538, %v1537
    %v1549 = vpack.c.b16 %v1540, %v1539
    %v1550 = vpack.c.b16 %v1542, %v1541
    %1559 = vmatprep.subr.bf16.mxu0 0
    %1560 = vmatpush1.bf16.msra.mxu0 %v1550
    %1561 = vmatprep.subr.bf16.mxu0 0
    %1562 = vmatpush1.bf16.msra.mxu0 %v1549
    %1563 = vmatprep.subr.bf16.mxu0 0
    %1564 = vmatpush1.bf16.msra.mxu0 %v1548
    %1565 = vmatprep.subr.bf16.mxu0 0
    %1566 = vmatpush1.bf16.msra.mxu0 %v1547
    %1567 = vmatprep.subr.bf16.mxu0 0
    %1568 = vmatpush1.bf16.msra.mxu0 %v1546
    %1569 = vmatprep.subr.bf16.mxu0 0
    %1570 = vmatpush1.bf16.msra.mxu0 %v1545
    %1571 = vmatprep.subr.bf16.mxu0 0
    %1572 = vmatpush1.bf16.msra.mxu0 %v1544
    %1573 = vmatprep.subr.bf16.mxu0 0
    %1574 = vmatpush1.bf16.msra.mxu0 %v1543
    %1575 = vmatprep.subr.bf16.mxu0 0
    %1576 = vmatpush2.bf16.msra.mxu0 0
    %1577 = vmatprep.subr.bf16.mxu0 0
    %1578 = vmatpush2.bf16.msra.mxu0 0
    %1579 = vmatprep.subr.bf16.mxu0 0
    %1580 = vmatpush2.bf16.msra.mxu0 0
    %1581 = vmatprep.subr.bf16.mxu0 0
    %1582 = vmatpush2.bf16.msra.mxu0 0
    %1583 = vmatprep.subr.bf16.mxu0 0
    %1584 = vmatpush2.bf16.msra.mxu0 0
    %1585 = vmatprep.subr.bf16.mxu0 0
    %1586 = vmatpush2.bf16.msra.mxu0 0
    %1587 = vmatprep.subr.bf16.mxu0 0
    %1588 = vmatpush2.bf16.msra.mxu0 0
    %1589 = vmatprep.subr.bf16.mxu0 0
    %1590 = vmatpush2.bf16.msra.mxu0 0
    %1591 = vmatprep.mubr.bf16.mxu0 0
    %1592 = vmatmul.mubr.bf16.gmra.mxu0 %v1472
    %v1593 = vpop.f32.mrf.mxu0
    %v1594 = vadd.f32 %v1509, %v1593
    %v1595 = vpop.f32.mrf.mxu0
    %v1596 = vpop.f32.mrf.mxu0
    %v1597 = vadd.f32 %v1509, %v1596
    %v1598 = vpop.f32.mrf.mxu0
    %1599 = vmatprep.mubr.bf16.mxu0 0
    %1600 = vmatmul.mubr.bf16.gmra.mxu0 %v1473
    %v1601 = vpop.f32.mrf.mxu0
    %v1602 = vadd.f32 %v1509, %v1601
    %v1603 = vpop.f32.mrf.mxu0
    %v1604 = vpop.f32.mrf.mxu0
    %v1605 = vadd.f32 %v1509, %v1604
    %v1606 = vpop.f32.mrf.mxu0
    %1607 = vmatprep.mubr.bf16.mxu0 0
    %1608 = vmatmul.mubr.bf16.gmra.mxu0 %v1474
    %v1609 = vpop.f32.mrf.mxu0
    %v1610 = vadd.f32 %v1509, %v1609
    %v1611 = vpop.f32.mrf.mxu0
    %v1612 = vpop.f32.mrf.mxu0
    %v1613 = vadd.f32 %v1509, %v1612
    %v1614 = vpop.f32.mrf.mxu0
    %1615 = vmatprep.mubr.bf16.mxu0 0
    %1616 = vmatmul.mubr.bf16.gmra.mxu0 %v1475
    %v1617 = vpop.f32.mrf.mxu0
    %v1618 = vadd.f32 %v1509, %v1617
    %v1619 = vpop.f32.mrf.mxu0
    %v1620 = vpop.f32.mrf.mxu0
    %v1621 = vadd.f32 %v1509, %v1620
    %v1622 = vpop.f32.mrf.mxu0
    %1623 = vmatprep.mubr.bf16.mxu0 0
    %1624 = vmatmul.mubr.bf16.gmra.mxu0 %v1476
    %v1625 = vpop.f32.mrf.mxu0
    %v1626 = vadd.f32 %v1509, %v1625
    %v1627 = vpop.f32.mrf.mxu0
    %v1628 = vpop.f32.mrf.mxu0
    %v1629 = vadd.f32 %v1509, %v1628
    %v1630 = vpop.f32.mrf.mxu0
    %1631 = vmatprep.mubr.bf16.mxu0 0
    %1632 = vmatmul.mubr.bf16.gmra.mxu0 %v1477
    %v1633 = vpop.f32.mrf.mxu0
    %v1634 = vadd.f32 %v1509, %v1633
    %v1635 = vpop.f32.mrf.mxu0
    %v1636 = vpop.f32.mrf.mxu0
    %v1637 = vadd.f32 %v1509, %v1636
    %v1638 = vpop.f32.mrf.mxu0
    %1639 = vmatprep.mubr.bf16.mxu0 0
    %1640 = vmatmul.mubr.bf16.gmra.mxu0 %v1478
    %v1641 = vpop.f32.mrf.mxu0
    %v1642 = vadd.f32 %v1509, %v1641
    %v1643 = vpop.f32.mrf.mxu0
    %v1644 = vpop.f32.mrf.mxu0
    %v1645 = vadd.f32 %v1509, %v1644
    %v1646 = vpop.f32.mrf.mxu0
    %1647 = vmatprep.mubr.bf16.mxu0 0
    %1648 = vmatmul.mubr.bf16.gmra.mxu0 %v1479
    %v1649 = vpop.f32.mrf.mxu0
    %v1650 = vadd.f32 %v1509, %v1649
    %v1651 = vpop.f32.mrf.mxu0
    %v1652 = vpop.f32.mrf.mxu0
    %v1653 = vadd.f32 %v1509, %v1652
    %v1654 = vpop.f32.mrf.mxu0
    %1655 = vmatprep.mubr.bf16.mxu0 0
    %1656 = vmatmul.mubr.bf16.gmra.mxu0 %v1480
    %v1657 = vpop.f32.mrf.mxu0
    %v1658 = vadd.f32 %v1509, %v1657
    %v1659 = vpop.f32.mrf.mxu0
    %v1660 = vpop.f32.mrf.mxu0
    %v1661 = vadd.f32 %v1509, %v1660
    %v1662 = vpop.f32.mrf.mxu0
    %1663 = vmatprep.mubr.bf16.mxu0 0
    %1664 = vmatmul.mubr.bf16.gmra.mxu0 %v1481
    %v1665 = vpop.f32.mrf.mxu0
    %v1666 = vadd.f32 %v1509, %v1665
    %v1667 = vpop.f32.mrf.mxu0
    %v1668 = vpop.f32.mrf.mxu0
    %v1669 = vadd.f32 %v1509, %v1668
    %v1670 = vpop.f32.mrf.mxu0
    %1671 = vmatprep.mubr.bf16.mxu0 0
    %1672 = vmatmul.mubr.bf16.gmra.mxu0 %v1482
    %v1673 = vpop.f32.mrf.mxu0
    %v1674 = vadd.f32 %v1509, %v1673
    %v1675 = vpop.f32.mrf.mxu0
    %v1676 = vpop.f32.mrf.mxu0
    %v1677 = vadd.f32 %v1509, %v1676
    %v1678 = vpop.f32.mrf.mxu0
    %1679 = vmatprep.mubr.bf16.mxu0 0
    %1680 = vmatmul.mubr.bf16.gmra.mxu0 %v1483
    %v1681 = vpop.f32.mrf.mxu0
    %v1682 = vadd.f32 %v1509, %v1681
    %v1683 = vpop.f32.mrf.mxu0
    %v1684 = vpop.f32.mrf.mxu0
    %v1685 = vadd.f32 %v1509, %v1684
    %v1686 = vpop.f32.mrf.mxu0
    %1687 = vmatprep.mubr.bf16.mxu0 0
    %1688 = vmatmul.mubr.bf16.gmra.mxu0 %v1484
    %v1689 = vpop.f32.mrf.mxu0
    %v1690 = vadd.f32 %v1509, %v1689
    %v1691 = vpop.f32.mrf.mxu0
    %v1692 = vpop.f32.mrf.mxu0
    %v1693 = vadd.f32 %v1509, %v1692
    %v1694 = vpop.f32.mrf.mxu0
    %1695 = vmatprep.mubr.bf16.mxu0 0
    %1696 = vmatmul.mubr.bf16.gmra.mxu0 %v1485
    %v1697 = vpop.f32.mrf.mxu0
    %v1698 = vadd.f32 %v1509, %v1697
    %v1699 = vpop.f32.mrf.mxu0
    %v1700 = vpop.f32.mrf.mxu0
    %v1701 = vadd.f32 %v1509, %v1700
    %v1702 = vpop.f32.mrf.mxu0
    %1703 = vmatprep.mubr.bf16.mxu0 0
    %1704 = vmatmul.mubr.bf16.gmra.mxu0 %v1486
    %v1705 = vpop.f32.mrf.mxu0
    %v1706 = vadd.f32 %v1509, %v1705
    %v1707 = vpop.f32.mrf.mxu0
    %v1708 = vpop.f32.mrf.mxu0
    %v1709 = vadd.f32 %v1509, %v1708
    %v1710 = vpop.f32.mrf.mxu0
    %1711 = vmatprep.mubr.bf16.mxu0 0
    %1712 = vmatmul.mubr.bf16.gmra.mxu0 %v1487
    %v1713 = vpop.f32.mrf.mxu0
    %v1714 = vadd.f32 %v1509, %v1713
    %v1715 = vpop.f32.mrf.mxu0
    %v1716 = vpop.f32.mrf.mxu0
    %v1717 = vadd.f32 %v1509, %v1716
    %v1718 = vpop.f32.mrf.mxu0
    %1719 = vdwg.mxu0
    %v1720 = vtanh.pop %v1594
    %v1721 = vtanh.pop %v1597
    %v1722 = vtanh.pop %v1602
    %v1723 = vtanh.pop %v1605
    %v1724 = vtanh.pop %v1610
    %v1725 = vtanh.pop %v1613
    %v1726 = vtanh.pop %v1618
    %v1727 = vtanh.pop %v1621
    %v1728 = vtanh.pop %v1626
    %v1729 = vtanh.pop %v1629
    %v1730 = vtanh.pop %v1634
    %v1731 = vtanh.pop %v1637
    %v1732 = vtanh.pop %v1642
    %v1733 = vtanh.pop %v1645
    %v1734 = vtanh.pop %v1650
    %v1735 = vtanh.pop %v1653
    %v1736 = vtanh.pop %v1658
    %v1737 = vtanh.pop %v1661
    %v1738 = vtanh.pop %v1666
    %v1739 = vtanh.pop %v1669
    %v1740 = vtanh.pop %v1674
    %v1741 = vtanh.pop %v1677
    %v1742 = vtanh.pop %v1682
    %v1743 = vtanh.pop %v1685
    %v1744 = vtanh.pop %v1690
    %v1745 = vtanh.pop %v1693
    %v1746 = vtanh.pop %v1698
    %v1747 = vtanh.pop %v1701
    %v1748 = vtanh.pop %v1706
    %v1749 = vtanh.pop %v1709
    %v1750 = vtanh.pop %v1714
    %v1751 = vtanh.pop %v1717
    %v1752 = vpack.c.bf16 %v1721, %v1720
    %v1753 = vpack.c.bf16 %v1723, %v1722
    %v1754 = vpack.c.bf16 %v1725, %v1724
    %v1755 = vpack.c.bf16 %v1727, %v1726
    %v1756 = vpack.c.bf16 %v1729, %v1728
    %v1757 = vpack.c.bf16 %v1731, %v1730
    %v1758 = vpack.c.bf16 %v1733, %v1732
    %v1759 = vpack.c.bf16 %v1735, %v1734
    %v1760 = vpack.c.bf16 %v1737, %v1736
    %v1761 = vpack.c.bf16 %v1739, %v1738
    %v1762 = vpack.c.bf16 %v1741, %v1740
    %v1763 = vpack.c.bf16 %v1743, %v1742
    %v1764 = vpack.c.bf16 %v1745, %v1744
    %v1765 = vpack.c.bf16 %v1747, %v1746
    %v1766 = vpack.c.bf16 %v1749, %v1748
    %v1767 = vpack.c.bf16 %v1751, %v1750
    %v1768 = vld [vmem:[#allocation7] sm:$0xff]
    %v1769 = vld [vmem:[#allocation7 + $0x8] sm:$0xff]
    %v1770 = vld [vmem:[#allocation7 + $0x10] sm:$0xff]
    %v1771 = vld [vmem:[#allocation7 + $0x18] sm:$0xff]
    %v1772 = vld [vmem:[#allocation7 + $0x20] sm:$0xff]
    %v1773 = vld [vmem:[#allocation7 + $0x28] sm:$0xff]
    %v1774 = vld [vmem:[#allocation7 + $0x30] sm:$0xff]
    %v1775 = vld [vmem:[#allocation7 + $0x38] sm:$0xff]
    %v1776 = vld [vmem:[#allocation7 + $0x40] sm:$0xff]
    %v1777 = vld [vmem:[#allocation7 + $0x48] sm:$0xff]
    %v1778 = vld [vmem:[#allocation7 + $0x50] sm:$0xff]
    %v1779 = vld [vmem:[#allocation7 + $0x58] sm:$0xff]
    %v1780 = vld [vmem:[#allocation7 + $0x60] sm:$0xff]
    %v1781 = vld [vmem:[#allocation7 + $0x68] sm:$0xff]
    %v1782 = vld [vmem:[#allocation7 + $0x70] sm:$0xff]
    %v1783 = vld [vmem:[#allocation7 + $0x78] sm:$0xff]
    %v1784 = vld [vmem:[%s11] sm:$0x3]
    %v1786 = vlaneseq
    %v1787 = vshrl.u32 %v1786, 7
    %v1788 = vsub.s32 0, %v1787
    %v1789 = vrot.slane %v1784, %v1788
    %v1790 = vlaneseq
    %v1791 = vshrl.u32 %v1790, 7
    %v1792 = vsub.s32 1, %v1791
    %v1793 = vrot.slane %v1784, %v1792
    %v1812 = vunpack.c.l.b16 %v1768
    %v1813 = vunpack.c.h.b16 %v1768
    %v1814 = vunpack.c.l.b16 %v1769
    %v1815 = vunpack.c.h.b16 %v1769
    %v1816 = vunpack.c.l.b16 %v1770
    %v1817 = vunpack.c.h.b16 %v1770
    %v1818 = vunpack.c.l.b16 %v1771
    %v1819 = vunpack.c.h.b16 %v1771
    %v1820 = vunpack.c.l.b16 %v1772
    %v1821 = vunpack.c.h.b16 %v1772
    %v1822 = vunpack.c.l.b16 %v1773
    %v1823 = vunpack.c.h.b16 %v1773
    %v1824 = vunpack.c.l.b16 %v1774
    %v1825 = vunpack.c.h.b16 %v1774
    %v1826 = vunpack.c.l.b16 %v1775
    %v1827 = vunpack.c.h.b16 %v1775
    %v1828 = vunpack.c.l.b16 %v1776
    %v1829 = vunpack.c.h.b16 %v1776
    %v1830 = vunpack.c.l.b16 %v1777
    %v1831 = vunpack.c.h.b16 %v1777
    %v1832 = vunpack.c.l.b16 %v1778
    %v1833 = vunpack.c.h.b16 %v1778
    %v1834 = vunpack.c.l.b16 %v1779
    %v1835 = vunpack.c.h.b16 %v1779
    %v1836 = vunpack.c.l.b16 %v1780
    %v1837 = vunpack.c.h.b16 %v1780
    %v1838 = vunpack.c.l.b16 %v1781
    %v1839 = vunpack.c.h.b16 %v1781
    %v1840 = vunpack.c.l.b16 %v1782
    %v1841 = vunpack.c.h.b16 %v1782
    %v1842 = vunpack.c.l.b16 %v1783
    %v1843 = vunpack.c.h.b16 %v1783
    %v1844 = vpack.c.b16 %v1814, %v1812
    %v1845 = vpack.c.b16 %v1815, %v1813
    %v1846 = vpack.c.b16 %v1818, %v1816
    %v1847 = vpack.c.b16 %v1819, %v1817
    %v1848 = vpack.c.b16 %v1822, %v1820
    %v1849 = vpack.c.b16 %v1823, %v1821
    %v1850 = vpack.c.b16 %v1826, %v1824
    %v1851 = vpack.c.b16 %v1827, %v1825
    %v1852 = vpack.c.b16 %v1830, %v1828
    %v1853 = vpack.c.b16 %v1831, %v1829
    %v1854 = vpack.c.b16 %v1834, %v1832
    %v1855 = vpack.c.b16 %v1835, %v1833
    %v1856 = vpack.c.b16 %v1838, %v1836
    %v1857 = vpack.c.b16 %v1839, %v1837
    %v1858 = vpack.c.b16 %v1842, %v1840
    %v1859 = vpack.c.b16 %v1843, %v1841
    %1876 = vmatprep.subr.bf16.mxu0 %v1859
    %1877 = vmatpush1.bf16.msra.mxu0 %v1858
    %1878 = vmatprep.subr.bf16.mxu0 %v1857
    %1879 = vmatpush1.bf16.msra.mxu0 %v1856
    %1880 = vmatprep.subr.bf16.mxu0 %v1855
    %1881 = vmatpush1.bf16.msra.mxu0 %v1854
    %1882 = vmatprep.subr.bf16.mxu0 %v1853
    %1883 = vmatpush1.bf16.msra.mxu0 %v1852
    %1884 = vmatprep.subr.bf16.mxu0 %v1851
    %1885 = vmatpush1.bf16.msra.mxu0 %v1850
    %1886 = vmatprep.subr.bf16.mxu0 %v1849
    %1887 = vmatpush1.bf16.msra.mxu0 %v1848
    %1888 = vmatprep.subr.bf16.mxu0 %v1847
    %1889 = vmatpush1.bf16.msra.mxu0 %v1846
    %1890 = vmatprep.subr.bf16.mxu0 %v1845
    %1891 = vmatpush1.bf16.msra.mxu0 %v1844
    %1892 = vmatprep.subr.bf16.mxu0 0
    %1893 = vmatpush2.bf16.msra.mxu0 0
    %1894 = vmatprep.subr.bf16.mxu0 0
    %1895 = vmatpush2.bf16.msra.mxu0 0
    %1896 = vmatprep.subr.bf16.mxu0 0
    %1897 = vmatpush2.bf16.msra.mxu0 0
    %1898 = vmatprep.subr.bf16.mxu0 0
    %1899 = vmatpush2.bf16.msra.mxu0 0
    %1900 = vmatprep.subr.bf16.mxu0 0
    %1901 = vmatpush2.bf16.msra.mxu0 0
    %1902 = vmatprep.subr.bf16.mxu0 0
    %1903 = vmatpush2.bf16.msra.mxu0 0
    %1904 = vmatprep.subr.bf16.mxu0 0
    %1905 = vmatpush2.bf16.msra.mxu0 0
    %1906 = vmatprep.subr.bf16.mxu0 0
    %1907 = vmatpush2.bf16.msra.mxu0 0
    %1908 = vmatprep.mubr.bf16.mxu0 0
    %1909 = vmatmul.mubr.bf16.gmra.mxu0 %v1752
    %v1910 = vpop.f32.mrf.mxu0
    %v1911 = vadd.f32 %v1789, %v1910
    %v1912 = vpop.f32.mrf.mxu0
    %v1913 = vadd.f32 %v1793, %v1912
    %v1914 = vpop.f32.mrf.mxu0
    %v1915 = vadd.f32 %v1789, %v1914
    %v1916 = vpop.f32.mrf.mxu0
    %v1917 = vadd.f32 %v1793, %v1916
    %1918 = vmatprep.mubr.bf16.mxu0 0
    %1919 = vmatmul.mubr.bf16.gmra.mxu0 %v1753
    %v1920 = vpop.f32.mrf.mxu0
    %v1921 = vadd.f32 %v1789, %v1920
    %v1922 = vpop.f32.mrf.mxu0
    %v1923 = vadd.f32 %v1793, %v1922
    %v1924 = vpop.f32.mrf.mxu0
    %v1925 = vadd.f32 %v1789, %v1924
    %v1926 = vpop.f32.mrf.mxu0
    %v1927 = vadd.f32 %v1793, %v1926
    %1928 = vmatprep.mubr.bf16.mxu0 0
    %1929 = vmatmul.mubr.bf16.gmra.mxu0 %v1754
    %v1930 = vpop.f32.mrf.mxu0
    %v1931 = vadd.f32 %v1789, %v1930
    %v1932 = vpop.f32.mrf.mxu0
    %v1933 = vadd.f32 %v1793, %v1932
    %v1934 = vpop.f32.mrf.mxu0
    %v1935 = vadd.f32 %v1789, %v1934
    %v1936 = vpop.f32.mrf.mxu0
    %v1937 = vadd.f32 %v1793, %v1936
    %1938 = vmatprep.mubr.bf16.mxu0 0
    %1939 = vmatmul.mubr.bf16.gmra.mxu0 %v1755
    %v1940 = vpop.f32.mrf.mxu0
    %v1941 = vadd.f32 %v1789, %v1940
    %v1942 = vpop.f32.mrf.mxu0
    %v1943 = vadd.f32 %v1793, %v1942
    %v1944 = vpop.f32.mrf.mxu0
    %v1945 = vadd.f32 %v1789, %v1944
    %v1946 = vpop.f32.mrf.mxu0
    %v1947 = vadd.f32 %v1793, %v1946
    %1948 = vmatprep.mubr.bf16.mxu0 0
    %1949 = vmatmul.mubr.bf16.gmra.mxu0 %v1756
    %v1950 = vpop.f32.mrf.mxu0
    %v1951 = vadd.f32 %v1789, %v1950
    %v1952 = vpop.f32.mrf.mxu0
    %v1953 = vadd.f32 %v1793, %v1952
    %v1954 = vpop.f32.mrf.mxu0
    %v1955 = vadd.f32 %v1789, %v1954
    %v1956 = vpop.f32.mrf.mxu0
    %v1957 = vadd.f32 %v1793, %v1956
    %1958 = vmatprep.mubr.bf16.mxu0 0
    %1959 = vmatmul.mubr.bf16.gmra.mxu0 %v1757
    %v1960 = vpop.f32.mrf.mxu0
    %v1961 = vadd.f32 %v1789, %v1960
    %v1962 = vpop.f32.mrf.mxu0
    %v1963 = vadd.f32 %v1793, %v1962
    %v1964 = vpop.f32.mrf.mxu0
    %v1965 = vadd.f32 %v1789, %v1964
    %v1966 = vpop.f32.mrf.mxu0
    %v1967 = vadd.f32 %v1793, %v1966
    %1968 = vmatprep.mubr.bf16.mxu0 0
    %1969 = vmatmul.mubr.bf16.gmra.mxu0 %v1758
    %v1970 = vpop.f32.mrf.mxu0
    %v1971 = vadd.f32 %v1789, %v1970
    %v1972 = vpop.f32.mrf.mxu0
    %v1973 = vadd.f32 %v1793, %v1972
    %v1974 = vpop.f32.mrf.mxu0
    %v1975 = vadd.f32 %v1789, %v1974
    %v1976 = vpop.f32.mrf.mxu0
    %v1977 = vadd.f32 %v1793, %v1976
    %1978 = vmatprep.mubr.bf16.mxu0 0
    %1979 = vmatmul.mubr.bf16.gmra.mxu0 %v1759
    %v1980 = vpop.f32.mrf.mxu0
    %v1981 = vadd.f32 %v1789, %v1980
    %v1982 = vpop.f32.mrf.mxu0
    %v1983 = vadd.f32 %v1793, %v1982
    %v1984 = vpop.f32.mrf.mxu0
    %v1985 = vadd.f32 %v1789, %v1984
    %v1986 = vpop.f32.mrf.mxu0
    %v1987 = vadd.f32 %v1793, %v1986
    %1988 = vmatprep.mubr.bf16.mxu0 0
    %1989 = vmatmul.mubr.bf16.gmra.mxu0 %v1760
    %v1990 = vpop.f32.mrf.mxu0
    %v1991 = vadd.f32 %v1789, %v1990
    %v1992 = vpop.f32.mrf.mxu0
    %v1993 = vadd.f32 %v1793, %v1992
    %v1994 = vpop.f32.mrf.mxu0
    %v1995 = vadd.f32 %v1789, %v1994
    %v1996 = vpop.f32.mrf.mxu0
    %v1997 = vadd.f32 %v1793, %v1996
    %1998 = vmatprep.mubr.bf16.mxu0 0
    %1999 = vmatmul.mubr.bf16.gmra.mxu0 %v1761
    %v2000 = vpop.f32.mrf.mxu0
    %v2001 = vadd.f32 %v1789, %v2000
    %v2002 = vpop.f32.mrf.mxu0
    %v2003 = vadd.f32 %v1793, %v2002
    %v2004 = vpop.f32.mrf.mxu0
    %v2005 = vadd.f32 %v1789, %v2004
    %v2006 = vpop.f32.mrf.mxu0
    %v2007 = vadd.f32 %v1793, %v2006
    %2008 = vmatprep.mubr.bf16.mxu0 0
    %2009 = vmatmul.mubr.bf16.gmra.mxu0 %v1762
    %v2010 = vpop.f32.mrf.mxu0
    %v2011 = vadd.f32 %v1789, %v2010
    %v2012 = vpop.f32.mrf.mxu0
    %v2013 = vadd.f32 %v1793, %v2012
    %v2014 = vpop.f32.mrf.mxu0
    %v2015 = vadd.f32 %v1789, %v2014
    %v2016 = vpop.f32.mrf.mxu0
    %v2017 = vadd.f32 %v1793, %v2016
    %2018 = vmatprep.mubr.bf16.mxu0 0
    %2019 = vmatmul.mubr.bf16.gmra.mxu0 %v1763
    %v2020 = vpop.f32.mrf.mxu0
    %v2021 = vadd.f32 %v1789, %v2020
    %v2022 = vpop.f32.mrf.mxu0
    %v2023 = vadd.f32 %v1793, %v2022
    %v2024 = vpop.f32.mrf.mxu0
    %v2025 = vadd.f32 %v1789, %v2024
    %v2026 = vpop.f32.mrf.mxu0
    %v2027 = vadd.f32 %v1793, %v2026
    %2028 = vmatprep.mubr.bf16.mxu0 0
    %2029 = vmatmul.mubr.bf16.gmra.mxu0 %v1764
    %v2030 = vpop.f32.mrf.mxu0
    %v2031 = vadd.f32 %v1789, %v2030
    %v2032 = vpop.f32.mrf.mxu0
    %v2033 = vadd.f32 %v1793, %v2032
    %v2034 = vpop.f32.mrf.mxu0
    %v2035 = vadd.f32 %v1789, %v2034
    %v2036 = vpop.f32.mrf.mxu0
    %v2037 = vadd.f32 %v1793, %v2036
    %2038 = vmatprep.mubr.bf16.mxu0 0
    %2039 = vmatmul.mubr.bf16.gmra.mxu0 %v1765
    %v2040 = vpop.f32.mrf.mxu0
    %v2041 = vadd.f32 %v1789, %v2040
    %v2042 = vpop.f32.mrf.mxu0
    %v2043 = vadd.f32 %v1793, %v2042
    %v2044 = vpop.f32.mrf.mxu0
    %v2045 = vadd.f32 %v1789, %v2044
    %v2046 = vpop.f32.mrf.mxu0
    %v2047 = vadd.f32 %v1793, %v2046
    %2048 = vmatprep.mubr.bf16.mxu0 0
    %2049 = vmatmul.mubr.bf16.gmra.mxu0 %v1766
    %v2050 = vpop.f32.mrf.mxu0
    %v2051 = vadd.f32 %v1789, %v2050
    %v2052 = vpop.f32.mrf.mxu0
    %v2053 = vadd.f32 %v1793, %v2052
    %v2054 = vpop.f32.mrf.mxu0
    %v2055 = vadd.f32 %v1789, %v2054
    %v2056 = vpop.f32.mrf.mxu0
    %v2057 = vadd.f32 %v1793, %v2056
    %2058 = vmatprep.mubr.bf16.mxu0 0
    %2059 = vmatmul.mubr.bf16.gmra.mxu0 %v1767
    %v2060 = vpop.f32.mrf.mxu0
    %v2061 = vadd.f32 %v1789, %v2060
    %v2062 = vpop.f32.mrf.mxu0
    %v2063 = vadd.f32 %v1793, %v2062
    %v2064 = vpop.f32.mrf.mxu0
    %v2065 = vadd.f32 %v1789, %v2064
    %v2066 = vpop.f32.mrf.mxu0
    %v2067 = vadd.f32 %v1793, %v2066
    %2068 = vdwg.mxu0
    %v2069 = vtanh.pop %v1911
    %v2070 = vtanh.pop %v1913
    %v2071 = vtanh.pop %v1915
    %v2072 = vtanh.pop %v1917
    %v2073 = vtanh.pop %v1921
    %v2074 = vtanh.pop %v1923
    %v2075 = vtanh.pop %v1925
    %v2076 = vtanh.pop %v1927
    %v2077 = vtanh.pop %v1931
    %v2078 = vtanh.pop %v1933
    %v2079 = vtanh.pop %v1935
    %v2080 = vtanh.pop %v1937
    %v2081 = vtanh.pop %v1941
    %v2082 = vtanh.pop %v1943
    %v2083 = vtanh.pop %v1945
    %v2084 = vtanh.pop %v1947
    %v2085 = vtanh.pop %v1951
    %v2086 = vtanh.pop %v1953
    %v2087 = vtanh.pop %v1955
    %v2088 = vtanh.pop %v1957
    %v2089 = vtanh.pop %v1961
    %v2090 = vtanh.pop %v1963
    %v2091 = vtanh.pop %v1965
    %v2092 = vtanh.pop %v1967
    %v2093 = vtanh.pop %v1971
    %v2094 = vtanh.pop %v1973
    %v2095 = vtanh.pop %v1975
    %v2096 = vtanh.pop %v1977
    %v2097 = vtanh.pop %v1981
    %v2098 = vtanh.pop %v1983
    %v2099 = vtanh.pop %v1985
    %v2100 = vtanh.pop %v1987
    %v2101 = vtanh.pop %v1991
    %v2102 = vtanh.pop %v1993
    %v2103 = vtanh.pop %v1995
    %v2104 = vtanh.pop %v1997
    %v2105 = vtanh.pop %v2001
    %v2106 = vtanh.pop %v2003
    %v2107 = vtanh.pop %v2005
    %v2108 = vtanh.pop %v2007
    %v2109 = vtanh.pop %v2011
    %v2110 = vtanh.pop %v2013
    %v2111 = vtanh.pop %v2015
    %v2112 = vtanh.pop %v2017
    %v2113 = vtanh.pop %v2021
    %v2114 = vtanh.pop %v2023
    %v2115 = vtanh.pop %v2025
    %v2116 = vtanh.pop %v2027
    %v2117 = vtanh.pop %v2031
    %v2118 = vtanh.pop %v2033
    %v2119 = vtanh.pop %v2035
    %v2120 = vtanh.pop %v2037
    %v2121 = vtanh.pop %v2041
    %v2122 = vtanh.pop %v2043
    %v2123 = vtanh.pop %v2045
    %v2124 = vtanh.pop %v2047
    %v2125 = vtanh.pop %v2051
    %v2126 = vtanh.pop %v2053
    %v2127 = vtanh.pop %v2055
    %v2128 = vtanh.pop %v2057
    %v2129 = vtanh.pop %v2061
    %v2130 = vtanh.pop %v2063
    %v2131 = vtanh.pop %v2065
    %v2132 = vtanh.pop %v2067
    %v2133 = vpack.c.bf16 %v2071, %v2069
    %v2134 = vpack.c.bf16 %v2072, %v2070
    %v2135 = vpack.c.bf16 %v2075, %v2073
    %v2136 = vpack.c.bf16 %v2076, %v2074
    %v2137 = vpack.c.bf16 %v2079, %v2077
    %v2138 = vpack.c.bf16 %v2080, %v2078
    %v2139 = vpack.c.bf16 %v2083, %v2081
    %v2140 = vpack.c.bf16 %v2084, %v2082
    %v2141 = vpack.c.bf16 %v2087, %v2085
    %v2142 = vpack.c.bf16 %v2088, %v2086
    %v2143 = vpack.c.bf16 %v2091, %v2089
    %v2144 = vpack.c.bf16 %v2092, %v2090
    %v2145 = vpack.c.bf16 %v2095, %v2093
    %v2146 = vpack.c.bf16 %v2096, %v2094
    %v2147 = vpack.c.bf16 %v2099, %v2097
    %v2148 = vpack.c.bf16 %v2100, %v2098
    %v2149 = vpack.c.bf16 %v2103, %v2101
    %v2150 = vpack.c.bf16 %v2104, %v2102
    %v2151 = vpack.c.bf16 %v2107, %v2105
    %v2152 = vpack.c.bf16 %v2108, %v2106
    %v2153 = vpack.c.bf16 %v2111, %v2109
    %v2154 = vpack.c.bf16 %v2112, %v2110
    %v2155 = vpack.c.bf16 %v2115, %v2113
    %v2156 = vpack.c.bf16 %v2116, %v2114
    %v2157 = vpack.c.bf16 %v2119, %v2117
    %v2158 = vpack.c.bf16 %v2120, %v2118
    %v2159 = vpack.c.bf16 %v2123, %v2121
    %v2160 = vpack.c.bf16 %v2124, %v2122
    %v2161 = vpack.c.bf16 %v2127, %v2125
    %v2162 = vpack.c.bf16 %v2128, %v2126
    %v2163 = vpack.c.bf16 %v2131, %v2129
    %v2164 = vpack.c.bf16 %v2132, %v2130
    %v2165 = vld [vmem:[%s12] sm:$0xf]
    %v2166 = vld [vmem:[%s12 + $0x4] sm:$0xf]
    %v2167 = vld [vmem:[%s12 + $0x8] sm:$0xf]
    %v2168 = vld [vmem:[%s12 + $0xc] sm:$0xf]
    %v2169 = vld [vmem:[%s12 + $0x10] sm:$0xf]
    %v2170 = vld [vmem:[%s12 + $0x14] sm:$0xf]
    %v2171 = vld [vmem:[%s12 + $0x18] sm:$0xf]
    %v2172 = vld [vmem:[%s12 + $0x1c] sm:$0xf]
    %v2173 = vld [vmem:[%s12 + $0x20] sm:$0xf]
    %v2174 = vld [vmem:[%s12 + $0x24] sm:$0xf]
    %v2175 = vld [vmem:[%s12 + $0x28] sm:$0xf]
    %v2176 = vld [vmem:[%s12 + $0x2c] sm:$0xf]
    %v2177 = vld [vmem:[%s12 + $0x30] sm:$0xf]
    %v2178 = vld [vmem:[%s12 + $0x34] sm:$0xf]
    %v2179 = vld [vmem:[%s12 + $0x38] sm:$0xf]
    %v2180 = vld [vmem:[%s12 + $0x3c] sm:$0xf]
    %v2181 = vld [vmem:[%s12 + $0x40] sm:$0xf]
    %v2182 = vld [vmem:[%s12 + $0x44] sm:$0xf]
    %v2183 = vld [vmem:[%s12 + $0x48] sm:$0xf]
    %v2184 = vld [vmem:[%s12 + $0x4c] sm:$0xf]
    %v2185 = vld [vmem:[%s12 + $0x50] sm:$0xf]
    %v2186 = vld [vmem:[%s12 + $0x54] sm:$0xf]
    %v2187 = vld [vmem:[%s12 + $0x58] sm:$0xf]
    %v2188 = vld [vmem:[%s12 + $0x5c] sm:$0xf]
    %v2189 = vld [vmem:[%s12 + $0x60] sm:$0xf]
    %v2190 = vld [vmem:[%s12 + $0x64] sm:$0xf]
    %v2191 = vld [vmem:[%s12 + $0x68] sm:$0xf]
    %v2192 = vld [vmem:[%s12 + $0x6c] sm:$0xf]
    %v2193 = vld [vmem:[%s12 + $0x70] sm:$0xf]
    %v2194 = vld [vmem:[%s12 + $0x74] sm:$0xf]
    %v2195 = vld [vmem:[%s12 + $0x78] sm:$0xf]
    %v2196 = vld [vmem:[%s12 + $0x7c] sm:$0xf]
    %v2197 = vld [vmem:[%s13] sm:$0x1]
    %v2199 = vlaneseq
    %v2200 = vshrl.u32 %v2199, 7
    %v2201 = vsub.s32 0, %v2200
    %v2202 = vrot.slane %v2197, %v2201
    %v2236 = vunpack.c.l.b16 %v2165
    %v2237 = vunpack.c.l.b16 %v2166
    %v2238 = vunpack.c.l.b16 %v2167
    %v2239 = vunpack.c.l.b16 %v2168
    %v2240 = vunpack.c.l.b16 %v2169
    %v2241 = vunpack.c.l.b16 %v2170
    %v2242 = vunpack.c.l.b16 %v2171
    %v2243 = vunpack.c.l.b16 %v2172
    %v2244 = vunpack.c.l.b16 %v2173
    %v2245 = vunpack.c.l.b16 %v2174
    %v2246 = vunpack.c.l.b16 %v2175
    %v2247 = vunpack.c.l.b16 %v2176
    %v2248 = vunpack.c.l.b16 %v2177
    %v2249 = vunpack.c.l.b16 %v2178
    %v2250 = vunpack.c.l.b16 %v2179
    %v2251 = vunpack.c.l.b16 %v2180
    %v2252 = vunpack.c.l.b16 %v2181
    %v2253 = vunpack.c.l.b16 %v2182
    %v2254 = vunpack.c.l.b16 %v2183
    %v2255 = vunpack.c.l.b16 %v2184
    %v2256 = vunpack.c.l.b16 %v2185
    %v2257 = vunpack.c.l.b16 %v2186
    %v2258 = vunpack.c.l.b16 %v2187
    %v2259 = vunpack.c.l.b16 %v2188
    %v2260 = vunpack.c.l.b16 %v2189
    %v2261 = vunpack.c.l.b16 %v2190
    %v2262 = vunpack.c.l.b16 %v2191
    %v2263 = vunpack.c.l.b16 %v2192
    %v2264 = vunpack.c.l.b16 %v2193
    %v2265 = vunpack.c.l.b16 %v2194
    %v2266 = vunpack.c.l.b16 %v2195
    %v2267 = vunpack.c.l.b16 %v2196
    %v2268 = vpack.c.b16 %v2237, %v2236
    %v2269 = vpack.c.b16 %v2239, %v2238
    %v2270 = vpack.c.b16 %v2241, %v2240
    %v2271 = vpack.c.b16 %v2243, %v2242
    %v2272 = vpack.c.b16 %v2245, %v2244
    %v2273 = vpack.c.b16 %v2247, %v2246
    %v2274 = vpack.c.b16 %v2249, %v2248
    %v2275 = vpack.c.b16 %v2251, %v2250
    %v2276 = vpack.c.b16 %v2253, %v2252
    %v2277 = vpack.c.b16 %v2255, %v2254
    %v2278 = vpack.c.b16 %v2257, %v2256
    %v2279 = vpack.c.b16 %v2259, %v2258
    %v2280 = vpack.c.b16 %v2261, %v2260
    %v2281 = vpack.c.b16 %v2263, %v2262
    %v2282 = vpack.c.b16 %v2265, %v2264
    %v2283 = vpack.c.b16 %v2267, %v2266
    %2300 = vmatprep.subr.bf16.mxu0 0
    %2301 = vmatpush1.bf16.msra.mxu0 %v2275
    %2302 = vmatprep.subr.bf16.mxu0 0
    %2303 = vmatpush1.bf16.msra.mxu0 %v2274
    %2304 = vmatprep.subr.bf16.mxu0 0
    %2305 = vmatpush1.bf16.msra.mxu0 %v2273
    %2306 = vmatprep.subr.bf16.mxu0 0
    %2307 = vmatpush1.bf16.msra.mxu0 %v2272
    %2308 = vmatprep.subr.bf16.mxu0 0
    %2309 = vmatpush1.bf16.msra.mxu0 %v2271
    %2310 = vmatprep.subr.bf16.mxu0 0
    %2311 = vmatpush1.bf16.msra.mxu0 %v2270
    %2312 = vmatprep.subr.bf16.mxu0 0
    %2313 = vmatpush1.bf16.msra.mxu0 %v2269
    %2314 = vmatprep.subr.bf16.mxu0 0
    %2315 = vmatpush1.bf16.msra.mxu0 %v2268
    %2316 = vmatprep.subr.bf16.mxu0 0
    %2317 = vmatpush2.bf16.msra.mxu0 %v2283
    %2318 = vmatprep.subr.bf16.mxu0 0
    %2319 = vmatpush2.bf16.msra.mxu0 %v2282
    %2320 = vmatprep.subr.bf16.mxu0 0
    %2321 = vmatpush2.bf16.msra.mxu0 %v2281
    %2322 = vmatprep.subr.bf16.mxu0 0
    %2323 = vmatpush2.bf16.msra.mxu0 %v2280
    %2324 = vmatprep.subr.bf16.mxu0 0
    %2325 = vmatpush2.bf16.msra.mxu0 %v2279
    %2326 = vmatprep.subr.bf16.mxu0 0
    %2327 = vmatpush2.bf16.msra.mxu0 %v2278
    %2328 = vmatprep.subr.bf16.mxu0 0
    %2329 = vmatpush2.bf16.msra.mxu0 %v2277
    %2330 = vmatprep.subr.bf16.mxu0 0
    %2331 = vmatpush2.bf16.msra.mxu0 %v2276
    %2332 = vmatprep.mubr.bf16.mxu0 %v2134
    %2333 = vmatmul.mubr.bf16.gmra.mxu0 %v2133
    %v2334 = vpop.f32.mrf.mxu0
    %v2335 = vadd.f32 %v2202, %v2334
    %v2336 = vpop.f32.mrf.mxu0
    %v2337 = vpop.f32.mrf.mxu0
    %v2338 = vadd.f32 %v2202, %v2337
    %v2339 = vpop.f32.mrf.mxu0
    %2340 = vmatprep.mubr.bf16.mxu0 %v2136
    %2341 = vmatmul.mubr.bf16.gmra.mxu0 %v2135
    %v2342 = vpop.f32.mrf.mxu0
    %v2343 = vadd.f32 %v2202, %v2342
    %v2344 = vpop.f32.mrf.mxu0
    %v2345 = vpop.f32.mrf.mxu0
    %v2346 = vadd.f32 %v2202, %v2345
    %v2347 = vpop.f32.mrf.mxu0
    %2348 = vmatprep.mubr.bf16.mxu0 %v2138
    %2349 = vmatmul.mubr.bf16.gmra.mxu0 %v2137
    %v2350 = vpop.f32.mrf.mxu0
    %v2351 = vadd.f32 %v2202, %v2350
    %v2352 = vpop.f32.mrf.mxu0
    %v2353 = vpop.f32.mrf.mxu0
    %v2354 = vadd.f32 %v2202, %v2353
    %v2355 = vpop.f32.mrf.mxu0
    %2356 = vmatprep.mubr.bf16.mxu0 %v2140
    %2357 = vmatmul.mubr.bf16.gmra.mxu0 %v2139
    %v2358 = vpop.f32.mrf.mxu0
    %v2359 = vadd.f32 %v2202, %v2358
    %v2360 = vpop.f32.mrf.mxu0
    %v2361 = vpop.f32.mrf.mxu0
    %v2362 = vadd.f32 %v2202, %v2361
    %v2363 = vpop.f32.mrf.mxu0
    %2364 = vmatprep.mubr.bf16.mxu0 %v2142
    %2365 = vmatmul.mubr.bf16.gmra.mxu0 %v2141
    %v2366 = vpop.f32.mrf.mxu0
    %v2367 = vadd.f32 %v2202, %v2366
    %v2368 = vpop.f32.mrf.mxu0
    %v2369 = vpop.f32.mrf.mxu0
    %v2370 = vadd.f32 %v2202, %v2369
    %v2371 = vpop.f32.mrf.mxu0
    %2372 = vmatprep.mubr.bf16.mxu0 %v2144
    %2373 = vmatmul.mubr.bf16.gmra.mxu0 %v2143
    %v2374 = vpop.f32.mrf.mxu0
    %v2375 = vadd.f32 %v2202, %v2374
    %v2376 = vpop.f32.mrf.mxu0
    %v2377 = vpop.f32.mrf.mxu0
    %v2378 = vadd.f32 %v2202, %v2377
    %v2379 = vpop.f32.mrf.mxu0
    %2380 = vmatprep.mubr.bf16.mxu0 %v2146
    %2381 = vmatmul.mubr.bf16.gmra.mxu0 %v2145
    %v2382 = vpop.f32.mrf.mxu0
    %v2383 = vadd.f32 %v2202, %v2382
    %v2384 = vpop.f32.mrf.mxu0
    %v2385 = vpop.f32.mrf.mxu0
    %v2386 = vadd.f32 %v2202, %v2385
    %v2387 = vpop.f32.mrf.mxu0
    %2388 = vmatprep.mubr.bf16.mxu0 %v2148
    %2389 = vmatmul.mubr.bf16.gmra.mxu0 %v2147
    %v2390 = vpop.f32.mrf.mxu0
    %v2391 = vadd.f32 %v2202, %v2390
    %v2392 = vpop.f32.mrf.mxu0
    %v2393 = vpop.f32.mrf.mxu0
    %v2394 = vadd.f32 %v2202, %v2393
    %v2395 = vpop.f32.mrf.mxu0
    %2396 = vmatprep.mubr.bf16.mxu0 %v2150
    %2397 = vmatmul.mubr.bf16.gmra.mxu0 %v2149
    %v2398 = vpop.f32.mrf.mxu0
    %v2399 = vadd.f32 %v2202, %v2398
    %v2400 = vpop.f32.mrf.mxu0
    %v2401 = vpop.f32.mrf.mxu0
    %v2402 = vadd.f32 %v2202, %v2401
    %v2403 = vpop.f32.mrf.mxu0
    %2404 = vmatprep.mubr.bf16.mxu0 %v2152
    %2405 = vmatmul.mubr.bf16.gmra.mxu0 %v2151
    %v2406 = vpop.f32.mrf.mxu0
    %v2407 = vadd.f32 %v2202, %v2406
    %v2408 = vpop.f32.mrf.mxu0
    %v2409 = vpop.f32.mrf.mxu0
    %v2410 = vadd.f32 %v2202, %v2409
    %v2411 = vpop.f32.mrf.mxu0
    %2412 = vmatprep.mubr.bf16.mxu0 %v2154
    %2413 = vmatmul.mubr.bf16.gmra.mxu0 %v2153
    %v2414 = vpop.f32.mrf.mxu0
    %v2415 = vadd.f32 %v2202, %v2414
    %v2416 = vpop.f32.mrf.mxu0
    %v2417 = vpop.f32.mrf.mxu0
    %v2418 = vadd.f32 %v2202, %v2417
    %v2419 = vpop.f32.mrf.mxu0
    %2420 = vmatprep.mubr.bf16.mxu0 %v2156
    %2421 = vmatmul.mubr.bf16.gmra.mxu0 %v2155
    %v2422 = vpop.f32.mrf.mxu0
    %v2423 = vadd.f32 %v2202, %v2422
    %v2424 = vpop.f32.mrf.mxu0
    %v2425 = vpop.f32.mrf.mxu0
    %v2426 = vadd.f32 %v2202, %v2425
    %v2427 = vpop.f32.mrf.mxu0
    %2428 = vmatprep.mubr.bf16.mxu0 %v2158
    %2429 = vmatmul.mubr.bf16.gmra.mxu0 %v2157
    %v2430 = vpop.f32.mrf.mxu0
    %v2431 = vadd.f32 %v2202, %v2430
    %v2432 = vpop.f32.mrf.mxu0
    %v2433 = vpop.f32.mrf.mxu0
    %v2434 = vadd.f32 %v2202, %v2433
    %v2435 = vpop.f32.mrf.mxu0
    %2436 = vmatprep.mubr.bf16.mxu0 %v2160
    %2437 = vmatmul.mubr.bf16.gmra.mxu0 %v2159
    %v2438 = vpop.f32.mrf.mxu0
    %v2439 = vadd.f32 %v2202, %v2438
    %v2440 = vpop.f32.mrf.mxu0
    %v2441 = vpop.f32.mrf.mxu0
    %v2442 = vadd.f32 %v2202, %v2441
    %v2443 = vpop.f32.mrf.mxu0
    %2444 = vmatprep.mubr.bf16.mxu0 %v2162
    %2445 = vmatmul.mubr.bf16.gmra.mxu0 %v2161
    %v2446 = vpop.f32.mrf.mxu0
    %v2447 = vadd.f32 %v2202, %v2446
    %v2448 = vpop.f32.mrf.mxu0
    %v2449 = vpop.f32.mrf.mxu0
    %v2450 = vadd.f32 %v2202, %v2449
    %v2451 = vpop.f32.mrf.mxu0
    %2452 = vmatprep.mubr.bf16.mxu0 %v2164
    %2453 = vmatmul.mubr.bf16.gmra.mxu0 %v2163
    %v2454 = vpop.f32.mrf.mxu0
    %v2455 = vadd.f32 %v2202, %v2454
    %v2456 = vpop.f32.mrf.mxu0
    %v2457 = vpop.f32.mrf.mxu0
    %v2458 = vadd.f32 %v2202, %v2457
    %v2459 = vpop.f32.mrf.mxu0
    %2460 = vdwg.mxu0
    %2493 = vrot.lane.b32.xlu0 %v930, 64
    %v2494 = vpop.permute.xlu0 %2493
    %2495 = vrot.lane.b32.xlu0 %v935, 64
    %v2496 = vpop.permute.xlu0 %2495
    %2497 = vrot.lane.b32.xlu0 %v940, 64
    %v2498 = vpop.permute.xlu0 %2497
    %2499 = vrot.lane.b32.xlu0 %v945, 64
    %v2500 = vpop.permute.xlu0 %2499
    %2501 = vrot.lane.b32.xlu0 %v950, 64
    %v2502 = vpop.permute.xlu0 %2501
    %2503 = vrot.lane.b32.xlu0 %v955, 64
    %v2504 = vpop.permute.xlu0 %2503
    %2505 = vrot.lane.b32.xlu0 %v960, 64
    %v2506 = vpop.permute.xlu0 %2505
    %2507 = vrot.lane.b32.xlu0 %v965, 64
    %v2508 = vpop.permute.xlu0 %2507
    %2509 = vrot.lane.b32.xlu0 %v970, 64
    %v2510 = vpop.permute.xlu0 %2509
    %2511 = vrot.lane.b32.xlu0 %v975, 64
    %v2512 = vpop.permute.xlu0 %2511
    %2513 = vrot.lane.b32.xlu0 %v980, 64
    %v2514 = vpop.permute.xlu0 %2513
    %2515 = vrot.lane.b32.xlu0 %v985, 64
    %v2516 = vpop.permute.xlu0 %2515
    %2517 = vrot.lane.b32.xlu0 %v990, 64
    %v2518 = vpop.permute.xlu0 %2517
    %2519 = vrot.lane.b32.xlu0 %v995, 64
    %v2520 = vpop.permute.xlu0 %2519
    %2521 = vrot.lane.b32.xlu0 %v1000, 64
    %v2522 = vpop.permute.xlu0 %2521
    %2523 = vrot.lane.b32.xlu0 %v1005, 64
    %v2524 = vpop.permute.xlu0 %2523
    %2525 = vrot.lane.b32.xlu0 %v1010, 64
    %v2526 = vpop.permute.xlu0 %2525
    %2527 = vrot.lane.b32.xlu0 %v1015, 64
    %v2528 = vpop.permute.xlu0 %2527
    %2529 = vrot.lane.b32.xlu0 %v1020, 64
    %v2530 = vpop.permute.xlu0 %2529
    %2531 = vrot.lane.b32.xlu0 %v1025, 64
    %v2532 = vpop.permute.xlu0 %2531
    %2533 = vrot.lane.b32.xlu0 %v1030, 64
    %v2534 = vpop.permute.xlu0 %2533
    %2535 = vrot.lane.b32.xlu0 %v1035, 64
    %v2536 = vpop.permute.xlu0 %2535
    %2537 = vrot.lane.b32.xlu0 %v1040, 64
    %v2538 = vpop.permute.xlu0 %2537
    %2539 = vrot.lane.b32.xlu0 %v1045, 64
    %v2540 = vpop.permute.xlu0 %2539
    %2541 = vrot.lane.b32.xlu0 %v1050, 64
    %v2542 = vpop.permute.xlu0 %2541
    %2543 = vrot.lane.b32.xlu0 %v1055, 64
    %v2544 = vpop.permute.xlu0 %2543
    %2545 = vrot.lane.b32.xlu0 %v1060, 64
    %v2546 = vpop.permute.xlu0 %2545
    %2547 = vrot.lane.b32.xlu0 %v1065, 64
    %v2548 = vpop.permute.xlu0 %2547
    %2549 = vrot.lane.b32.xlu0 %v1070, 64
    %v2550 = vpop.permute.xlu0 %2549
    %2551 = vrot.lane.b32.xlu0 %v1075, 64
    %v2552 = vpop.permute.xlu0 %2551
    %2553 = vrot.lane.b32.xlu0 %v1080, 64
    %v2554 = vpop.permute.xlu0 %2553
    %2555 = vrot.lane.b32.xlu0 %v1085, 64
    %v2556 = vpop.permute.xlu0 %2555
    %vm2589 = vcmask 523264
    %v2590 = vsel %vm2589, %v2335, %v2494
    %v2591 = vsel %vm2589, %v2338, %v2496
    %v2592 = vsel %vm2589, %v2343, %v2498
    %v2593 = vsel %vm2589, %v2346, %v2500
    %v2594 = vsel %vm2589, %v2351, %v2502
    %v2595 = vsel %vm2589, %v2354, %v2504
    %v2596 = vsel %vm2589, %v2359, %v2506
    %v2597 = vsel %vm2589, %v2362, %v2508
    %v2598 = vsel %vm2589, %v2367, %v2510
    %v2599 = vsel %vm2589, %v2370, %v2512
    %v2600 = vsel %vm2589, %v2375, %v2514
    %v2601 = vsel %vm2589, %v2378, %v2516
    %v2602 = vsel %vm2589, %v2383, %v2518
    %v2603 = vsel %vm2589, %v2386, %v2520
    %v2604 = vsel %vm2589, %v2391, %v2522
    %v2605 = vsel %vm2589, %v2394, %v2524
    %v2606 = vsel %vm2589, %v2399, %v2526
    %v2607 = vsel %vm2589, %v2402, %v2528
    %v2608 = vsel %vm2589, %v2407, %v2530
    %v2609 = vsel %vm2589, %v2410, %v2532
    %v2610 = vsel %vm2589, %v2415, %v2534
    %v2611 = vsel %vm2589, %v2418, %v2536
    %v2612 = vsel %vm2589, %v2423, %v2538
    %v2613 = vsel %vm2589, %v2426, %v2540
    %v2614 = vsel %vm2589, %v2431, %v2542
    %v2615 = vsel %vm2589, %v2434, %v2544
    %v2616 = vsel %vm2589, %v2439, %v2546
    %v2617 = vsel %vm2589, %v2442, %v2548
    %v2618 = vsel %vm2589, %v2447, %v2550
    %v2619 = vsel %vm2589, %v2450, %v2552
    %v2620 = vsel %vm2589, %v2455, %v2554
    %v2621 = vsel %vm2589, %v2458, %v2556
    %vm2622 = vcmask 654336
    %v2623 = vsel %vm2622, %v2590, 0.0
    %v2624 = vsel %vm2622, %v2591, 0.0
    %v2625 = vsel %vm2622, %v2592, 0.0
    %v2626 = vsel %vm2622, %v2593, 0.0
    %v2627 = vsel %vm2622, %v2594, 0.0
    %v2628 = vsel %vm2622, %v2595, 0.0
    %v2629 = vsel %vm2622, %v2596, 0.0
    %v2630 = vsel %vm2622, %v2597, 0.0
    %v2631 = vsel %vm2622, %v2598, 0.0
    %v2632 = vsel %vm2622, %v2599, 0.0
    %v2633 = vsel %vm2622, %v2600, 0.0
    %v2634 = vsel %vm2622, %v2601, 0.0
    %v2635 = vsel %vm2622, %v2602, 0.0
    %v2636 = vsel %vm2622, %v2603, 0.0
    %v2637 = vsel %vm2622, %v2604, 0.0
    %v2638 = vsel %vm2622, %v2605, 0.0
    %v2639 = vsel %vm2622, %v2606, 0.0
    %v2640 = vsel %vm2622, %v2607, 0.0
    %v2641 = vsel %vm2622, %v2608, 0.0
    %v2642 = vsel %vm2622, %v2609, 0.0
    %v2643 = vsel %vm2622, %v2610, 0.0
    %v2644 = vsel %vm2622, %v2611, 0.0
    %v2645 = vsel %vm2622, %v2612, 0.0
    %v2646 = vsel %vm2622, %v2613, 0.0
    %v2647 = vsel %vm2622, %v2614, 0.0
    %v2648 = vsel %vm2622, %v2615, 0.0
    %v2649 = vsel %vm2622, %v2616, 0.0
    %v2650 = vsel %vm2622, %v2617, 0.0
    %v2651 = vsel %vm2622, %v2618, 0.0
    %v2652 = vsel %vm2622, %v2619, 0.0
    %v2653 = vsel %vm2622, %v2620, 0.0
    %v2654 = vsel %vm2622, %v2621, 0.0
    %2655 = vst [vmem:[#allocation8] sm:$0xff] %v2623
    %2656 = vst [vmem:[#allocation8 + $0x8] sm:$0xff] %v2624
    %2657 = vst [vmem:[#allocation8 + $0x10] sm:$0xff] %v2625
    %2658 = vst [vmem:[#allocation8 + $0x18] sm:$0xff] %v2626
    %2659 = vst [vmem:[#allocation8 + $0x20] sm:$0xff] %v2627
    %2660 = vst [vmem:[#allocation8 + $0x28] sm:$0xff] %v2628
    %2661 = vst [vmem:[#allocation8 + $0x30] sm:$0xff] %v2629
    %2662 = vst [vmem:[#allocation8 + $0x38] sm:$0xff] %v2630
    %2663 = vst [vmem:[#allocation8 + $0x40] sm:$0xff] %v2631
    %2664 = vst [vmem:[#allocation8 + $0x48] sm:$0xff] %v2632
    %2665 = vst [vmem:[#allocation8 + $0x50] sm:$0xff] %v2633
    %2666 = vst [vmem:[#allocation8 + $0x58] sm:$0xff] %v2634
    %2667 = vst [vmem:[#allocation8 + $0x60] sm:$0xff] %v2635
    %2668 = vst [vmem:[#allocation8 + $0x68] sm:$0xff] %v2636
    %2669 = vst [vmem:[#allocation8 + $0x70] sm:$0xff] %v2637
    %2670 = vst [vmem:[#allocation8 + $0x78] sm:$0xff] %v2638
    %2671 = vst [vmem:[#allocation8 + $0x80] sm:$0xff] %v2639
    %2672 = vst [vmem:[#allocation8 + $0x88] sm:$0xff] %v2640
    %2673 = vst [vmem:[#allocation8 + $0x90] sm:$0xff] %v2641
    %2674 = vst [vmem:[#allocation8 + $0x98] sm:$0xff] %v2642
    %2675 = vst [vmem:[#allocation8 + $0xa0] sm:$0xff] %v2643
    %2676 = vst [vmem:[#allocation8 + $0xa8] sm:$0xff] %v2644
    %2677 = vst [vmem:[#allocation8 + $0xb0] sm:$0xff] %v2645
    %2678 = vst [vmem:[#allocation8 + $0xb8] sm:$0xff] %v2646
    %2679 = vst [vmem:[#allocation8 + $0xc0] sm:$0xff] %v2647
    %2680 = vst [vmem:[#allocation8 + $0xc8] sm:$0xff] %v2648
    %2681 = vst [vmem:[#allocation8 + $0xd0] sm:$0xff] %v2649
    %2682 = vst [vmem:[#allocation8 + $0xd8] sm:$0xff] %v2650
    %2683 = vst [vmem:[#allocation8 + $0xe0] sm:$0xff] %v2651
    %2684 = vst [vmem:[#allocation8 + $0xe8] sm:$0xff] %v2652
    %2685 = vst [vmem:[#allocation8 + $0xf0] sm:$0xff] %v2653
    %2686 = vst [vmem:[#allocation8 + $0xf8] sm:$0xff] %v2654
    // Predicated region
    $region70: #{tpu_custom_call.1} parent=1 // pred_check
      _
    $region71: #{tpu_custom_call.1} parent=1 // pred_check_branch
      %2688 = sbr.rel (0) target = $region73
    $region72: #{tpu_custom_call.1} parent=1 // pred_region
      %s2690 = ssub.s32 4096, 4096
      %2691 = vsyncadd [#allocation4], %s2690
      %s2692 = sshll.u32 [#allocation8], 4
      %s2693 = int_to_ptr.vmem [resolvable:$true] %s2692
      %2698 = dma.vmem_to_hbm [thread:$0]  %s2693, 4096, %s14, [#allocation4], 128, 128, 8
    $region73: #{tpu_custom_call.1} parent=1 // pred_fallthru
      _
    // Predicated region
    $region74: #{tpu_custom_call.1} parent=1 // pred_check
      _
    $region75: #{tpu_custom_call.1} parent=1 // pred_check_branch
      %2700 = sbr.rel (0) target = $region77
    $region76: #{tpu_custom_call.1} parent=1 // pred_region
      %2701 = dma.done [#allocation4], 4096
    $region77: #{tpu_custom_call.1} parent=1 // pred_fallthru
      _
    %2702 = vsyncpa [#allocation3], 1
    %2703 = vsyncpa [#allocation6], 1
    %2704 = vsyncpa [#allocation4], 1

// kernel: tpu_custom_call.1
$region0: #{tpu_custom_call.1}
  #allocation0 [shape = 'u32[]', space=smem, size = 0x4, offset = 0x4, fixed_abs, tag = 'smem constant byte address 0x4 - core index']
  #allocation1 [shape = 'u32[144,128]{1,0:T(1,128)}', space=vmem, size = 0x12000, scoped, tag = 'internal scratch']
  %s0 = inlined_call_operand.vmem [shape: f32[256,32], index: 0, kind: input, shape index: {}]
  %s1 = inlined_call_operand.vmem [shape: f32[256,128], index: 1, kind: input, shape index: {}]
  %s2 = inlined_call_operand.hbm [shape: bf16[32,256], index: 2, kind: input, shape index: {}]
  %s3 = inlined_call_operand.vmem [shape: f32[1,256], index: 3, kind: input, shape index: {}]
  %s4 = inlined_call_operand.vmem [shape: bf16[256,128], index: 4, kind: input, shape index: {}]
  %s5 = inlined_call_operand.vmem [shape: f32[1,128], index: 5, kind: input, shape index: {}]
  %s6 = inlined_call_operand.vmem [shape: f32[128,128], index: 6, kind: input, shape index: {}]
  %s7 = inlined_call_operand.vmem [shape: f32[1,128], index: 7, kind: input, shape index: {}]
  %s8 = inlined_call_operand.hbm [shape: bf16[128,128], index: 8, kind: input, shape index: {}]
  %s9 = inlined_call_operand.vmem [shape: f32[1,128], index: 9, kind: input, shape index: {}]
  %s10 = inlined_call_operand.hbm [shape: bf16[128,256], index: 10, kind: input, shape index: {}]
  %s11 = inlined_call_operand.vmem [shape: f32[1,256], index: 11, kind: input, shape index: {}]
  %s12 = inlined_call_operand.vmem [shape: bf16[256,64], index: 12, kind: input, shape index: {}]
  %s13 = inlined_call_operand.vmem [shape: f32[1,64], index: 13, kind: input, shape index: {}]
  %s14 = inlined_call_operand.hbm [shape: f32[256,128], index: 14, kind: output, shape index: {}]
  %s15 = sld [smem:[#allocation0]]
  $region78: #{tpu_custom_call.1} parent=0
    _
  %s17 = ssub.s32 1, %s15
  %s18 = scalar_select 0, %s17, %s15
  $region1: #{tpu_custom_call.1} parent=0
    #allocation2 [shape = 'u8[16384]{0}', space=vmem, size = 0x4000, scoped, tag = 'input window, operand 2, single buffered']
    #allocation3 [shape = 's32[1]{0}', space=sflag, size = 0x4, scoped, tag = 'scoped memory for tpu_custom_call.1']
    #allocation4 [shape = 's32[1]{0}', space=sflag, size = 0x4, scoped, tag = 'scoped memory for tpu_custom_call.1']
    #allocation5 [shape = 'u8[32768]{0}', space=vmem, size = 0x8000, scoped, tag = 'input window, operand 8, single buffered']
    #allocation6 [shape = 's32[1]{0}', space=sflag, size = 0x4, scoped, tag = 'scoped memory for tpu_custom_call.1']
    #allocation7 [shape = 'u8[65536]{0}', space=vmem, size = 0x10000, scoped, tag = 'input window, operand 10, single buffered']
    #allocation8 [shape = 'u8[131072]{0}', space=vmem, size = 0x20000, scoped, tag = 'output window, operand 0, single buffered']
    %19 = vsyncpa [#allocation3], 0
    %20 = vsyncpa [#allocation6], 0
    %21 = vsyncpa [#allocation4], 0
    // Predicated region
    $region2: #{tpu_custom_call.1} parent=1 // pred_check
      _
    $region3: #{tpu_custom_call.1} parent=1 // pred_check_branch
      %23 = sbr.rel (0) target = $region5
    $region4: #{tpu_custom_call.1} parent=1 // pred_region
      _
    $region5: #{tpu_custom_call.1} parent=1 // pred_fallthru
      _
    // Predicated region
    $region6: #{tpu_custom_call.1} parent=1 // pred_check
      _
    $region7: #{tpu_custom_call.1} parent=1 // pred_check_branch
      %25 = sbr.rel (0) target = $region9
    $region8: #{tpu_custom_call.1} parent=1 // pred_region
      _
    $region9: #{tpu_custom_call.1} parent=1 // pred_fallthru
      _
    // Predicated region
    $region10: #{tpu_custom_call.1} parent=1 // pred_check
      _
    $region11: #{tpu_custom_call.1} parent=1 // pred_check_branch
      %27 = sbr.rel (0) target = $region13
    $region12: #{tpu_custom_call.1} parent=1 // pred_region
      %s29 = ssub.s32 512, 512
      %30 = vsyncadd [#allocation3], %s29
      %s31 = sshll.u32 [#allocation2], 4
      %s32 = int_to_ptr.vmem [resolvable:$true] %s31
      %37 = dma.hbm_to_vmem [thread:$0]  %s2, 512, %s32, [#allocation3], 128, 128, 8
    $region13: #{tpu_custom_call.1} parent=1 // pred_fallthru
      _
    // Predicated region
    $region14: #{tpu_custom_call.1} parent=1 // pred_check
      _
    $region15: #{tpu_custom_call.1} parent=1 // pred_check_branch
      %39 = sbr.rel (0) target = $region17
    $region16: #{tpu_custom_call.1} parent=1 // pred_region
      _
    $region17: #{tpu_custom_call.1} parent=1 // pred_fallthru
      _
    // Predicated region
    $region18: #{tpu_custom_call.1} parent=1 // pred_check
      _
    $region19: #{tpu_custom_call.1} parent=1 // pred_check_branch
      %41 = sbr.rel (0) target = $region21
    $region20: #{tpu_custom_call.1} parent=1 // pred_region
      _
    $region21: #{tpu_custom_call.1} parent=1 // pred_fallthru
      _
    // Predicated region
    $region22: #{tpu_custom_call.1} parent=1 // pred_check
      _
    $region23: #{tpu_custom_call.1} parent=1 // pred_check_branch
      %43 = sbr.rel (0) target = $region25
    $region24: #{tpu_custom_call.1} parent=1 // pred_region
      _
    $region25: #{tpu_custom_call.1} parent=1 // pred_fallthru
      _
    // Predicated region
    $region26: #{tpu_custom_call.1} parent=1 // pred_check
      _
    $region27: #{tpu_custom_call.1} parent=1 // pred_check_branch
      %45 = sbr.rel (0) target = $region29
    $region28: #{tpu_custom_call.1} parent=1 // pred_region
      _
    $region29: #{tpu_custom_call.1} parent=1 // pred_fallthru
      _
    // Predicated region
    $region30: #{tpu_custom_call.1} parent=1 // pred_check
      _
    $region31: #{tpu_custom_call.1} parent=1 // pred_check_branch
      %47 = sbr.rel (0) target = $region33
    $region32: #{tpu_custom_call.1} parent=1 // pred_region
      _
    $region33: #{tpu_custom_call.1} parent=1 // pred_fallthru
      _
    // Predicated region
    $region34: #{tpu_custom_call.1} parent=1 // pred_check
      _
    $region35: #{tpu_custom_call.1} parent=1 // pred_check_branch
      %49 = sbr.rel (0) target = $region37
    $region36: #{tpu_custom_call.1} parent=1 // pred_region
      %s51 = ssub.s32 1024, 1024
      %52 = vsyncadd [#allocation6], %s51
      %s53 = sshll.u32 [#allocation5], 4
      %s54 = int_to_ptr.vmem [resolvable:$true] %s53
      %59 = dma.hbm_to_vmem [thread:$0]  %s8, 1024, %s54, [#allocation6], 64, 64, 4
    $region37: #{tpu_custom_call.1} parent=1 // pred_fallthru
      _
    // Predicated region
    $region38: #{tpu_custom_call.1} parent=1 // pred_check
      _
    $region39: #{tpu_custom_call.1} parent=1 // pred_check_branch
      %61 = sbr.rel (0) target = $region41
    $region40: #{tpu_custom_call.1} parent=1 // pred_region
      _
    $region41: #{tpu_custom_call.1} parent=1 // pred_fallthru
      _
    // Predicated region
    $region42: #{tpu_custom_call.1} parent=1 // pred_check
      _
    $region43: #{tpu_custom_call.1} parent=1 // pred_check_branch
      %63 = sbr.rel (0) target = $region45
    $region44: #{tpu_custom_call.1} parent=1 // pred_region
      %s65 = ssub.s32 2048, 2048
      %66 = vsyncadd [#allocation6], %s65
      %s67 = sshll.u32 [#allocation7], 4
      %s68 = int_to_ptr.vmem [resolvable:$true] %s67
      %73 = dma.hbm_to_vmem [thread:$0]  %s10, 2048, %s68, [#allocation6], 128, 128, 8
    $region45: #{tpu_custom_call.1} parent=1 // pred_fallthru
      _
    // Predicated region
    $region46: #{tpu_custom_call.1} parent=1 // pred_check
      _
    $region47: #{tpu_custom_call.1} parent=1 // pred_check_branch
      %75 = sbr.rel (0) target = $region49
    $region48: #{tpu_custom_call.1} parent=1 // pred_region
      _
    $region49: #{tpu_custom_call.1} parent=1 // pred_fallthru
      _
    // Predicated region
    $region50: #{tpu_custom_call.1} parent=1 // pred_check
      _
    $region51: #{tpu_custom_call.1} parent=1 // pred_check_branch
      %77 = sbr.rel (0) target = $region53
    $region52: #{tpu_custom_call.1} parent=1 // pred_region
      _
    $region53: #{tpu_custom_call.1} parent=1 // pred_fallthru
      _
    // Predicated region
    $region54: #{tpu_custom_call.1} parent=1 // pred_check
      _
    $region55: #{tpu_custom_call.1} parent=1 // pred_check_branch
      %79 = sbr.rel (0) target = $region57
    $region56: #{tpu_custom_call.1} parent=1 // pred_region
      _
    $region57: #{tpu_custom_call.1} parent=1 // pred_fallthru
      _
    // Predicated region
    $region58: #{tpu_custom_call.1} parent=1 // pred_check
      _
    $region59: #{tpu_custom_call.1} parent=1 // pred_check_branch
      %81 = sbr.rel (0) target = $region61
    $region60: #{tpu_custom_call.1} parent=1 // pred_region
      %82 = dma.done [#allocation3], 512
    $region61: #{tpu_custom_call.1} parent=1 // pred_fallthru
      _
    // Predicated region
    $region62: #{tpu_custom_call.1} parent=1 // pred_check
      _
    $region63: #{tpu_custom_call.1} parent=1 // pred_check_branch
      %84 = sbr.rel (0) target = $region65
    $region64: #{tpu_custom_call.1} parent=1 // pred_region
      %85 = dma.done [#allocation6], 1024
    $region65: #{tpu_custom_call.1} parent=1 // pred_fallthru
      _
    // Predicated region
    $region66: #{tpu_custom_call.1} parent=1 // pred_check
      _
    $region67: #{tpu_custom_call.1} parent=1 // pred_check_branch
      %87 = sbr.rel (0) target = $region69
    $region68: #{tpu_custom_call.1} parent=1 // pred_region
      %88 = dma.done [#allocation6], 2048
    $region69: #{tpu_custom_call.1} parent=1 // pred_fallthru
      _
    %v90 = vld [vmem:[%s0] sm:$0xff]
    %v91 = vld [vmem:[%s0 + $0x8] sm:$0xff]
    %v92 = vld [vmem:[%s0 + $0x10] sm:$0xff]
    %v93 = vld [vmem:[%s0 + $0x18] sm:$0xff]
    %v94 = vld [vmem:[%s0 + $0x20] sm:$0xff]
    %v95 = vld [vmem:[%s0 + $0x28] sm:$0xff]
    %v96 = vld [vmem:[%s0 + $0x30] sm:$0xff]
    %v97 = vld [vmem:[%s0 + $0x38] sm:$0xff]
    %v98 = vld [vmem:[%s0 + $0x40] sm:$0xff]
    %v99 = vld [vmem:[%s0 + $0x48] sm:$0xff]
    %v100 = vld [vmem:[%s0 + $0x50] sm:$0xff]
    %v101 = vld [vmem:[%s0 + $0x58] sm:$0xff]
    %v102 = vld [vmem:[%s0 + $0x60] sm:$0xff]
    %v103 = vld [vmem:[%s0 + $0x68] sm:$0xff]
    %v104 = vld [vmem:[%s0 + $0x70] sm:$0xff]
    %v105 = vld [vmem:[%s0 + $0x78] sm:$0xff]
    %v106 = vld [vmem:[%s0 + $0x80] sm:$0xff]
    %v107 = vld [vmem:[%s0 + $0x88] sm:$0xff]
    %v108 = vld [vmem:[%s0 + $0x90] sm:$0xff]
    %v109 = vld [vmem:[%s0 + $0x98] sm:$0xff]
    %v110 = vld [vmem:[%s0 + $0xa0] sm:$0xff]
    %v111 = vld [vmem:[%s0 + $0xa8] sm:$0xff]
    %v112 = vld [vmem:[%s0 + $0xb0] sm:$0xff]
    %v113 = vld [vmem:[%s0 + $0xb8] sm:$0xff]
    %v114 = vld [vmem:[%s0 + $0xc0] sm:$0xff]
    %v115 = vld [vmem:[%s0 + $0xc8] sm:$0xff]
    %v116 = vld [vmem:[%s0 + $0xd0] sm:$0xff]
    %v117 = vld [vmem:[%s0 + $0xd8] sm:$0xff]
    %v118 = vld [vmem:[%s0 + $0xe0] sm:$0xff]
    %v119 = vld [vmem:[%s0 + $0xe8] sm:$0xff]
    %v120 = vld [vmem:[%s0 + $0xf0] sm:$0xff]
    %v121 = vld [vmem:[%s0 + $0xf8] sm:$0xff]
    %v122 = vpack.c.bf16 %v91, %v90
    %v123 = vpack.c.bf16 %v93, %v92
    %v124 = vpack.c.bf16 %v95, %v94
    %v125 = vpack.c.bf16 %v97, %v96
    %v126 = vpack.c.bf16 %v99, %v98
    %v127 = vpack.c.bf16 %v101, %v100
    %v128 = vpack.c.bf16 %v103, %v102
    %v129 = vpack.c.bf16 %v105, %v104
    %v130 = vpack.c.bf16 %v107, %v106
    %v131 = vpack.c.bf16 %v109, %v108
    %v132 = vpack.c.bf16 %v111, %v110
    %v133 = vpack.c.bf16 %v113, %v112
    %v134 = vpack.c.bf16 %v115, %v114
    %v135 = vpack.c.bf16 %v117, %v116
    %v136 = vpack.c.bf16 %v119, %v118
    %v137 = vpack.c.bf16 %v121, %v120
    %v138 = vld [vmem:[#allocation2] sm:$0xff]
    %v139 = vld [vmem:[#allocation2 + $0x8] sm:$0xff]
    %v140 = vld [vmem:[#allocation2 + $0x10] sm:$0xff]
    %v141 = vld [vmem:[#allocation2 + $0x18] sm:$0xff]
    %v142 = vld [vmem:[%s3] sm:$0x3]
    %v144 = vlaneseq
    %v145 = vshrl.u32 %v144, 7
    %v146 = vsub.s32 0, %v145
    %v147 = vrot.slane %v142, %v146
    %v148 = vlaneseq
    %v149 = vshrl.u32 %v148, 7
    %v150 = vsub.s32 1, %v149
    %v151 = vrot.slane %v142, %v150
    %v158 = vunpack.c.l.b16 %v138
    %v159 = vunpack.c.h.b16 %v138
    %v160 = vunpack.c.l.b16 %v139
    %v161 = vunpack.c.h.b16 %v139
    %v162 = vunpack.c.l.b16 %v140
    %v163 = vunpack.c.h.b16 %v140
    %v164 = vunpack.c.l.b16 %v141
    %v165 = vunpack.c.h.b16 %v141
    %v166 = vpack.c.b16 %v160, %v158
    %v167 = vpack.c.b16 %v161, %v159
    %v168 = vpack.c.b16 %v164, %v162
    %v169 = vpack.c.b16 %v165, %v163
    %vm174 = vcmask 261120
    %v176 = vsel %vm174, %v122, 0
    %v179 = vsel %vm174, %v123, 0
    %v182 = vsel %vm174, %v124, 0
    %v185 = vsel %vm174, %v125, 0
    %v188 = vsel %vm174, %v126, 0
    %v191 = vsel %vm174, %v127, 0
    %v194 = vsel %vm174, %v128, 0
    %v197 = vsel %vm174, %v129, 0
    %v200 = vsel %vm174, %v130, 0
    %v203 = vsel %vm174, %v131, 0
    %v206 = vsel %vm174, %v132, 0
    %v209 = vsel %vm174, %v133, 0
    %v212 = vsel %vm174, %v134, 0
    %v215 = vsel %vm174, %v135, 0
    %v218 = vsel %vm174, %v136, 0
    %v221 = vsel %vm174, %v137, 0
    %223 = vmatprep.subr.bf16.mxu0 0
    %224 = vmatpush1.bf16.msra.mxu0 0
    %225 = vmatprep.subr.bf16.mxu0 0
    %226 = vmatpush1.bf16.msra.mxu0 0
    %227 = vmatprep.subr.bf16.mxu0 0
    %228 = vmatpush1.bf16.msra.mxu0 0
    %229 = vmatprep.subr.bf16.mxu0 0
    %230 = vmatpush1.bf16.msra.mxu0 0
    %231 = vmatprep.subr.bf16.mxu0 0
    %232 = vmatpush1.bf16.msra.mxu0 0
    %233 = vmatprep.subr.bf16.mxu0 0
    %234 = vmatpush1.bf16.msra.mxu0 0
    %235 = vmatprep.subr.bf16.mxu0 %v169
    %236 = vmatpush1.bf16.msra.mxu0 %v168
    %237 = vmatprep.subr.bf16.mxu0 %v167
    %238 = vmatpush1.bf16.msra.mxu0 %v166
    %239 = vmatprep.subr.bf16.mxu0 0
    %240 = vmatpush2.bf16.msra.mxu0 0
    %241 = vmatprep.subr.bf16.mxu0 0
    %242 = vmatpush2.bf16.msra.mxu0 0
    %243 = vmatprep.subr.bf16.mxu0 0
    %244 = vmatpush2.bf16.msra.mxu0 0
    %245 = vmatprep.subr.bf16.mxu0 0
    %246 = vmatpush2.bf16.msra.mxu0 0
    %247 = vmatprep.subr.bf16.mxu0 0
    %248 = vmatpush2.bf16.msra.mxu0 0
    %249 = vmatprep.subr.bf16.mxu0 0
    %250 = vmatpush2.bf16.msra.mxu0 0
    %251 = vmatprep.subr.bf16.mxu0 0
    %252 = vmatpush2.bf16.msra.mxu0 0
    %253 = vmatprep.subr.bf16.mxu0 0
    %254 = vmatpush2.bf16.msra.mxu0 0
    %255 = vmatprep.mubr.bf16.mxu0 0
    %256 = vmatmul.mubr.bf16.gmra.mxu0 %v176
    %v257 = vpop.f32.mrf.mxu0
    %v258 = vadd.f32 %v147, %v257
    %v259 = vpop.f32.mrf.mxu0
    %v260 = vadd.f32 %v151, %v259
    %v261 = vpop.f32.mrf.mxu0
    %v262 = vadd.f32 %v147, %v261
    %v263 = vpop.f32.mrf.mxu0
    %v264 = vadd.f32 %v151, %v263
    %265 = vmatprep.mubr.bf16.mxu0 0
    %266 = vmatmul.mubr.bf16.gmra.mxu0 %v179
    %v267 = vpop.f32.mrf.mxu0
    %v268 = vadd.f32 %v147, %v267
    %v269 = vpop.f32.mrf.mxu0
    %v270 = vadd.f32 %v151, %v269
    %v271 = vpop.f32.mrf.mxu0
    %v272 = vadd.f32 %v147, %v271
    %v273 = vpop.f32.mrf.mxu0
    %v274 = vadd.f32 %v151, %v273
    %275 = vmatprep.mubr.bf16.mxu0 0
    %276 = vmatmul.mubr.bf16.gmra.mxu0 %v182
    %v277 = vpop.f32.mrf.mxu0
    %v278 = vadd.f32 %v147, %v277
    %v279 = vpop.f32.mrf.mxu0
    %v280 = vadd.f32 %v151, %v279
    %v281 = vpop.f32.mrf.mxu0
    %v282 = vadd.f32 %v147, %v281
    %v283 = vpop.f32.mrf.mxu0
    %v284 = vadd.f32 %v151, %v283
    %285 = vmatprep.mubr.bf16.mxu0 0
    %286 = vmatmul.mubr.bf16.gmra.mxu0 %v185
    %v287 = vpop.f32.mrf.mxu0
    %v288 = vadd.f32 %v147, %v287
    %v289 = vpop.f32.mrf.mxu0
    %v290 = vadd.f32 %v151, %v289
    %v291 = vpop.f32.mrf.mxu0
    %v292 = vadd.f32 %v147, %v291
    %v293 = vpop.f32.mrf.mxu0
    %v294 = vadd.f32 %v151, %v293
    %295 = vmatprep.mubr.bf16.mxu0 0
    %296 = vmatmul.mubr.bf16.gmra.mxu0 %v188
    %v297 = vpop.f32.mrf.mxu0
    %v298 = vadd.f32 %v147, %v297
    %v299 = vpop.f32.mrf.mxu0
    %v300 = vadd.f32 %v151, %v299
    %v301 = vpop.f32.mrf.mxu0
    %v302 = vadd.f32 %v147, %v301
    %v303 = vpop.f32.mrf.mxu0
    %v304 = vadd.f32 %v151, %v303
    %305 = vmatprep.mubr.bf16.mxu0 0
    %306 = vmatmul.mubr.bf16.gmra.mxu0 %v191
    %v307 = vpop.f32.mrf.mxu0
    %v308 = vadd.f32 %v147, %v307
    %v309 = vpop.f32.mrf.mxu0
    %v310 = vadd.f32 %v151, %v309
    %v311 = vpop.f32.mrf.mxu0
    %v312 = vadd.f32 %v147, %v311
    %v313 = vpop.f32.mrf.mxu0
    %v314 = vadd.f32 %v151, %v313
    %315 = vmatprep.mubr.bf16.mxu0 0
    %316 = vmatmul.mubr.bf16.gmra.mxu0 %v194
    %v317 = vpop.f32.mrf.mxu0
    %v318 = vadd.f32 %v147, %v317
    %v319 = vpop.f32.mrf.mxu0
    %v320 = vadd.f32 %v151, %v319
    %v321 = vpop.f32.mrf.mxu0
    %v322 = vadd.f32 %v147, %v321
    %v323 = vpop.f32.mrf.mxu0
    %v324 = vadd.f32 %v151, %v323
    %325 = vmatprep.mubr.bf16.mxu0 0
    %326 = vmatmul.mubr.bf16.gmra.mxu0 %v197
    %v327 = vpop.f32.mrf.mxu0
    %v328 = vadd.f32 %v147, %v327
    %v329 = vpop.f32.mrf.mxu0
    %v330 = vadd.f32 %v151, %v329
    %v331 = vpop.f32.mrf.mxu0
    %v332 = vadd.f32 %v147, %v331
    %v333 = vpop.f32.mrf.mxu0
    %v334 = vadd.f32 %v151, %v333
    %335 = vmatprep.mubr.bf16.mxu0 0
    %336 = vmatmul.mubr.bf16.gmra.mxu0 %v200
    %v337 = vpop.f32.mrf.mxu0
    %v338 = vadd.f32 %v147, %v337
    %v339 = vpop.f32.mrf.mxu0
    %v340 = vadd.f32 %v151, %v339
    %v341 = vpop.f32.mrf.mxu0
    %v342 = vadd.f32 %v147, %v341
    %v343 = vpop.f32.mrf.mxu0
    %v344 = vadd.f32 %v151, %v343
    %345 = vmatprep.mubr.bf16.mxu0 0
    %346 = vmatmul.mubr.bf16.gmra.mxu0 %v203
    %v347 = vpop.f32.mrf.mxu0
    %v348 = vadd.f32 %v147, %v347
    %v349 = vpop.f32.mrf.mxu0
    %v350 = vadd.f32 %v151, %v349
    %v351 = vpop.f32.mrf.mxu0
    %v352 = vadd.f32 %v147, %v351
    %v353 = vpop.f32.mrf.mxu0
    %v354 = vadd.f32 %v151, %v353
    %355 = vmatprep.mubr.bf16.mxu0 0
    %356 = vmatmul.mubr.bf16.gmra.mxu0 %v206
    %v357 = vpop.f32.mrf.mxu0
    %v358 = vadd.f32 %v147, %v357
    %v359 = vpop.f32.mrf.mxu0
    %v360 = vadd.f32 %v151, %v359
    %v361 = vpop.f32.mrf.mxu0
    %v362 = vadd.f32 %v147, %v361
    %v363 = vpop.f32.mrf.mxu0
    %v364 = vadd.f32 %v151, %v363
    %365 = vmatprep.mubr.bf16.mxu0 0
    %366 = vmatmul.mubr.bf16.gmra.mxu0 %v209
    %v367 = vpop.f32.mrf.mxu0
    %v368 = vadd.f32 %v147, %v367
    %v369 = vpop.f32.mrf.mxu0
    %v370 = vadd.f32 %v151, %v369
    %v371 = vpop.f32.mrf.mxu0
    %v372 = vadd.f32 %v147, %v371
    %v373 = vpop.f32.mrf.mxu0
    %v374 = vadd.f32 %v151, %v373
    %375 = vmatprep.mubr.bf16.mxu0 0
    %376 = vmatmul.mubr.bf16.gmra.mxu0 %v212
    %v377 = vpop.f32.mrf.mxu0
    %v378 = vadd.f32 %v147, %v377
    %v379 = vpop.f32.mrf.mxu0
    %v380 = vadd.f32 %v151, %v379
    %v381 = vpop.f32.mrf.mxu0
    %v382 = vadd.f32 %v147, %v381
    %v383 = vpop.f32.mrf.mxu0
    %v384 = vadd.f32 %v151, %v383
    %385 = vmatprep.mubr.bf16.mxu0 0
    %386 = vmatmul.mubr.bf16.gmra.mxu0 %v215
    %v387 = vpop.f32.mrf.mxu0
    %v388 = vadd.f32 %v147, %v387
    %v389 = vpop.f32.mrf.mxu0
    %v390 = vadd.f32 %v151, %v389
    %v391 = vpop.f32.mrf.mxu0
    %v392 = vadd.f32 %v147, %v391
    %v393 = vpop.f32.mrf.mxu0
    %v394 = vadd.f32 %v151, %v393
    %395 = vmatprep.mubr.bf16.mxu0 0
    %396 = vmatmul.mubr.bf16.gmra.mxu0 %v218
    %v397 = vpop.f32.mrf.mxu0
    %v398 = vadd.f32 %v147, %v397
    %v399 = vpop.f32.mrf.mxu0
    %v400 = vadd.f32 %v151, %v399
    %v401 = vpop.f32.mrf.mxu0
    %v402 = vadd.f32 %v147, %v401
    %v403 = vpop.f32.mrf.mxu0
    %v404 = vadd.f32 %v151, %v403
    %405 = vmatprep.mubr.bf16.mxu0 0
    %406 = vmatmul.mubr.bf16.gmra.mxu0 %v221
    %v407 = vpop.f32.mrf.mxu0
    %v408 = vadd.f32 %v147, %v407
    %v409 = vpop.f32.mrf.mxu0
    %v410 = vadd.f32 %v151, %v409
    %v411 = vpop.f32.mrf.mxu0
    %v412 = vadd.f32 %v147, %v411
    %v413 = vpop.f32.mrf.mxu0
    %v414 = vadd.f32 %v151, %v413
    %415 = vdwg.mxu0
    %v416 = vtanh.pop %v258
    %v417 = vtanh.pop %v260
    %v418 = vtanh.pop %v262
    %v419 = vtanh.pop %v264
    %v420 = vtanh.pop %v268
    %v421 = vtanh.pop %v270
    %v422 = vtanh.pop %v272
    %v423 = vtanh.pop %v274
    %v424 = vtanh.pop %v278
    %v425 = vtanh.pop %v280
    %v426 = vtanh.pop %v282
    %v427 = vtanh.pop %v284
    %v428 = vtanh.pop %v288
    %v429 = vtanh.pop %v290
    %v430 = vtanh.pop %v292
    %v431 = vtanh.pop %v294
    %v432 = vtanh.pop %v298
    %v433 = vtanh.pop %v300
    %v434 = vtanh.pop %v302
    %v435 = vtanh.pop %v304
    %v436 = vtanh.pop %v308
    %v437 = vtanh.pop %v310
    %v438 = vtanh.pop %v312
    %v439 = vtanh.pop %v314
    %v440 = vtanh.pop %v318
    %v441 = vtanh.pop %v320
    %v442 = vtanh.pop %v322
    %v443 = vtanh.pop %v324
    %v444 = vtanh.pop %v328
    %v445 = vtanh.pop %v330
    %v446 = vtanh.pop %v332
    %v447 = vtanh.pop %v334
    %v448 = vtanh.pop %v338
    %v449 = vtanh.pop %v340
    %v450 = vtanh.pop %v342
    %v451 = vtanh.pop %v344
    %v452 = vtanh.pop %v348
    %v453 = vtanh.pop %v350
    %v454 = vtanh.pop %v352
    %v455 = vtanh.pop %v354
    %v456 = vtanh.pop %v358
    %v457 = vtanh.pop %v360
    %v458 = vtanh.pop %v362
    %v459 = vtanh.pop %v364
    %v460 = vtanh.pop %v368
    %v461 = vtanh.pop %v370
    %v462 = vtanh.pop %v372
    %v463 = vtanh.pop %v374
    %v464 = vtanh.pop %v378
    %v465 = vtanh.pop %v380
    %v466 = vtanh.pop %v382
    %v467 = vtanh.pop %v384
    %v468 = vtanh.pop %v388
    %v469 = vtanh.pop %v390
    %v470 = vtanh.pop %v392
    %v471 = vtanh.pop %v394
    %v472 = vtanh.pop %v398
    %v473 = vtanh.pop %v400
    %v474 = vtanh.pop %v402
    %v475 = vtanh.pop %v404
    %v476 = vtanh.pop %v408
    %v477 = vtanh.pop %v410
    %v478 = vtanh.pop %v412
    %v479 = vtanh.pop %v414
    %v480 = vpack.c.bf16 %v418, %v416
    %v481 = vpack.c.bf16 %v419, %v417
    %v482 = vpack.c.bf16 %v422, %v420
    %v483 = vpack.c.bf16 %v423, %v421
    %v484 = vpack.c.bf16 %v426, %v424
    %v485 = vpack.c.bf16 %v427, %v425
    %v486 = vpack.c.bf16 %v430, %v428
    %v487 = vpack.c.bf16 %v431, %v429
    %v488 = vpack.c.bf16 %v434, %v432
    %v489 = vpack.c.bf16 %v435, %v433
    %v490 = vpack.c.bf16 %v438, %v436
    %v491 = vpack.c.bf16 %v439, %v437
    %v492 = vpack.c.bf16 %v442, %v440
    %v493 = vpack.c.bf16 %v443, %v441
    %v494 = vpack.c.bf16 %v446, %v444
    %v495 = vpack.c.bf16 %v447, %v445
    %v496 = vpack.c.bf16 %v450, %v448
    %v497 = vpack.c.bf16 %v451, %v449
    %v498 = vpack.c.bf16 %v454, %v452
    %v499 = vpack.c.bf16 %v455, %v453
    %v500 = vpack.c.bf16 %v458, %v456
    %v501 = vpack.c.bf16 %v459, %v457
    %v502 = vpack.c.bf16 %v462, %v460
    %v503 = vpack.c.bf16 %v463, %v461
    %v504 = vpack.c.bf16 %v466, %v464
    %v505 = vpack.c.bf16 %v467, %v465
    %v506 = vpack.c.bf16 %v470, %v468
    %v507 = vpack.c.bf16 %v471, %v469
    %v508 = vpack.c.bf16 %v474, %v472
    %v509 = vpack.c.bf16 %v475, %v473
    %v510 = vpack.c.bf16 %v478, %v476
    %v511 = vpack.c.bf16 %v479, %v477
    %v512 = vld [vmem:[%s4] sm:$0xf]
    %v513 = vld [vmem:[%s4 + $0x4] sm:$0xf]
    %v514 = vld [vmem:[%s4 + $0x8] sm:$0xf]
    %v515 = vld [vmem:[%s4 + $0xc] sm:$0xf]
    %v516 = vld [vmem:[%s4 + $0x10] sm:$0xf]
    %v517 = vld [vmem:[%s4 + $0x14] sm:$0xf]
    %v518 = vld [vmem:[%s4 + $0x18] sm:$0xf]
    %v519 = vld [vmem:[%s4 + $0x1c] sm:$0xf]
    %v520 = vld [vmem:[%s4 + $0x20] sm:$0xf]
    %v521 = vld [vmem:[%s4 + $0x24] sm:$0xf]
    %v522 = vld [vmem:[%s4 + $0x28] sm:$0xf]
    %v523 = vld [vmem:[%s4 + $0x2c] sm:$0xf]
    %v524 = vld [vmem:[%s4 + $0x30] sm:$0xf]
    %v525 = vld [vmem:[%s4 + $0x34] sm:$0xf]
    %v526 = vld [vmem:[%s4 + $0x38] sm:$0xf]
    %v527 = vld [vmem:[%s4 + $0x3c] sm:$0xf]
    %v528 = vld [vmem:[%s4 + $0x40] sm:$0xf]
    %v529 = vld [vmem:[%s4 + $0x44] sm:$0xf]
    %v530 = vld [vmem:[%s4 + $0x48] sm:$0xf]
    %v531 = vld [vmem:[%s4 + $0x4c] sm:$0xf]
    %v532 = vld [vmem:[%s4 + $0x50] sm:$0xf]
    %v533 = vld [vmem:[%s4 + $0x54] sm:$0xf]
    %v534 = vld [vmem:[%s4 + $0x58] sm:$0xf]
    %v535 = vld [vmem:[%s4 + $0x5c] sm:$0xf]
    %v536 = vld [vmem:[%s4 + $0x60] sm:$0xf]
    %v537 = vld [vmem:[%s4 + $0x64] sm:$0xf]
    %v538 = vld [vmem:[%s4 + $0x68] sm:$0xf]
    %v539 = vld [vmem:[%s4 + $0x6c] sm:$0xf]
    %v540 = vld [vmem:[%s4 + $0x70] sm:$0xf]
    %v541 = vld [vmem:[%s4 + $0x74] sm:$0xf]
    %v542 = vld [vmem:[%s4 + $0x78] sm:$0xf]
    %v543 = vld [vmem:[%s4 + $0x7c] sm:$0xf]
    %v544 = vld [vmem:[%s5] sm:$0x1]
    %v546 = vlaneseq
    %v547 = vshrl.u32 %v546, 7
    %v548 = vsub.s32 0, %v547
    %v549 = vrot.slane %v544, %v548
    %v583 = vunpack.c.l.b16 %v512
    %v584 = vunpack.c.l.b16 %v513
    %v585 = vunpack.c.l.b16 %v514
    %v586 = vunpack.c.l.b16 %v515
    %v587 = vunpack.c.l.b16 %v516
    %v588 = vunpack.c.l.b16 %v517
    %v589 = vunpack.c.l.b16 %v518
    %v590 = vunpack.c.l.b16 %v519
    %v591 = vunpack.c.l.b16 %v520
    %v592 = vunpack.c.l.b16 %v521
    %v593 = vunpack.c.l.b16 %v522
    %v594 = vunpack.c.l.b16 %v523
    %v595 = vunpack.c.l.b16 %v524
    %v596 = vunpack.c.l.b16 %v525
    %v597 = vunpack.c.l.b16 %v526
    %v598 = vunpack.c.l.b16 %v527
    %v599 = vunpack.c.l.b16 %v528
    %v600 = vunpack.c.l.b16 %v529
    %v601 = vunpack.c.l.b16 %v530
    %v602 = vunpack.c.l.b16 %v531
    %v603 = vunpack.c.l.b16 %v532
    %v604 = vunpack.c.l.b16 %v533
    %v605 = vunpack.c.l.b16 %v534
    %v606 = vunpack.c.l.b16 %v535
    %v607 = vunpack.c.l.b16 %v536
    %v608 = vunpack.c.l.b16 %v537
    %v609 = vunpack.c.l.b16 %v538
    %v610 = vunpack.c.l.b16 %v539
    %v611 = vunpack.c.l.b16 %v540
    %v612 = vunpack.c.l.b16 %v541
    %v613 = vunpack.c.l.b16 %v542
    %v614 = vunpack.c.l.b16 %v543
    %v615 = vpack.c.b16 %v584, %v583
    %v616 = vpack.c.b16 %v586, %v585
    %v617 = vpack.c.b16 %v588, %v587
    %v618 = vpack.c.b16 %v590, %v589
    %v619 = vpack.c.b16 %v592, %v591
    %v620 = vpack.c.b16 %v594, %v593
    %v621 = vpack.c.b16 %v596, %v595
    %v622 = vpack.c.b16 %v598, %v597
    %v623 = vpack.c.b16 %v600, %v599
    %v624 = vpack.c.b16 %v602, %v601
    %v625 = vpack.c.b16 %v604, %v603
    %v626 = vpack.c.b16 %v606, %v605
    %v627 = vpack.c.b16 %v608, %v607
    %v628 = vpack.c.b16 %v610, %v609
    %v629 = vpack.c.b16 %v612, %v611
    %v630 = vpack.c.b16 %v614, %v613
    %647 = vmatprep.subr.bf16.mxu0 0
    %648 = vmatpush1.bf16.msra.mxu0 %v622
    %649 = vmatprep.subr.bf16.mxu0 0
    %650 = vmatpush1.bf16.msra.mxu0 %v621
    %651 = vmatprep.subr.bf16.mxu0 0
    %652 = vmatpush1.bf16.msra.mxu0 %v620
    %653 = vmatprep.subr.bf16.mxu0 0
    %654 = vmatpush1.bf16.msra.mxu0 %v619
    %655 = vmatprep.subr.bf16.mxu0 0
    %656 = vmatpush1.bf16.msra.mxu0 %v618
    %657 = vmatprep.subr.bf16.mxu0 0
    %658 = vmatpush1.bf16.msra.mxu0 %v617
    %659 = vmatprep.subr.bf16.mxu0 0
    %660 = vmatpush1.bf16.msra.mxu0 %v616
    %661 = vmatprep.subr.bf16.mxu0 0
    %662 = vmatpush1.bf16.msra.mxu0 %v615
    %663 = vmatprep.subr.bf16.mxu0 0
    %664 = vmatpush2.bf16.msra.mxu0 %v630
    %665 = vmatprep.subr.bf16.mxu0 0
    %666 = vmatpush2.bf16.msra.mxu0 %v629
    %667 = vmatprep.subr.bf16.mxu0 0
    %668 = vmatpush2.bf16.msra.mxu0 %v628
    %669 = vmatprep.subr.bf16.mxu0 0
    %670 = vmatpush2.bf16.msra.mxu0 %v627
    %671 = vmatprep.subr.bf16.mxu0 0
    %672 = vmatpush2.bf16.msra.mxu0 %v626
    %673 = vmatprep.subr.bf16.mxu0 0
    %674 = vmatpush2.bf16.msra.mxu0 %v625
    %675 = vmatprep.subr.bf16.mxu0 0
    %676 = vmatpush2.bf16.msra.mxu0 %v624
    %677 = vmatprep.subr.bf16.mxu0 0
    %678 = vmatpush2.bf16.msra.mxu0 %v623
    %679 = vmatprep.mubr.bf16.mxu0 %v481
    %680 = vmatmul.mubr.bf16.gmra.mxu0 %v480
    %v681 = vpop.f32.mrf.mxu0
    %v682 = vadd.f32 %v549, %v681
    %v683 = vpop.f32.mrf.mxu0
    %v684 = vpop.f32.mrf.mxu0
    %v685 = vadd.f32 %v549, %v684
    %v686 = vpop.f32.mrf.mxu0
    %687 = vmatprep.mubr.bf16.mxu0 %v483
    %688 = vmatmul.mubr.bf16.gmra.mxu0 %v482
    %v689 = vpop.f32.mrf.mxu0
    %v690 = vadd.f32 %v549, %v689
    %v691 = vpop.f32.mrf.mxu0
    %v692 = vpop.f32.mrf.mxu0
    %v693 = vadd.f32 %v549, %v692
    %v694 = vpop.f32.mrf.mxu0
    %695 = vmatprep.mubr.bf16.mxu0 %v485
    %696 = vmatmul.mubr.bf16.gmra.mxu0 %v484
    %v697 = vpop.f32.mrf.mxu0
    %v698 = vadd.f32 %v549, %v697
    %v699 = vpop.f32.mrf.mxu0
    %v700 = vpop.f32.mrf.mxu0
    %v701 = vadd.f32 %v549, %v700
    %v702 = vpop.f32.mrf.mxu0
    %703 = vmatprep.mubr.bf16.mxu0 %v487
    %704 = vmatmul.mubr.bf16.gmra.mxu0 %v486
    %v705 = vpop.f32.mrf.mxu0
    %v706 = vadd.f32 %v549, %v705
    %v707 = vpop.f32.mrf.mxu0
    %v708 = vpop.f32.mrf.mxu0
    %v709 = vadd.f32 %v549, %v708
    %v710 = vpop.f32.mrf.mxu0
    %711 = vmatprep.mubr.bf16.mxu0 %v489
    %712 = vmatmul.mubr.bf16.gmra.mxu0 %v488
    %v713 = vpop.f32.mrf.mxu0
    %v714 = vadd.f32 %v549, %v713
    %v715 = vpop.f32.mrf.mxu0
    %v716 = vpop.f32.mrf.mxu0
    %v717 = vadd.f32 %v549, %v716
    %v718 = vpop.f32.mrf.mxu0
    %719 = vmatprep.mubr.bf16.mxu0 %v491
    %720 = vmatmul.mubr.bf16.gmra.mxu0 %v490
    %v721 = vpop.f32.mrf.mxu0
    %v722 = vadd.f32 %v549, %v721
    %v723 = vpop.f32.mrf.mxu0
    %v724 = vpop.f32.mrf.mxu0
    %v725 = vadd.f32 %v549, %v724
    %v726 = vpop.f32.mrf.mxu0
    %727 = vmatprep.mubr.bf16.mxu0 %v493
    %728 = vmatmul.mubr.bf16.gmra.mxu0 %v492
    %v729 = vpop.f32.mrf.mxu0
    %v730 = vadd.f32 %v549, %v729
    %v731 = vpop.f32.mrf.mxu0
    %v732 = vpop.f32.mrf.mxu0
    %v733 = vadd.f32 %v549, %v732
    %v734 = vpop.f32.mrf.mxu0
    %735 = vmatprep.mubr.bf16.mxu0 %v495
    %736 = vmatmul.mubr.bf16.gmra.mxu0 %v494
    %v737 = vpop.f32.mrf.mxu0
    %v738 = vadd.f32 %v549, %v737
    %v739 = vpop.f32.mrf.mxu0
    %v740 = vpop.f32.mrf.mxu0
    %v741 = vadd.f32 %v549, %v740
    %v742 = vpop.f32.mrf.mxu0
    %743 = vmatprep.mubr.bf16.mxu0 %v497
    %744 = vmatmul.mubr.bf16.gmra.mxu0 %v496
    %v745 = vpop.f32.mrf.mxu0
    %v746 = vadd.f32 %v549, %v745
    %v747 = vpop.f32.mrf.mxu0
    %v748 = vpop.f32.mrf.mxu0
    %v749 = vadd.f32 %v549, %v748
    %v750 = vpop.f32.mrf.mxu0
    %751 = vmatprep.mubr.bf16.mxu0 %v499
    %752 = vmatmul.mubr.bf16.gmra.mxu0 %v498
    %v753 = vpop.f32.mrf.mxu0
    %v754 = vadd.f32 %v549, %v753
    %v755 = vpop.f32.mrf.mxu0
    %v756 = vpop.f32.mrf.mxu0
    %v757 = vadd.f32 %v549, %v756
    %v758 = vpop.f32.mrf.mxu0
    %759 = vmatprep.mubr.bf16.mxu0 %v501
    %760 = vmatmul.mubr.bf16.gmra.mxu0 %v500
    %v761 = vpop.f32.mrf.mxu0
    %v762 = vadd.f32 %v549, %v761
    %v763 = vpop.f32.mrf.mxu0
    %v764 = vpop.f32.mrf.mxu0
    %v765 = vadd.f32 %v549, %v764
    %v766 = vpop.f32.mrf.mxu0
    %767 = vmatprep.mubr.bf16.mxu0 %v503
    %768 = vmatmul.mubr.bf16.gmra.mxu0 %v502
    %v769 = vpop.f32.mrf.mxu0
    %v770 = vadd.f32 %v549, %v769
    %v771 = vpop.f32.mrf.mxu0
    %v772 = vpop.f32.mrf.mxu0
    %v773 = vadd.f32 %v549, %v772
    %v774 = vpop.f32.mrf.mxu0
    %775 = vmatprep.mubr.bf16.mxu0 %v505
    %776 = vmatmul.mubr.bf16.gmra.mxu0 %v504
    %v777 = vpop.f32.mrf.mxu0
    %v778 = vadd.f32 %v549, %v777
    %v779 = vpop.f32.mrf.mxu0
    %v780 = vpop.f32.mrf.mxu0
    %v781 = vadd.f32 %v549, %v780
    %v782 = vpop.f32.mrf.mxu0
    %783 = vmatprep.mubr.bf16.mxu0 %v507
    %784 = vmatmul.mubr.bf16.gmra.mxu0 %v506
    %v785 = vpop.f32.mrf.mxu0
    %v786 = vadd.f32 %v549, %v785
    %v787 = vpop.f32.mrf.mxu0
    %v788 = vpop.f32.mrf.mxu0
    %v789 = vadd.f32 %v549, %v788
    %v790 = vpop.f32.mrf.mxu0
    %791 = vmatprep.mubr.bf16.mxu0 %v509
    %792 = vmatmul.mubr.bf16.gmra.mxu0 %v508
    %v793 = vpop.f32.mrf.mxu0
    %v794 = vadd.f32 %v549, %v793
    %v795 = vpop.f32.mrf.mxu0
    %v796 = vpop.f32.mrf.mxu0
    %v797 = vadd.f32 %v549, %v796
    %v798 = vpop.f32.mrf.mxu0
    %799 = vmatprep.mubr.bf16.mxu0 %v511
    %800 = vmatmul.mubr.bf16.gmra.mxu0 %v510
    %v801 = vpop.f32.mrf.mxu0
    %v802 = vadd.f32 %v549, %v801
    %v803 = vpop.f32.mrf.mxu0
    %v804 = vpop.f32.mrf.mxu0
    %v805 = vadd.f32 %v549, %v804
    %v806 = vpop.f32.mrf.mxu0
    %807 = vdwg.mxu0
    %v808 = vtanh.pop %v682
    %v809 = vtanh.pop %v685
    %v810 = vtanh.pop %v690
    %v811 = vtanh.pop %v693
    %v812 = vtanh.pop %v698
    %v813 = vtanh.pop %v701
    %v814 = vtanh.pop %v706
    %v815 = vtanh.pop %v709
    %v816 = vtanh.pop %v714
    %v817 = vtanh.pop %v717
    %v818 = vtanh.pop %v722
    %v819 = vtanh.pop %v725
    %v820 = vtanh.pop %v730
    %v821 = vtanh.pop %v733
    %v822 = vtanh.pop %v738
    %v823 = vtanh.pop %v741
    %v824 = vtanh.pop %v746
    %v825 = vtanh.pop %v749
    %v826 = vtanh.pop %v754
    %v827 = vtanh.pop %v757
    %v828 = vtanh.pop %v762
    %v829 = vtanh.pop %v765
    %v830 = vtanh.pop %v770
    %v831 = vtanh.pop %v773
    %v832 = vtanh.pop %v778
    %v833 = vtanh.pop %v781
    %v834 = vtanh.pop %v786
    %v835 = vtanh.pop %v789
    %v836 = vtanh.pop %v794
    %v837 = vtanh.pop %v797
    %v838 = vtanh.pop %v802
    %v839 = vtanh.pop %v805
    %v840 = vld [vmem:[%s6] sm:$0xff]
    %v841 = vld [vmem:[%s6 + $0x8] sm:$0xff]
    %v842 = vld [vmem:[%s6 + $0x10] sm:$0xff]
    %v843 = vld [vmem:[%s6 + $0x18] sm:$0xff]
    %v844 = vld [vmem:[%s6 + $0x20] sm:$0xff]
    %v845 = vld [vmem:[%s6 + $0x28] sm:$0xff]
    %v846 = vld [vmem:[%s6 + $0x30] sm:$0xff]
    %v847 = vld [vmem:[%s6 + $0x38] sm:$0xff]
    %v848 = vld [vmem:[%s6 + $0x40] sm:$0xff]
    %v849 = vld [vmem:[%s6 + $0x48] sm:$0xff]
    %v850 = vld [vmem:[%s6 + $0x50] sm:$0xff]
    %v851 = vld [vmem:[%s6 + $0x58] sm:$0xff]
    %v852 = vld [vmem:[%s6 + $0x60] sm:$0xff]
    %v853 = vld [vmem:[%s6 + $0x68] sm:$0xff]
    %v854 = vld [vmem:[%s6 + $0x70] sm:$0xff]
    %v855 = vld [vmem:[%s6 + $0x78] sm:$0xff]
    %v856 = vld [vmem:[%s7] sm:$0x1]
    %v858 = vlaneseq
    %v859 = vshrl.u32 %v858, 7
    %v860 = vsub.s32 0, %v859
    %v861 = vrot.slane %v856, %v860
    %863 = vmatprep.subr.mxu0 0.0
    %864 = vmatpush1.msra.mxu0 %v855
    %865 = vmatprep.subr.mxu0 0.0
    %866 = vmatpush1.msra.mxu0 %v854
    %867 = vmatprep.subr.mxu0 0.0
    %868 = vmatpush1.msra.mxu0 %v853
    %869 = vmatprep.subr.mxu0 0.0
    %870 = vmatpush1.msra.mxu0 %v852
    %871 = vmatprep.subr.mxu0 0.0
    %872 = vmatpush1.msra.mxu0 %v851
    %873 = vmatprep.subr.mxu0 0.0
    %874 = vmatpush1.msra.mxu0 %v850
    %875 = vmatprep.subr.mxu0 0.0
    %876 = vmatpush1.msra.mxu0 %v849
    %877 = vmatprep.subr.mxu0 0.0
    %878 = vmatpush1.msra.mxu0 %v848
    %879 = vmatprep.subr.mxu0 0.0
    %880 = vmatpush1.msra.mxu0 %v847
    %881 = vmatprep.subr.mxu0 0.0
    %882 = vmatpush1.msra.mxu0 %v846
    %883 = vmatprep.subr.mxu0 0.0
    %884 = vmatpush1.msra.mxu0 %v845
    %885 = vmatprep.subr.mxu0 0.0
    %886 = vmatpush1.msra.mxu0 %v844
    %887 = vmatprep.subr.mxu0 0.0
    %888 = vmatpush1.msra.mxu0 %v843
    %889 = vmatprep.subr.mxu0 0.0
    %890 = vmatpush1.msra.mxu0 %v842
    %891 = vmatprep.subr.mxu0 0.0
    %892 = vmatpush1.msra.mxu0 %v841
    %893 = vmatprep.subr.mxu0 0.0
    %894 = vmatpush1.msra.mxu0 %v840
    %895 = vmatprep.subr.mxu0 0.0
    %896 = vmatpush2.msra.mxu0 0.0
    %897 = vmatprep.subr.mxu0 0.0
    %898 = vmatpush2.msra.mxu0 0.0
    %899 = vmatprep.subr.mxu0 0.0
    %900 = vmatpush2.msra.mxu0 0.0
    %901 = vmatprep.subr.mxu0 0.0
    %902 = vmatpush2.msra.mxu0 0.0
    %903 = vmatprep.subr.mxu0 0.0
    %904 = vmatpush2.msra.mxu0 0.0
    %905 = vmatprep.subr.mxu0 0.0
    %906 = vmatpush2.msra.mxu0 0.0
    %907 = vmatprep.subr.mxu0 0.0
    %908 = vmatpush2.msra.mxu0 0.0
    %909 = vmatprep.subr.mxu0 0.0
    %910 = vmatpush2.msra.mxu0 0.0
    %911 = vmatprep.subr.mxu0 0.0
    %912 = vmatpush2.msra.mxu0 0.0
    %913 = vmatprep.subr.mxu0 0.0
    %914 = vmatpush2.msra.mxu0 0.0
    %915 = vmatprep.subr.mxu0 0.0
    %916 = vmatpush2.msra.mxu0 0.0
    %917 = vmatprep.subr.mxu0 0.0
    %918 = vmatpush2.msra.mxu0 0.0
    %919 = vmatprep.subr.mxu0 0.0
    %920 = vmatpush2.msra.mxu0 0.0
    %921 = vmatprep.subr.mxu0 0.0
    %922 = vmatpush2.msra.mxu0 0.0
    %923 = vmatprep.subr.mxu0 0.0
    %924 = vmatpush2.msra.mxu0 0.0
    %925 = vmatprep.subr.mxu0 0.0
    %926 = vmatpush2.msra.mxu0 0.0
    %927 = vmatprep.mubr.f32.mxu0 0.0
    %928 = vmatmul.mubr.f32.gmra.mxu0 %v808
    %v929 = vpop.f32.mrf.mxu0
    %v930 = vadd.f32 %v861, %v929
    %v931 = vpop.f32.mrf.mxu0
    %932 = vmatprep.mubr.f32.mxu0 0.0
    %933 = vmatmul.mubr.f32.gmra.mxu0 %v809
    %v934 = vpop.f32.mrf.mxu0
    %v935 = vadd.f32 %v861, %v934
    %v936 = vpop.f32.mrf.mxu0
    %937 = vmatprep.mubr.f32.mxu0 0.0
    %938 = vmatmul.mubr.f32.gmra.mxu0 %v810
    %v939 = vpop.f32.mrf.mxu0
    %v940 = vadd.f32 %v861, %v939
    %v941 = vpop.f32.mrf.mxu0
    %942 = vmatprep.mubr.f32.mxu0 0.0
    %943 = vmatmul.mubr.f32.gmra.mxu0 %v811
    %v944 = vpop.f32.mrf.mxu0
    %v945 = vadd.f32 %v861, %v944
    %v946 = vpop.f32.mrf.mxu0
    %947 = vmatprep.mubr.f32.mxu0 0.0
    %948 = vmatmul.mubr.f32.gmra.mxu0 %v812
    %v949 = vpop.f32.mrf.mxu0
    %v950 = vadd.f32 %v861, %v949
    %v951 = vpop.f32.mrf.mxu0
    %952 = vmatprep.mubr.f32.mxu0 0.0
    %953 = vmatmul.mubr.f32.gmra.mxu0 %v813
    %v954 = vpop.f32.mrf.mxu0
    %v955 = vadd.f32 %v861, %v954
    %v956 = vpop.f32.mrf.mxu0
    %957 = vmatprep.mubr.f32.mxu0 0.0
    %958 = vmatmul.mubr.f32.gmra.mxu0 %v814
    %v959 = vpop.f32.mrf.mxu0
    %v960 = vadd.f32 %v861, %v959
    %v961 = vpop.f32.mrf.mxu0
    %962 = vmatprep.mubr.f32.mxu0 0.0
    %963 = vmatmul.mubr.f32.gmra.mxu0 %v815
    %v964 = vpop.f32.mrf.mxu0
    %v965 = vadd.f32 %v861, %v964
    %v966 = vpop.f32.mrf.mxu0
    %967 = vmatprep.mubr.f32.mxu0 0.0
    %968 = vmatmul.mubr.f32.gmra.mxu0 %v816
    %v969 = vpop.f32.mrf.mxu0
    %v970 = vadd.f32 %v861, %v969
    %v971 = vpop.f32.mrf.mxu0
    %972 = vmatprep.mubr.f32.mxu0 0.0
    %973 = vmatmul.mubr.f32.gmra.mxu0 %v817
    %v974 = vpop.f32.mrf.mxu0
    %v975 = vadd.f32 %v861, %v974
    %v976 = vpop.f32.mrf.mxu0
    %977 = vmatprep.mubr.f32.mxu0 0.0
    %978 = vmatmul.mubr.f32.gmra.mxu0 %v818
    %v979 = vpop.f32.mrf.mxu0
    %v980 = vadd.f32 %v861, %v979
    %v981 = vpop.f32.mrf.mxu0
    %982 = vmatprep.mubr.f32.mxu0 0.0
    %983 = vmatmul.mubr.f32.gmra.mxu0 %v819
    %v984 = vpop.f32.mrf.mxu0
    %v985 = vadd.f32 %v861, %v984
    %v986 = vpop.f32.mrf.mxu0
    %987 = vmatprep.mubr.f32.mxu0 0.0
    %988 = vmatmul.mubr.f32.gmra.mxu0 %v820
    %v989 = vpop.f32.mrf.mxu0
    %v990 = vadd.f32 %v861, %v989
    %v991 = vpop.f32.mrf.mxu0
    %992 = vmatprep.mubr.f32.mxu0 0.0
    %993 = vmatmul.mubr.f32.gmra.mxu0 %v821
    %v994 = vpop.f32.mrf.mxu0
    %v995 = vadd.f32 %v861, %v994
    %v996 = vpop.f32.mrf.mxu0
    %997 = vmatprep.mubr.f32.mxu0 0.0
    %998 = vmatmul.mubr.f32.gmra.mxu0 %v822
    %v999 = vpop.f32.mrf.mxu0
    %v1000 = vadd.f32 %v861, %v999
    %v1001 = vpop.f32.mrf.mxu0
    %1002 = vmatprep.mubr.f32.mxu0 0.0
    %1003 = vmatmul.mubr.f32.gmra.mxu0 %v823
    %v1004 = vpop.f32.mrf.mxu0
    %v1005 = vadd.f32 %v861, %v1004
    %v1006 = vpop.f32.mrf.mxu0
    %1007 = vmatprep.mubr.f32.mxu0 0.0
    %1008 = vmatmul.mubr.f32.gmra.mxu0 %v824
    %v1009 = vpop.f32.mrf.mxu0
    %v1010 = vadd.f32 %v861, %v1009
    %v1011 = vpop.f32.mrf.mxu0
    %1012 = vmatprep.mubr.f32.mxu0 0.0
    %1013 = vmatmul.mubr.f32.gmra.mxu0 %v825
    %v1014 = vpop.f32.mrf.mxu0
    %v1015 = vadd.f32 %v861, %v1014
    %v1016 = vpop.f32.mrf.mxu0
    %1017 = vmatprep.mubr.f32.mxu0 0.0
    %1018 = vmatmul.mubr.f32.gmra.mxu0 %v826
    %v1019 = vpop.f32.mrf.mxu0
    %v1020 = vadd.f32 %v861, %v1019
    %v1021 = vpop.f32.mrf.mxu0
    %1022 = vmatprep.mubr.f32.mxu0 0.0
    %1023 = vmatmul.mubr.f32.gmra.mxu0 %v827
    %v1024 = vpop.f32.mrf.mxu0
    %v1025 = vadd.f32 %v861, %v1024
    %v1026 = vpop.f32.mrf.mxu0
    %1027 = vmatprep.mubr.f32.mxu0 0.0
    %1028 = vmatmul.mubr.f32.gmra.mxu0 %v828
    %v1029 = vpop.f32.mrf.mxu0
    %v1030 = vadd.f32 %v861, %v1029
    %v1031 = vpop.f32.mrf.mxu0
    %1032 = vmatprep.mubr.f32.mxu0 0.0
    %1033 = vmatmul.mubr.f32.gmra.mxu0 %v829
    %v1034 = vpop.f32.mrf.mxu0
    %v1035 = vadd.f32 %v861, %v1034
    %v1036 = vpop.f32.mrf.mxu0
    %1037 = vmatprep.mubr.f32.mxu0 0.0
    %1038 = vmatmul.mubr.f32.gmra.mxu0 %v830
    %v1039 = vpop.f32.mrf.mxu0
    %v1040 = vadd.f32 %v861, %v1039
    %v1041 = vpop.f32.mrf.mxu0
    %1042 = vmatprep.mubr.f32.mxu0 0.0
    %1043 = vmatmul.mubr.f32.gmra.mxu0 %v831
    %v1044 = vpop.f32.mrf.mxu0
    %v1045 = vadd.f32 %v861, %v1044
    %v1046 = vpop.f32.mrf.mxu0
    %1047 = vmatprep.mubr.f32.mxu0 0.0
    %1048 = vmatmul.mubr.f32.gmra.mxu0 %v832
    %v1049 = vpop.f32.mrf.mxu0
    %v1050 = vadd.f32 %v861, %v1049
    %v1051 = vpop.f32.mrf.mxu0
    %1052 = vmatprep.mubr.f32.mxu0 0.0
    %1053 = vmatmul.mubr.f32.gmra.mxu0 %v833
    %v1054 = vpop.f32.mrf.mxu0
    %v1055 = vadd.f32 %v861, %v1054
    %v1056 = vpop.f32.mrf.mxu0
    %1057 = vmatprep.mubr.f32.mxu0 0.0
    %1058 = vmatmul.mubr.f32.gmra.mxu0 %v834
    %v1059 = vpop.f32.mrf.mxu0
    %v1060 = vadd.f32 %v861, %v1059
    %v1061 = vpop.f32.mrf.mxu0
    %1062 = vmatprep.mubr.f32.mxu0 0.0
    %1063 = vmatmul.mubr.f32.gmra.mxu0 %v835
    %v1064 = vpop.f32.mrf.mxu0
    %v1065 = vadd.f32 %v861, %v1064
    %v1066 = vpop.f32.mrf.mxu0
    %1067 = vmatprep.mubr.f32.mxu0 0.0
    %1068 = vmatmul.mubr.f32.gmra.mxu0 %v836
    %v1069 = vpop.f32.mrf.mxu0
    %v1070 = vadd.f32 %v861, %v1069
    %v1071 = vpop.f32.mrf.mxu0
    %1072 = vmatprep.mubr.f32.mxu0 0.0
    %1073 = vmatmul.mubr.f32.gmra.mxu0 %v837
    %v1074 = vpop.f32.mrf.mxu0
    %v1075 = vadd.f32 %v861, %v1074
    %v1076 = vpop.f32.mrf.mxu0
    %1077 = vmatprep.mubr.f32.mxu0 0.0
    %1078 = vmatmul.mubr.f32.gmra.mxu0 %v838
    %v1079 = vpop.f32.mrf.mxu0
    %v1080 = vadd.f32 %v861, %v1079
    %v1081 = vpop.f32.mrf.mxu0
    %1082 = vmatprep.mubr.f32.mxu0 0.0
    %1083 = vmatmul.mubr.f32.gmra.mxu0 %v839
    %v1084 = vpop.f32.mrf.mxu0
    %v1085 = vadd.f32 %v861, %v1084
    %v1086 = vpop.f32.mrf.mxu0
    %1087 = vdwg.mxu0
    %v1088 = vld [vmem:[%s1] sm:$0xff]
    %v1089 = vld [vmem:[%s1 + $0x8] sm:$0xff]
    %v1090 = vld [vmem:[%s1 + $0x10] sm:$0xff]
    %v1091 = vld [vmem:[%s1 + $0x18] sm:$0xff]
    %v1092 = vld [vmem:[%s1 + $0x20] sm:$0xff]
    %v1093 = vld [vmem:[%s1 + $0x28] sm:$0xff]
    %v1094 = vld [vmem:[%s1 + $0x30] sm:$0xff]
    %v1095 = vld [vmem:[%s1 + $0x38] sm:$0xff]
    %v1096 = vld [vmem:[%s1 + $0x40] sm:$0xff]
    %v1097 = vld [vmem:[%s1 + $0x48] sm:$0xff]
    %v1098 = vld [vmem:[%s1 + $0x50] sm:$0xff]
    %v1099 = vld [vmem:[%s1 + $0x58] sm:$0xff]
    %v1100 = vld [vmem:[%s1 + $0x60] sm:$0xff]
    %v1101 = vld [vmem:[%s1 + $0x68] sm:$0xff]
    %v1102 = vld [vmem:[%s1 + $0x70] sm:$0xff]
    %v1103 = vld [vmem:[%s1 + $0x78] sm:$0xff]
    %v1104 = vld [vmem:[%s1 + $0x80] sm:$0xff]
    %v1105 = vld [vmem:[%s1 + $0x88] sm:$0xff]
    %v1106 = vld [vmem:[%s1 + $0x90] sm:$0xff]
    %v1107 = vld [vmem:[%s1 + $0x98] sm:$0xff]
    %v1108 = vld [vmem:[%s1 + $0xa0] sm:$0xff]
    %v1109 = vld [vmem:[%s1 + $0xa8] sm:$0xff]
    %v1110 = vld [vmem:[%s1 + $0xb0] sm:$0xff]
    %v1111 = vld [vmem:[%s1 + $0xb8] sm:$0xff]
    %v1112 = vld [vmem:[%s1 + $0xc0] sm:$0xff]
    %v1113 = vld [vmem:[%s1 + $0xc8] sm:$0xff]
    %v1114 = vld [vmem:[%s1 + $0xd0] sm:$0xff]
    %v1115 = vld [vmem:[%s1 + $0xd8] sm:$0xff]
    %v1116 = vld [vmem:[%s1 + $0xe0] sm:$0xff]
    %v1117 = vld [vmem:[%s1 + $0xe8] sm:$0xff]
    %v1118 = vld [vmem:[%s1 + $0xf0] sm:$0xff]
    %v1119 = vld [vmem:[%s1 + $0xf8] sm:$0xff]
    %v1120 = vadd.f32 %v930, %v1088
    %v1121 = vadd.f32 %v935, %v1089
    %v1122 = vadd.f32 %v940, %v1090
    %v1123 = vadd.f32 %v945, %v1091
    %v1124 = vadd.f32 %v950, %v1092
    %v1125 = vadd.f32 %v955, %v1093
    %v1126 = vadd.f32 %v960, %v1094
    %v1127 = vadd.f32 %v965, %v1095
    %v1128 = vadd.f32 %v970, %v1096
    %v1129 = vadd.f32 %v975, %v1097
    %v1130 = vadd.f32 %v980, %v1098
    %v1131 = vadd.f32 %v985, %v1099
    %v1132 = vadd.f32 %v990, %v1100
    %v1133 = vadd.f32 %v995, %v1101
    %v1134 = vadd.f32 %v1000, %v1102
    %v1135 = vadd.f32 %v1005, %v1103
    %v1136 = vadd.f32 %v1010, %v1104
    %v1137 = vadd.f32 %v1015, %v1105
    %v1138 = vadd.f32 %v1020, %v1106
    %v1139 = vadd.f32 %v1025, %v1107
    %v1140 = vadd.f32 %v1030, %v1108
    %v1141 = vadd.f32 %v1035, %v1109
    %v1142 = vadd.f32 %v1040, %v1110
    %v1143 = vadd.f32 %v1045, %v1111
    %v1144 = vadd.f32 %v1050, %v1112
    %v1145 = vadd.f32 %v1055, %v1113
    %v1146 = vadd.f32 %v1060, %v1114
    %v1147 = vadd.f32 %v1065, %v1115
    %v1148 = vadd.f32 %v1070, %v1116
    %v1149 = vadd.f32 %v1075, %v1117
    %v1150 = vadd.f32 %v1080, %v1118
    %v1151 = vadd.f32 %v1085, %v1119
    %1152 = vmax.xlane.f32.xlu0 %v1120
    %v1153 = vpop.xlane.xlu0 %1152
    %1154 = vmax.xlane.f32.xlu0 %v1121
    %v1155 = vpop.xlane.xlu0 %1154
    %1156 = vmax.xlane.f32.xlu0 %v1122
    %v1157 = vpop.xlane.xlu0 %1156
    %1158 = vmax.xlane.f32.xlu0 %v1123
    %v1159 = vpop.xlane.xlu0 %1158
    %1160 = vmax.xlane.f32.xlu0 %v1124
    %v1161 = vpop.xlane.xlu0 %1160
    %1162 = vmax.xlane.f32.xlu0 %v1125
    %v1163 = vpop.xlane.xlu0 %1162
    %1164 = vmax.xlane.f32.xlu0 %v1126
    %v1165 = vpop.xlane.xlu0 %1164
    %1166 = vmax.xlane.f32.xlu0 %v1127
    %v1167 = vpop.xlane.xlu0 %1166
    %1168 = vmax.xlane.f32.xlu0 %v1128
    %v1169 = vpop.xlane.xlu0 %1168
    %1170 = vmax.xlane.f32.xlu0 %v1129
    %v1171 = vpop.xlane.xlu0 %1170
    %1172 = vmax.xlane.f32.xlu0 %v1130
    %v1173 = vpop.xlane.xlu0 %1172
    %1174 = vmax.xlane.f32.xlu0 %v1131
    %v1175 = vpop.xlane.xlu0 %1174
    %1176 = vmax.xlane.f32.xlu0 %v1132
    %v1177 = vpop.xlane.xlu0 %1176
    %1178 = vmax.xlane.f32.xlu0 %v1133
    %v1179 = vpop.xlane.xlu0 %1178
    %1180 = vmax.xlane.f32.xlu0 %v1134
    %v1181 = vpop.xlane.xlu0 %1180
    %1182 = vmax.xlane.f32.xlu0 %v1135
    %v1183 = vpop.xlane.xlu0 %1182
    %1184 = vmax.xlane.f32.xlu0 %v1136
    %v1185 = vpop.xlane.xlu0 %1184
    %1186 = vmax.xlane.f32.xlu0 %v1137
    %v1187 = vpop.xlane.xlu0 %1186
    %1188 = vmax.xlane.f32.xlu0 %v1138
    %v1189 = vpop.xlane.xlu0 %1188
    %1190 = vmax.xlane.f32.xlu0 %v1139
    %v1191 = vpop.xlane.xlu0 %1190
    %1192 = vmax.xlane.f32.xlu0 %v1140
    %v1193 = vpop.xlane.xlu0 %1192
    %1194 = vmax.xlane.f32.xlu0 %v1141
    %v1195 = vpop.xlane.xlu0 %1194
    %1196 = vmax.xlane.f32.xlu0 %v1142
    %v1197 = vpop.xlane.xlu0 %1196
    %1198 = vmax.xlane.f32.xlu0 %v1143
    %v1199 = vpop.xlane.xlu0 %1198
    %1200 = vmax.xlane.f32.xlu0 %v1144
    %v1201 = vpop.xlane.xlu0 %1200
    %1202 = vmax.xlane.f32.xlu0 %v1145
    %v1203 = vpop.xlane.xlu0 %1202
    %1204 = vmax.xlane.f32.xlu0 %v1146
    %v1205 = vpop.xlane.xlu0 %1204
    %1206 = vmax.xlane.f32.xlu0 %v1147
    %v1207 = vpop.xlane.xlu0 %1206
    %1208 = vmax.xlane.f32.xlu0 %v1148
    %v1209 = vpop.xlane.xlu0 %1208
    %1210 = vmax.xlane.f32.xlu0 %v1149
    %v1211 = vpop.xlane.xlu0 %1210
    %1212 = vmax.xlane.f32.xlu0 %v1150
    %v1213 = vpop.xlane.xlu0 %1212
    %1214 = vmax.xlane.f32.xlu0 %v1151
    %v1215 = vpop.xlane.xlu0 %1214
    %v1216 = vsub.f32 %v1120, %v1153
    %v1217 = vsub.f32 %v1121, %v1155
    %v1218 = vsub.f32 %v1122, %v1157
    %v1219 = vsub.f32 %v1123, %v1159
    %v1220 = vsub.f32 %v1124, %v1161
    %v1221 = vsub.f32 %v1125, %v1163
    %v1222 = vsub.f32 %v1126, %v1165
    %v1223 = vsub.f32 %v1127, %v1167
    %v1224 = vsub.f32 %v1128, %v1169
    %v1225 = vsub.f32 %v1129, %v1171
    %v1226 = vsub.f32 %v1130, %v1173
    %v1227 = vsub.f32 %v1131, %v1175
    %v1228 = vsub.f32 %v1132, %v1177
    %v1229 = vsub.f32 %v1133, %v1179
    %v1230 = vsub.f32 %v1134, %v1181
    %v1231 = vsub.f32 %v1135, %v1183
    %v1232 = vsub.f32 %v1136, %v1185
    %v1233 = vsub.f32 %v1137, %v1187
    %v1234 = vsub.f32 %v1138, %v1189
    %v1235 = vsub.f32 %v1139, %v1191
    %v1236 = vsub.f32 %v1140, %v1193
    %v1237 = vsub.f32 %v1141, %v1195
    %v1238 = vsub.f32 %v1142, %v1197
    %v1239 = vsub.f32 %v1143, %v1199
    %v1240 = vsub.f32 %v1144, %v1201
    %v1241 = vsub.f32 %v1145, %v1203
    %v1242 = vsub.f32 %v1146, %v1205
    %v1243 = vsub.f32 %v1147, %v1207
    %v1244 = vsub.f32 %v1148, %v1209
    %v1245 = vsub.f32 %v1149, %v1211
    %v1246 = vsub.f32 %v1150, %v1213
    %v1247 = vsub.f32 %v1151, %v1215
    %v1248 = vmul.f32 %v1216, 1.442695
    %v1249 = vpow.pop %v1248
    %v1250 = vmul.f32 %v1217, 1.442695
    %v1251 = vpow.pop %v1250
    %v1252 = vmul.f32 %v1218, 1.442695
    %v1253 = vpow.pop %v1252
    %v1254 = vmul.f32 %v1219, 1.442695
    %v1255 = vpow.pop %v1254
    %v1256 = vmul.f32 %v1220, 1.442695
    %v1257 = vpow.pop %v1256
    %v1258 = vmul.f32 %v1221, 1.442695
    %v1259 = vpow.pop %v1258
    %v1260 = vmul.f32 %v1222, 1.442695
    %v1261 = vpow.pop %v1260
    %v1262 = vmul.f32 %v1223, 1.442695
    %v1263 = vpow.pop %v1262
    %v1264 = vmul.f32 %v1224, 1.442695
    %v1265 = vpow.pop %v1264
    %v1266 = vmul.f32 %v1225, 1.442695
    %v1267 = vpow.pop %v1266
    %v1268 = vmul.f32 %v1226, 1.442695
    %v1269 = vpow.pop %v1268
    %v1270 = vmul.f32 %v1227, 1.442695
    %v1271 = vpow.pop %v1270
    %v1272 = vmul.f32 %v1228, 1.442695
    %v1273 = vpow.pop %v1272
    %v1274 = vmul.f32 %v1229, 1.442695
    %v1275 = vpow.pop %v1274
    %v1276 = vmul.f32 %v1230, 1.442695
    %v1277 = vpow.pop %v1276
    %v1278 = vmul.f32 %v1231, 1.442695
    %v1279 = vpow.pop %v1278
    %v1280 = vmul.f32 %v1232, 1.442695
    %v1281 = vpow.pop %v1280
    %v1282 = vmul.f32 %v1233, 1.442695
    %v1283 = vpow.pop %v1282
    %v1284 = vmul.f32 %v1234, 1.442695
    %v1285 = vpow.pop %v1284
    %v1286 = vmul.f32 %v1235, 1.442695
    %v1287 = vpow.pop %v1286
    %v1288 = vmul.f32 %v1236, 1.442695
    %v1289 = vpow.pop %v1288
    %v1290 = vmul.f32 %v1237, 1.442695
    %v1291 = vpow.pop %v1290
    %v1292 = vmul.f32 %v1238, 1.442695
    %v1293 = vpow.pop %v1292
    %v1294 = vmul.f32 %v1239, 1.442695
    %v1295 = vpow.pop %v1294
    %v1296 = vmul.f32 %v1240, 1.442695
    %v1297 = vpow.pop %v1296
    %v1298 = vmul.f32 %v1241, 1.442695
    %v1299 = vpow.pop %v1298
    %v1300 = vmul.f32 %v1242, 1.442695
    %v1301 = vpow.pop %v1300
    %v1302 = vmul.f32 %v1243, 1.442695
    %v1303 = vpow.pop %v1302
    %v1304 = vmul.f32 %v1244, 1.442695
    %v1305 = vpow.pop %v1304
    %v1306 = vmul.f32 %v1245, 1.442695
    %v1307 = vpow.pop %v1306
    %v1308 = vmul.f32 %v1246, 1.442695
    %v1309 = vpow.pop %v1308
    %v1310 = vmul.f32 %v1247, 1.442695
    %v1311 = vpow.pop %v1310
    %1312 = vadd.xlane.f32.xlu0 %v1249
    %v1313 = vpop.xlane.xlu0 %1312
    %1314 = vadd.xlane.f32.xlu0 %v1251
    %v1315 = vpop.xlane.xlu0 %1314
    %1316 = vadd.xlane.f32.xlu0 %v1253
    %v1317 = vpop.xlane.xlu0 %1316
    %1318 = vadd.xlane.f32.xlu0 %v1255
    %v1319 = vpop.xlane.xlu0 %1318
    %1320 = vadd.xlane.f32.xlu0 %v1257
    %v1321 = vpop.xlane.xlu0 %1320
    %1322 = vadd.xlane.f32.xlu0 %v1259
    %v1323 = vpop.xlane.xlu0 %1322
    %1324 = vadd.xlane.f32.xlu0 %v1261
    %v1325 = vpop.xlane.xlu0 %1324
    %1326 = vadd.xlane.f32.xlu0 %v1263
    %v1327 = vpop.xlane.xlu0 %1326
    %1328 = vadd.xlane.f32.xlu0 %v1265
    %v1329 = vpop.xlane.xlu0 %1328
    %1330 = vadd.xlane.f32.xlu0 %v1267
    %v1331 = vpop.xlane.xlu0 %1330
    %1332 = vadd.xlane.f32.xlu0 %v1269
    %v1333 = vpop.xlane.xlu0 %1332
    %1334 = vadd.xlane.f32.xlu0 %v1271
    %v1335 = vpop.xlane.xlu0 %1334
    %1336 = vadd.xlane.f32.xlu0 %v1273
    %v1337 = vpop.xlane.xlu0 %1336
    %1338 = vadd.xlane.f32.xlu0 %v1275
    %v1339 = vpop.xlane.xlu0 %1338
    %1340 = vadd.xlane.f32.xlu0 %v1277
    %v1341 = vpop.xlane.xlu0 %1340
    %1342 = vadd.xlane.f32.xlu0 %v1279
    %v1343 = vpop.xlane.xlu0 %1342
    %1344 = vadd.xlane.f32.xlu0 %v1281
    %v1345 = vpop.xlane.xlu0 %1344
    %1346 = vadd.xlane.f32.xlu0 %v1283
    %v1347 = vpop.xlane.xlu0 %1346
    %1348 = vadd.xlane.f32.xlu0 %v1285
    %v1349 = vpop.xlane.xlu0 %1348
    %1350 = vadd.xlane.f32.xlu0 %v1287
    %v1351 = vpop.xlane.xlu0 %1350
    %1352 = vadd.xlane.f32.xlu0 %v1289
    %v1353 = vpop.xlane.xlu0 %1352
    %1354 = vadd.xlane.f32.xlu0 %v1291
    %v1355 = vpop.xlane.xlu0 %1354
    %1356 = vadd.xlane.f32.xlu0 %v1293
    %v1357 = vpop.xlane.xlu0 %1356
    %1358 = vadd.xlane.f32.xlu0 %v1295
    %v1359 = vpop.xlane.xlu0 %1358
    %1360 = vadd.xlane.f32.xlu0 %v1297
    %v1361 = vpop.xlane.xlu0 %1360
    %1362 = vadd.xlane.f32.xlu0 %v1299
    %v1363 = vpop.xlane.xlu0 %1362
    %1364 = vadd.xlane.f32.xlu0 %v1301
    %v1365 = vpop.xlane.xlu0 %1364
    %1366 = vadd.xlane.f32.xlu0 %v1303
    %v1367 = vpop.xlane.xlu0 %1366
    %1368 = vadd.xlane.f32.xlu0 %v1305
    %v1369 = vpop.xlane.xlu0 %1368
    %1370 = vadd.xlane.f32.xlu0 %v1307
    %v1371 = vpop.xlane.xlu0 %1370
    %1372 = vadd.xlane.f32.xlu0 %v1309
    %v1373 = vpop.xlane.xlu0 %1372
    %1374 = vadd.xlane.f32.xlu0 %v1311
    %v1375 = vpop.xlane.xlu0 %1374
    %v1376 = vrcp.pop %v1313
    %v1377 = vmul.f32 10.0, %v1376
    %v1378 = vrcp.pop %v1315
    %v1379 = vmul.f32 10.0, %v1378
    %v1380 = vrcp.pop %v1317
    %v1381 = vmul.f32 10.0, %v1380
    %v1382 = vrcp.pop %v1319
    %v1383 = vmul.f32 10.0, %v1382
    %v1384 = vrcp.pop %v1321
    %v1385 = vmul.f32 10.0, %v1384
    %v1386 = vrcp.pop %v1323
    %v1387 = vmul.f32 10.0, %v1386
    %v1388 = vrcp.pop %v1325
    %v1389 = vmul.f32 10.0, %v1388
    %v1390 = vrcp.pop %v1327
    %v1391 = vmul.f32 10.0, %v1390
    %v1392 = vrcp.pop %v1329
    %v1393 = vmul.f32 10.0, %v1392
    %v1394 = vrcp.pop %v1331
    %v1395 = vmul.f32 10.0, %v1394
    %v1396 = vrcp.pop %v1333
    %v1397 = vmul.f32 10.0, %v1396
    %v1398 = vrcp.pop %v1335
    %v1399 = vmul.f32 10.0, %v1398
    %v1400 = vrcp.pop %v1337
    %v1401 = vmul.f32 10.0, %v1400
    %v1402 = vrcp.pop %v1339
    %v1403 = vmul.f32 10.0, %v1402
    %v1404 = vrcp.pop %v1341
    %v1405 = vmul.f32 10.0, %v1404
    %v1406 = vrcp.pop %v1343
    %v1407 = vmul.f32 10.0, %v1406
    %v1408 = vrcp.pop %v1345
    %v1409 = vmul.f32 10.0, %v1408
    %v1410 = vrcp.pop %v1347
    %v1411 = vmul.f32 10.0, %v1410
    %v1412 = vrcp.pop %v1349
    %v1413 = vmul.f32 10.0, %v1412
    %v1414 = vrcp.pop %v1351
    %v1415 = vmul.f32 10.0, %v1414
    %v1416 = vrcp.pop %v1353
    %v1417 = vmul.f32 10.0, %v1416
    %v1418 = vrcp.pop %v1355
    %v1419 = vmul.f32 10.0, %v1418
    %v1420 = vrcp.pop %v1357
    %v1421 = vmul.f32 10.0, %v1420
    %v1422 = vrcp.pop %v1359
    %v1423 = vmul.f32 10.0, %v1422
    %v1424 = vrcp.pop %v1361
    %v1425 = vmul.f32 10.0, %v1424
    %v1426 = vrcp.pop %v1363
    %v1427 = vmul.f32 10.0, %v1426
    %v1428 = vrcp.pop %v1365
    %v1429 = vmul.f32 10.0, %v1428
    %v1430 = vrcp.pop %v1367
    %v1431 = vmul.f32 10.0, %v1430
    %v1432 = vrcp.pop %v1369
    %v1433 = vmul.f32 10.0, %v1432
    %v1434 = vrcp.pop %v1371
    %v1435 = vmul.f32 10.0, %v1434
    %v1436 = vrcp.pop %v1373
    %v1437 = vmul.f32 10.0, %v1436
    %v1438 = vrcp.pop %v1375
    %v1439 = vmul.f32 10.0, %v1438
    %v1440 = vmul.f32 %v1249, %v1377
    %v1441 = vmul.f32 %v1251, %v1379
    %v1442 = vmul.f32 %v1253, %v1381
    %v1443 = vmul.f32 %v1255, %v1383
    %v1444 = vmul.f32 %v1257, %v1385
    %v1445 = vmul.f32 %v1259, %v1387
    %v1446 = vmul.f32 %v1261, %v1389
    %v1447 = vmul.f32 %v1263, %v1391
    %v1448 = vmul.f32 %v1265, %v1393
    %v1449 = vmul.f32 %v1267, %v1395
    %v1450 = vmul.f32 %v1269, %v1397
    %v1451 = vmul.f32 %v1271, %v1399
    %v1452 = vmul.f32 %v1273, %v1401
    %v1453 = vmul.f32 %v1275, %v1403
    %v1454 = vmul.f32 %v1277, %v1405
    %v1455 = vmul.f32 %v1279, %v1407
    %v1456 = vmul.f32 %v1281, %v1409
    %v1457 = vmul.f32 %v1283, %v1411
    %v1458 = vmul.f32 %v1285, %v1413
    %v1459 = vmul.f32 %v1287, %v1415
    %v1460 = vmul.f32 %v1289, %v1417
    %v1461 = vmul.f32 %v1291, %v1419
    %v1462 = vmul.f32 %v1293, %v1421
    %v1463 = vmul.f32 %v1295, %v1423
    %v1464 = vmul.f32 %v1297, %v1425
    %v1465 = vmul.f32 %v1299, %v1427
    %v1466 = vmul.f32 %v1301, %v1429
    %v1467 = vmul.f32 %v1303, %v1431
    %v1468 = vmul.f32 %v1305, %v1433
    %v1469 = vmul.f32 %v1307, %v1435
    %v1470 = vmul.f32 %v1309, %v1437
    %v1471 = vmul.f32 %v1311, %v1439
    %v1472 = vpack.c.bf16 %v1441, %v1440
    %v1473 = vpack.c.bf16 %v1443, %v1442
    %v1474 = vpack.c.bf16 %v1445, %v1444
    %v1475 = vpack.c.bf16 %v1447, %v1446
    %v1476 = vpack.c.bf16 %v1449, %v1448
    %v1477 = vpack.c.bf16 %v1451, %v1450
    %v1478 = vpack.c.bf16 %v1453, %v1452
    %v1479 = vpack.c.bf16 %v1455, %v1454
    %v1480 = vpack.c.bf16 %v1457, %v1456
    %v1481 = vpack.c.bf16 %v1459, %v1458
    %v1482 = vpack.c.bf16 %v1461, %v1460
    %v1483 = vpack.c.bf16 %v1463, %v1462
    %v1484 = vpack.c.bf16 %v1465, %v1464
    %v1485 = vpack.c.bf16 %v1467, %v1466
    %v1486 = vpack.c.bf16 %v1469, %v1468
    %v1487 = vpack.c.bf16 %v1471, %v1470
    %v1488 = vld [vmem:[#allocation5] sm:$0xf]
    %v1489 = vld [vmem:[#allocation5 + $0x4] sm:$0xf]
    %v1490 = vld [vmem:[#allocation5 + $0x8] sm:$0xf]
    %v1491 = vld [vmem:[#allocation5 + $0xc] sm:$0xf]
    %v1492 = vld [vmem:[#allocation5 + $0x10] sm:$0xf]
    %v1493 = vld [vmem:[#allocation5 + $0x14] sm:$0xf]
    %v1494 = vld [vmem:[#allocation5 + $0x18] sm:$0xf]
    %v1495 = vld [vmem:[#allocation5 + $0x1c] sm:$0xf]
    %v1496 = vld [vmem:[#allocation5 + $0x20] sm:$0xf]
    %v1497 = vld [vmem:[#allocation5 + $0x24] sm:$0xf]
    %v1498 = vld [vmem:[#allocation5 + $0x28] sm:$0xf]
    %v1499 = vld [vmem:[#allocation5 + $0x2c] sm:$0xf]
    %v1500 = vld [vmem:[#allocation5 + $0x30] sm:$0xf]
    %v1501 = vld [vmem:[#allocation5 + $0x34] sm:$0xf]
    %v1502 = vld [vmem:[#allocation5 + $0x38] sm:$0xf]
    %v1503 = vld [vmem:[#allocation5 + $0x3c] sm:$0xf]
    %v1504 = vld [vmem:[%s9] sm:$0x1]
    %v1506 = vlaneseq
    %v1507 = vshrl.u32 %v1506, 7
    %v1508 = vsub.s32 0, %v1507
    %v1509 = vrot.slane %v1504, %v1508
    %v1527 = vunpack.c.l.b16 %v1488
    %v1528 = vunpack.c.l.b16 %v1489
    %v1529 = vunpack.c.l.b16 %v1490
    %v1530 = vunpack.c.l.b16 %v1491
    %v1531 = vunpack.c.l.b16 %v1492
    %v1532 = vunpack.c.l.b16 %v1493
    %v1533 = vunpack.c.l.b16 %v1494
    %v1534 = vunpack.c.l.b16 %v1495
    %v1535 = vunpack.c.l.b16 %v1496
    %v1536 = vunpack.c.l.b16 %v1497
    %v1537 = vunpack.c.l.b16 %v1498
    %v1538 = vunpack.c.l.b16 %v1499
    %v1539 = vunpack.c.l.b16 %v1500
    %v1540 = vunpack.c.l.b16 %v1501
    %v1541 = vunpack.c.l.b16 %v1502
    %v1542 = vunpack.c.l.b16 %v1503
    %v1543 = vpack.c.b16 %v1528, %v1527
    %v1544 = vpack.c.b16 %v1530, %v1529
    %v1545 = vpack.c.b16 %v1532, %v1531
    %v1546 = vpack.c.b16 %v1534, %v1533
    %v1547 = vpack.c.b16 %v1536, %v1535
    %v1548 = vpack.c.b16 %v1538, %v1537
    %v1549 = vpack.c.b16 %v1540, %v1539
    %v1550 = vpack.c.b16 %v1542, %v1541
    %1559 = vmatprep.subr.bf16.mxu0 0
    %1560 = vmatpush1.bf16.msra.mxu0 %v1550
    %1561 = vmatprep.subr.bf16.mxu0 0
    %1562 = vmatpush1.bf16.msra.mxu0 %v1549
    %1563 = vmatprep.subr.bf16.mxu0 0
    %1564 = vmatpush1.bf16.msra.mxu0 %v1548
    %1565 = vmatprep.subr.bf16.mxu0 0
    %1566 = vmatpush1.bf16.msra.mxu0 %v1547
    %1567 = vmatprep.subr.bf16.mxu0 0
    %1568 = vmatpush1.bf16.msra.mxu0 %v1546
    %1569 = vmatprep.subr.bf16.mxu0 0
    %1570 = vmatpush1.bf16.msra.mxu0 %v1545
    %1571 = vmatprep.subr.bf16.mxu0 0
    %1572 = vmatpush1.bf16.msra.mxu0 %v1544
    %1573 = vmatprep.subr.bf16.mxu0 0
    %1574 = vmatpush1.bf16.msra.mxu0 %v1543
    %1575 = vmatprep.subr.bf16.mxu0 0
    %1576 = vmatpush2.bf16.msra.mxu0 0
    %1577 = vmatprep.subr.bf16.mxu0 0
    %1578 = vmatpush2.bf16.msra.mxu0 0
    %1579 = vmatprep.subr.bf16.mxu0 0
    %1580 = vmatpush2.bf16.msra.mxu0 0
    %1581 = vmatprep.subr.bf16.mxu0 0
    %1582 = vmatpush2.bf16.msra.mxu0 0
    %1583 = vmatprep.subr.bf16.mxu0 0
    %1584 = vmatpush2.bf16.msra.mxu0 0
    %1585 = vmatprep.subr.bf16.mxu0 0
    %1586 = vmatpush2.bf16.msra.mxu0 0
    %1587 = vmatprep.subr.bf16.mxu0 0
    %1588 = vmatpush2.bf16.msra.mxu0 0
    %1589 = vmatprep.subr.bf16.mxu0 0
    %1590 = vmatpush2.bf16.msra.mxu0 0
    %1591 = vmatprep.mubr.bf16.mxu0 0
    %1592 = vmatmul.mubr.bf16.gmra.mxu0 %v1472
    %v1593 = vpop.f32.mrf.mxu0
    %v1594 = vadd.f32 %v1509, %v1593
    %v1595 = vpop.f32.mrf.mxu0
    %v1596 = vpop.f32.mrf.mxu0
    %v1597 = vadd.f32 %v1509, %v1596
    %v1598 = vpop.f32.mrf.mxu0
    %1599 = vmatprep.mubr.bf16.mxu0 0
    %1600 = vmatmul.mubr.bf16.gmra.mxu0 %v1473
    %v1601 = vpop.f32.mrf.mxu0
    %v1602 = vadd.f32 %v1509, %v1601
    %v1603 = vpop.f32.mrf.mxu0
    %v1604 = vpop.f32.mrf.mxu0
    %v1605 = vadd.f32 %v1509, %v1604
    %v1606 = vpop.f32.mrf.mxu0
    %1607 = vmatprep.mubr.bf16.mxu0 0
    %1608 = vmatmul.mubr.bf16.gmra.mxu0 %v1474
    %v1609 = vpop.f32.mrf.mxu0
    %v1610 = vadd.f32 %v1509, %v1609
    %v1611 = vpop.f32.mrf.mxu0
    %v1612 = vpop.f32.mrf.mxu0
    %v1613 = vadd.f32 %v1509, %v1612
    %v1614 = vpop.f32.mrf.mxu0
    %1615 = vmatprep.mubr.bf16.mxu0 0
    %1616 = vmatmul.mubr.bf16.gmra.mxu0 %v1475
    %v1617 = vpop.f32.mrf.mxu0
    %v1618 = vadd.f32 %v1509, %v1617
    %v1619 = vpop.f32.mrf.mxu0
    %v1620 = vpop.f32.mrf.mxu0
    %v1621 = vadd.f32 %v1509, %v1620
    %v1622 = vpop.f32.mrf.mxu0
    %1623 = vmatprep.mubr.bf16.mxu0 0
    %1624 = vmatmul.mubr.bf16.gmra.mxu0 %v1476
    %v1625 = vpop.f32.mrf.mxu0
    %v1626 = vadd.f32 %v1509, %v1625
    %v1627 = vpop.f32.mrf.mxu0
    %v1628 = vpop.f32.mrf.mxu0
    %v1629 = vadd.f32 %v1509, %v1628
    %v1630 = vpop.f32.mrf.mxu0
    %1631 = vmatprep.mubr.bf16.mxu0 0
    %1632 = vmatmul.mubr.bf16.gmra.mxu0 %v1477
    %v1633 = vpop.f32.mrf.mxu0
    %v1634 = vadd.f32 %v1509, %v1633
    %v1635 = vpop.f32.mrf.mxu0
    %v1636 = vpop.f32.mrf.mxu0
    %v1637 = vadd.f32 %v1509, %v1636
    %v1638 = vpop.f32.mrf.mxu0
    %1639 = vmatprep.mubr.bf16.mxu0 0
    %1640 = vmatmul.mubr.bf16.gmra.mxu0 %v1478
    %v1641 = vpop.f32.mrf.mxu0
    %v1642 = vadd.f32 %v1509, %v1641
    %v1643 = vpop.f32.mrf.mxu0
    %v1644 = vpop.f32.mrf.mxu0
    %v1645 = vadd.f32 %v1509, %v1644
    %v1646 = vpop.f32.mrf.mxu0
    %1647 = vmatprep.mubr.bf16.mxu0 0
    %1648 = vmatmul.mubr.bf16.gmra.mxu0 %v1479
    %v1649 = vpop.f32.mrf.mxu0
    %v1650 = vadd.f32 %v1509, %v1649
    %v1651 = vpop.f32.mrf.mxu0
    %v1652 = vpop.f32.mrf.mxu0
    %v1653 = vadd.f32 %v1509, %v1652
    %v1654 = vpop.f32.mrf.mxu0
    %1655 = vmatprep.mubr.bf16.mxu0 0
    %1656 = vmatmul.mubr.bf16.gmra.mxu0 %v1480
    %v1657 = vpop.f32.mrf.mxu0
    %v1658 = vadd.f32 %v1509, %v1657
    %v1659 = vpop.f32.mrf.mxu0
    %v1660 = vpop.f32.mrf.mxu0
    %v1661 = vadd.f32 %v1509, %v1660
    %v1662 = vpop.f32.mrf.mxu0
    %1663 = vmatprep.mubr.bf16.mxu0 0
    %1664 = vmatmul.mubr.bf16.gmra.mxu0 %v1481
    %v1665 = vpop.f32.mrf.mxu0
    %v1666 = vadd.f32 %v1509, %v1665
    %v1667 = vpop.f32.mrf.mxu0
    %v1668 = vpop.f32.mrf.mxu0
    %v1669 = vadd.f32 %v1509, %v1668
    %v1670 = vpop.f32.mrf.mxu0
    %1671 = vmatprep.mubr.bf16.mxu0 0
    %1672 = vmatmul.mubr.bf16.gmra.mxu0 %v1482
    %v1673 = vpop.f32.mrf.mxu0
    %v1674 = vadd.f32 %v1509, %v1673
    %v1675 = vpop.f32.mrf.mxu0
    %v1676 = vpop.f32.mrf.mxu0
    %v1677 = vadd.f32 %v1509, %v1676
    %v1678 = vpop.f32.mrf.mxu0
    %1679 = vmatprep.mubr.bf16.mxu0 0
    %1680 = vmatmul.mubr.bf16.gmra.mxu0 %v1483
    %v1681 = vpop.f32.mrf.mxu0
    %v1682 = vadd.f32 %v1509, %v1681
    %v1683 = vpop.f32.mrf.mxu0
    %v1684 = vpop.f32.mrf.mxu0
    %v1685 = vadd.f32 %v1509, %v1684
    %v1686 = vpop.f32.mrf.mxu0
    %1687 = vmatprep.mubr.bf16.mxu0 0
    %1688 = vmatmul.mubr.bf16.gmra.mxu0 %v1484
    %v1689 = vpop.f32.mrf.mxu0
    %v1690 = vadd.f32 %v1509, %v1689
    %v1691 = vpop.f32.mrf.mxu0
    %v1692 = vpop.f32.mrf.mxu0
    %v1693 = vadd.f32 %v1509, %v1692
    %v1694 = vpop.f32.mrf.mxu0
    %1695 = vmatprep.mubr.bf16.mxu0 0
    %1696 = vmatmul.mubr.bf16.gmra.mxu0 %v1485
    %v1697 = vpop.f32.mrf.mxu0
    %v1698 = vadd.f32 %v1509, %v1697
    %v1699 = vpop.f32.mrf.mxu0
    %v1700 = vpop.f32.mrf.mxu0
    %v1701 = vadd.f32 %v1509, %v1700
    %v1702 = vpop.f32.mrf.mxu0
    %1703 = vmatprep.mubr.bf16.mxu0 0
    %1704 = vmatmul.mubr.bf16.gmra.mxu0 %v1486
    %v1705 = vpop.f32.mrf.mxu0
    %v1706 = vadd.f32 %v1509, %v1705
    %v1707 = vpop.f32.mrf.mxu0
    %v1708 = vpop.f32.mrf.mxu0
    %v1709 = vadd.f32 %v1509, %v1708
    %v1710 = vpop.f32.mrf.mxu0
    %1711 = vmatprep.mubr.bf16.mxu0 0
    %1712 = vmatmul.mubr.bf16.gmra.mxu0 %v1487
    %v1713 = vpop.f32.mrf.mxu0
    %v1714 = vadd.f32 %v1509, %v1713
    %v1715 = vpop.f32.mrf.mxu0
    %v1716 = vpop.f32.mrf.mxu0
    %v1717 = vadd.f32 %v1509, %v1716
    %v1718 = vpop.f32.mrf.mxu0
    %1719 = vdwg.mxu0
    %v1720 = vtanh.pop %v1594
    %v1721 = vtanh.pop %v1597
    %v1722 = vtanh.pop %v1602
    %v1723 = vtanh.pop %v1605
    %v1724 = vtanh.pop %v1610
    %v1725 = vtanh.pop %v1613
    %v1726 = vtanh.pop %v1618
    %v1727 = vtanh.pop %v1621
    %v1728 = vtanh.pop %v1626
    %v1729 = vtanh.pop %v1629
    %v1730 = vtanh.pop %v1634
    %v1731 = vtanh.pop %v1637
    %v1732 = vtanh.pop %v1642
    %v1733 = vtanh.pop %v1645
    %v1734 = vtanh.pop %v1650
    %v1735 = vtanh.pop %v1653
    %v1736 = vtanh.pop %v1658
    %v1737 = vtanh.pop %v1661
    %v1738 = vtanh.pop %v1666
    %v1739 = vtanh.pop %v1669
    %v1740 = vtanh.pop %v1674
    %v1741 = vtanh.pop %v1677
    %v1742 = vtanh.pop %v1682
    %v1743 = vtanh.pop %v1685
    %v1744 = vtanh.pop %v1690
    %v1745 = vtanh.pop %v1693
    %v1746 = vtanh.pop %v1698
    %v1747 = vtanh.pop %v1701
    %v1748 = vtanh.pop %v1706
    %v1749 = vtanh.pop %v1709
    %v1750 = vtanh.pop %v1714
    %v1751 = vtanh.pop %v1717
    %v1752 = vpack.c.bf16 %v1721, %v1720
    %v1753 = vpack.c.bf16 %v1723, %v1722
    %v1754 = vpack.c.bf16 %v1725, %v1724
    %v1755 = vpack.c.bf16 %v1727, %v1726
    %v1756 = vpack.c.bf16 %v1729, %v1728
    %v1757 = vpack.c.bf16 %v1731, %v1730
    %v1758 = vpack.c.bf16 %v1733, %v1732
    %v1759 = vpack.c.bf16 %v1735, %v1734
    %v1760 = vpack.c.bf16 %v1737, %v1736
    %v1761 = vpack.c.bf16 %v1739, %v1738
    %v1762 = vpack.c.bf16 %v1741, %v1740
    %v1763 = vpack.c.bf16 %v1743, %v1742
    %v1764 = vpack.c.bf16 %v1745, %v1744
    %v1765 = vpack.c.bf16 %v1747, %v1746
    %v1766 = vpack.c.bf16 %v1749, %v1748
    %v1767 = vpack.c.bf16 %v1751, %v1750
    %v1768 = vld [vmem:[#allocation7] sm:$0xff]
    %v1769 = vld [vmem:[#allocation7 + $0x8] sm:$0xff]
    %v1770 = vld [vmem:[#allocation7 + $0x10] sm:$0xff]
    %v1771 = vld [vmem:[#allocation7 + $0x18] sm:$0xff]
    %v1772 = vld [vmem:[#allocation7 + $0x20] sm:$0xff]
    %v1773 = vld [vmem:[#allocation7 + $0x28] sm:$0xff]
    %v1774 = vld [vmem:[#allocation7 + $0x30] sm:$0xff]
    %v1775 = vld [vmem:[#allocation7 + $0x38] sm:$0xff]
    %v1776 = vld [vmem:[#allocation7 + $0x40] sm:$0xff]
    %v1777 = vld [vmem:[#allocation7 + $0x48] sm:$0xff]
    %v1778 = vld [vmem:[#allocation7 + $0x50] sm:$0xff]
    %v1779 = vld [vmem:[#allocation7 + $0x58] sm:$0xff]
    %v1780 = vld [vmem:[#allocation7 + $0x60] sm:$0xff]
    %v1781 = vld [vmem:[#allocation7 + $0x68] sm:$0xff]
    %v1782 = vld [vmem:[#allocation7 + $0x70] sm:$0xff]
    %v1783 = vld [vmem:[#allocation7 + $0x78] sm:$0xff]
    %v1784 = vld [vmem:[%s11] sm:$0x3]
    %v1786 = vlaneseq
    %v1787 = vshrl.u32 %v1786, 7
    %v1788 = vsub.s32 0, %v1787
    %v1789 = vrot.slane %v1784, %v1788
    %v1790 = vlaneseq
    %v1791 = vshrl.u32 %v1790, 7
    %v1792 = vsub.s32 1, %v1791
    %v1793 = vrot.slane %v1784, %v1792
    %v1812 = vunpack.c.l.b16 %v1768
    %v1813 = vunpack.c.h.b16 %v1768
    %v1814 = vunpack.c.l.b16 %v1769
    %v1815 = vunpack.c.h.b16 %v1769
    %v1816 = vunpack.c.l.b16 %v1770
    %v1817 = vunpack.c.h.b16 %v1770
    %v1818 = vunpack.c.l.b16 %v1771
    %v1819 = vunpack.c.h.b16 %v1771
    %v1820 = vunpack.c.l.b16 %v1772
    %v1821 = vunpack.c.h.b16 %v1772
    %v1822 = vunpack.c.l.b16 %v1773
    %v1823 = vunpack.c.h.b16 %v1773
    %v1824 = vunpack.c.l.b16 %v1774
    %v1825 = vunpack.c.h.b16 %v1774
    %v1826 = vunpack.c.l.b16 %v1775
    %v1827 = vunpack.c.h.b16 %v1775
    %v1828 = vunpack.c.l.b16 %v1776
    %v1829 = vunpack.c.h.b16 %v1776
    %v1830 = vunpack.c.l.b16 %v1777
    %v1831 = vunpack.c.h.b16 %v1777
    %v1832 = vunpack.c.l.b16 %v1778
    %v1833 = vunpack.c.h.b16 %v1778
    %v1834 = vunpack.c.l.b16 %v1779
    %v1835 = vunpack.c.h.b16 %v1779
    %v1836 = vunpack.c.l.b16 %v1780
    %v1837 = vunpack.c.h.b16 %v1780
    %v1838 = vunpack.c.l.b16 %v1781
    %v1839 = vunpack.c.h.b16 %v1781
    %v1840 = vunpack.c.l.b16 %v1782
    %v1841 = vunpack.c.h.b16 %v1782
    %v1842 = vunpack.c.l.b16 %v1783
    %v1843 = vunpack.c.h.b16 %v1783
    %v1844 = vpack.c.b16 %v1814, %v1812
    %v1845 = vpack.c.b16 %v1815, %v1813
    %v1846 = vpack.c.b16 %v1818, %v1816
    %v1847 = vpack.c.b16 %v1819, %v1817
    %v1848 = vpack.c.b16 %v1822, %v1820
    %v1849 = vpack.c.b16 %v1823, %v1821
    %v1850 = vpack.c.b16 %v1826, %v1824
    %v1851 = vpack.c.b16 %v1827, %v1825
    %v1852 = vpack.c.b16 %v1830, %v1828
    %v1853 = vpack.c.b16 %v1831, %v1829
    %v1854 = vpack.c.b16 %v1834, %v1832
    %v1855 = vpack.c.b16 %v1835, %v1833
    %v1856 = vpack.c.b16 %v1838, %v1836
    %v1857 = vpack.c.b16 %v1839, %v1837
    %v1858 = vpack.c.b16 %v1842, %v1840
    %v1859 = vpack.c.b16 %v1843, %v1841
    %1876 = vmatprep.subr.bf16.mxu0 %v1859
    %1877 = vmatpush1.bf16.msra.mxu0 %v1858
    %1878 = vmatprep.subr.bf16.mxu0 %v1857
    %1879 = vmatpush1.bf16.msra.mxu0 %v1856
    %1880 = vmatprep.subr.bf16.mxu0 %v1855
    %1881 = vmatpush1.bf16.msra.mxu0 %v1854
    %1882 = vmatprep.subr.bf16.mxu0 %v1853
    %1883 = vmatpush1.bf16.msra.mxu0 %v1852
    %1884 = vmatprep.subr.bf16.mxu0 %v1851
    %1885 = vmatpush1.bf16.msra.mxu0 %v1850
    %1886 = vmatprep.subr.bf16.mxu0 %v1849
    %1887 = vmatpush1.bf16.msra.mxu0 %v1848
    %1888 = vmatprep.subr.bf16.mxu0 %v1847
    %1889 = vmatpush1.bf16.msra.mxu0 %v1846
    %1890 = vmatprep.subr.bf16.mxu0 %v1845
    %1891 = vmatpush1.bf16.msra.mxu0 %v1844
    %1892 = vmatprep.subr.bf16.mxu0 0
    %1893 = vmatpush2.bf16.msra.mxu0 0
    %1894 = vmatprep.subr.bf16.mxu0 0
    %1895 = vmatpush2.bf16.msra.mxu0 0
    %1896 = vmatprep.subr.bf16.mxu0 0
    %1897 = vmatpush2.bf16.msra.mxu0 0
    %1898 = vmatprep.subr.bf16.mxu0 0
    %1899 = vmatpush2.bf16.msra.mxu0 0
    %1900 = vmatprep.subr.bf16.mxu0 0
    %1901 = vmatpush2.bf16.msra.mxu0 0
    %1902 = vmatprep.subr.bf16.mxu0 0
    %1903 = vmatpush2.bf16.msra.mxu0 0
    %1904 = vmatprep.subr.bf16.mxu0 0
    %1905 = vmatpush2.bf16.msra.mxu0 0
    %1906 = vmatprep.subr.bf16.mxu0 0
    %1907 = vmatpush2.bf16.msra.mxu0 0
    %1908 = vmatprep.mubr.bf16.mxu0 0
    %1909 = vmatmul.mubr.bf16.gmra.mxu0 %v1752
    %v1910 = vpop.f32.mrf.mxu0
    %v1911 = vadd.f32 %v1789, %v1910
    %v1912 = vpop.f32.mrf.mxu0
    %v1913 = vadd.f32 %v1793, %v1912
    %v1914 = vpop.f32.mrf.mxu0
    %v1915 = vadd.f32 %v1789, %v1914
    %v1916 = vpop.f32.mrf.mxu0
    %v1917 = vadd.f32 %v1793, %v1916
    %1918 = vmatprep.mubr.bf16.mxu0 0
    %1919 = vmatmul.mubr.bf16.gmra.mxu0 %v1753
    %v1920 = vpop.f32.mrf.mxu0
    %v1921 = vadd.f32 %v1789, %v1920
    %v1922 = vpop.f32.mrf.mxu0
    %v1923 = vadd.f32 %v1793, %v1922
    %v1924 = vpop.f32.mrf.mxu0
    %v1925 = vadd.f32 %v1789, %v1924
    %v1926 = vpop.f32.mrf.mxu0
    %v1927 = vadd.f32 %v1793, %v1926
    %1928 = vmatprep.mubr.bf16.mxu0 0
    %1929 = vmatmul.mubr.bf16.gmra.mxu0 %v1754
    %v1930 = vpop.f32.mrf.mxu0
    %v1931 = vadd.f32 %v1789, %v1930
    %v1932 = vpop.f32.mrf.mxu0
    %v1933 = vadd.f32 %v1793, %v1932
    %v1934 = vpop.f32.mrf.mxu0
    %v1935 = vadd.f32 %v1789, %v1934
    %v1936 = vpop.f32.mrf.mxu0
    %v1937 = vadd.f32 %v1793, %v1936
    %1938 = vmatprep.mubr.bf16.mxu0 0
    %1939 = vmatmul.mubr.bf16.gmra.mxu0 %v1755
    %v1940 = vpop.f32.mrf.mxu0
    %v1941 = vadd.f32 %v1789, %v1940
    %v1942 = vpop.f32.mrf.mxu0
    %v1943 = vadd.f32 %v1793, %v1942
    %v1944 = vpop.f32.mrf.mxu0
    %v1945 = vadd.f32 %v1789, %v1944
    %v1946 = vpop.f32.mrf.mxu0
    %v1947 = vadd.f32 %v1793, %v1946
    %1948 = vmatprep.mubr.bf16.mxu0 0
    %1949 = vmatmul.mubr.bf16.gmra.mxu0 %v1756
    %v1950 = vpop.f32.mrf.mxu0
    %v1951 = vadd.f32 %v1789, %v1950
    %v1952 = vpop.f32.mrf.mxu0
    %v1953 = vadd.f32 %v1793, %v1952
    %v1954 = vpop.f32.mrf.mxu0
    %v1955 = vadd.f32 %v1789, %v1954
    %v1956 = vpop.f32.mrf.mxu0
    %v1957 = vadd.f32 %v1793, %v1956
    %1958 = vmatprep.mubr.bf16.mxu0 0
    %1959 = vmatmul.mubr.bf16.gmra.mxu0 %v1757
    %v1960 = vpop.f32.mrf.mxu0
    %v1961 = vadd.f32 %v1789, %v1960
    %v1962 = vpop.f32.mrf.mxu0
    %v1963 = vadd.f32 %v1793, %v1962
    %v1964 = vpop.f32.mrf.mxu0
    %v1965 = vadd.f32 %v1789, %v1964
    %v1966 = vpop.f32.mrf.mxu0
    %v1967 = vadd.f32 %v1793, %v1966
    %1968 = vmatprep.mubr.bf16.mxu0 0
    %1969 = vmatmul.mubr.bf16.gmra.mxu0 %v1758
    %v1970 = vpop.f32.mrf.mxu0
    %v1971 = vadd.f32 %v1789, %v1970
    %v1972 = vpop.f32.mrf.mxu0
    %v1973 = vadd.f32 %v1793, %v1972
    %v1974 = vpop.f32.mrf.mxu0
    %v1975 = vadd.f32 %v1789, %v1974
    %v1976 = vpop.f32.mrf.mxu0
    %v1977 = vadd.f32 %v1793, %v1976
    %1978 = vmatprep.mubr.bf16.mxu0 0
    %1979 = vmatmul.mubr.bf16.gmra.mxu0 %v1759
    %v1980 = vpop.f32.mrf.mxu0
    %v1981 = vadd.f32 %v1789, %v1980
    %v1982 = vpop.f32.mrf.mxu0
    %v1983 = vadd.f32 %v1793, %v1982
    %v1984 = vpop.f32.mrf.mxu0
    %v1985 = vadd.f32 %v1789, %v1984
    %v1986 = vpop.f32.mrf.mxu0
    %v1987 = vadd.f32 %v1793, %v1986
    %1988 = vmatprep.mubr.bf16.mxu0 0
    %1989 = vmatmul.mubr.bf16.gmra.mxu0 %v1760
    %v1990 = vpop.f32.mrf.mxu0
    %v1991 = vadd.f32 %v1789, %v1990
    %v1992 = vpop.f32.mrf.mxu0
    %v1993 = vadd.f32 %v1793, %v1992
    %v1994 = vpop.f32.mrf.mxu0
    %v1995 = vadd.f32 %v1789, %v1994
    %v1996 = vpop.f32.mrf.mxu0
    %v1997 = vadd.f32 %v1793, %v1996
    %1998 = vmatprep.mubr.bf16.mxu0 0
    %1999 = vmatmul.mubr.bf16.gmra.mxu0 %v1761
    %v2000 = vpop.f32.mrf.mxu0
    %v2001 = vadd.f32 %v1789, %v2000
    %v2002 = vpop.f32.mrf.mxu0
    %v2003 = vadd.f32 %v1793, %v2002
    %v2004 = vpop.f32.mrf.mxu0
    %v2005 = vadd.f32 %v1789, %v2004
    %v2006 = vpop.f32.mrf.mxu0
    %v2007 = vadd.f32 %v1793, %v2006
    %2008 = vmatprep.mubr.bf16.mxu0 0
    %2009 = vmatmul.mubr.bf16.gmra.mxu0 %v1762
    %v2010 = vpop.f32.mrf.mxu0
    %v2011 = vadd.f32 %v1789, %v2010
    %v2012 = vpop.f32.mrf.mxu0
    %v2013 = vadd.f32 %v1793, %v2012
    %v2014 = vpop.f32.mrf.mxu0
    %v2015 = vadd.f32 %v1789, %v2014
    %v2016 = vpop.f32.mrf.mxu0
    %v2017 = vadd.f32 %v1793, %v2016
    %2018 = vmatprep.mubr.bf16.mxu0 0
    %2019 = vmatmul.mubr.bf16.gmra.mxu0 %v1763
    %v2020 = vpop.f32.mrf.mxu0
    %v2021 = vadd.f32 %v1789, %v2020
    %v2022 = vpop.f32.mrf.mxu0
    %v2023 = vadd.f32 %v1793, %v2022
    %v2024 = vpop.f32.mrf.mxu0
    %v2025 = vadd.f32 %v1789, %v2024
    %v2026 = vpop.f32.mrf.mxu0
    %v2027 = vadd.f32 %v1793, %v2026
    %2028 = vmatprep.mubr.bf16.mxu0 0
    %2029 = vmatmul.mubr.bf16.gmra.mxu0 %v1764
    %v2030 = vpop.f32.mrf.mxu0
    %v2031 = vadd.f32 %v1789, %v2030
    %v2032 = vpop.f32.mrf.mxu0
    %v2033 = vadd.f32 %v1793, %v2032
    %v2034 = vpop.f32.mrf.mxu0
    %v2035 = vadd.f32 %v1789, %v2034
    %v2036 = vpop.f32.mrf.mxu0
    %v2037 = vadd.f32 %v1793, %v2036
    %2038 = vmatprep.mubr.bf16.mxu0 0
    %2039 = vmatmul.mubr.bf16.gmra.mxu0 %v1765
    %v2040 = vpop.f32.mrf.mxu0
    %v2041 = vadd.f32 %v1789, %v2040
    %v2042 = vpop.f32.mrf.mxu0
    %v2043 = vadd.f32 %v1793, %v2042
    %v2044 = vpop.f32.mrf.mxu0
    %v2045 = vadd.f32 %v1789, %v2044
    %v2046 = vpop.f32.mrf.mxu0
    %v2047 = vadd.f32 %v1793, %v2046
    %2048 = vmatprep.mubr.bf16.mxu0 0
    %2049 = vmatmul.mubr.bf16.gmra.mxu0 %v1766
    %v2050 = vpop.f32.mrf.mxu0
    %v2051 = vadd.f32 %v1789, %v2050
    %v2052 = vpop.f32.mrf.mxu0
    %v2053 = vadd.f32 %v1793, %v2052
    %v2054 = vpop.f32.mrf.mxu0
    %v2055 = vadd.f32 %v1789, %v2054
    %v2056 = vpop.f32.mrf.mxu0
    %v2057 = vadd.f32 %v1793, %v2056
    %2058 = vmatprep.mubr.bf16.mxu0 0
    %2059 = vmatmul.mubr.bf16.gmra.mxu0 %v1767
    %v2060 = vpop.f32.mrf.mxu0
    %v2061 = vadd.f32 %v1789, %v2060
    %v2062 = vpop.f32.mrf.mxu0
    %v2063 = vadd.f32 %v1793, %v2062
    %v2064 = vpop.f32.mrf.mxu0
    %v2065 = vadd.f32 %v1789, %v2064
    %v2066 = vpop.f32.mrf.mxu0
    %v2067 = vadd.f32 %v1793, %v2066
    %2068 = vdwg.mxu0
    %v2069 = vtanh.pop %v1911
    %v2070 = vtanh.pop %v1913
    %v2071 = vtanh.pop %v1915
    %v2072 = vtanh.pop %v1917
    %v2073 = vtanh.pop %v1921
    %v2074 = vtanh.pop %v1923
    %v2075 = vtanh.pop %v1925
    %v2076 = vtanh.pop %v1927
    %v2077 = vtanh.pop %v1931
    %v2078 = vtanh.pop %v1933
    %v2079 = vtanh.pop %v1935
    %v2080 = vtanh.pop %v1937
    %v2081 = vtanh.pop %v1941
    %v2082 = vtanh.pop %v1943
    %v2083 = vtanh.pop %v1945
    %v2084 = vtanh.pop %v1947
    %v2085 = vtanh.pop %v1951
    %v2086 = vtanh.pop %v1953
    %v2087 = vtanh.pop %v1955
    %v2088 = vtanh.pop %v1957
    %v2089 = vtanh.pop %v1961
    %v2090 = vtanh.pop %v1963
    %v2091 = vtanh.pop %v1965
    %v2092 = vtanh.pop %v1967
    %v2093 = vtanh.pop %v1971
    %v2094 = vtanh.pop %v1973
    %v2095 = vtanh.pop %v1975
    %v2096 = vtanh.pop %v1977
    %v2097 = vtanh.pop %v1981
    %v2098 = vtanh.pop %v1983
    %v2099 = vtanh.pop %v1985
    %v2100 = vtanh.pop %v1987
    %v2101 = vtanh.pop %v1991
    %v2102 = vtanh.pop %v1993
    %v2103 = vtanh.pop %v1995
    %v2104 = vtanh.pop %v1997
    %v2105 = vtanh.pop %v2001
    %v2106 = vtanh.pop %v2003
    %v2107 = vtanh.pop %v2005
    %v2108 = vtanh.pop %v2007
    %v2109 = vtanh.pop %v2011
    %v2110 = vtanh.pop %v2013
    %v2111 = vtanh.pop %v2015
    %v2112 = vtanh.pop %v2017
    %v2113 = vtanh.pop %v2021
    %v2114 = vtanh.pop %v2023
    %v2115 = vtanh.pop %v2025
    %v2116 = vtanh.pop %v2027
    %v2117 = vtanh.pop %v2031
    %v2118 = vtanh.pop %v2033
    %v2119 = vtanh.pop %v2035
    %v2120 = vtanh.pop %v2037
    %v2121 = vtanh.pop %v2041
    %v2122 = vtanh.pop %v2043
    %v2123 = vtanh.pop %v2045
    %v2124 = vtanh.pop %v2047
    %v2125 = vtanh.pop %v2051
    %v2126 = vtanh.pop %v2053
    %v2127 = vtanh.pop %v2055
    %v2128 = vtanh.pop %v2057
    %v2129 = vtanh.pop %v2061
    %v2130 = vtanh.pop %v2063
    %v2131 = vtanh.pop %v2065
    %v2132 = vtanh.pop %v2067
    %v2133 = vpack.c.bf16 %v2071, %v2069
    %v2134 = vpack.c.bf16 %v2072, %v2070
    %v2135 = vpack.c.bf16 %v2075, %v2073
    %v2136 = vpack.c.bf16 %v2076, %v2074
    %v2137 = vpack.c.bf16 %v2079, %v2077
    %v2138 = vpack.c.bf16 %v2080, %v2078
    %v2139 = vpack.c.bf16 %v2083, %v2081
    %v2140 = vpack.c.bf16 %v2084, %v2082
    %v2141 = vpack.c.bf16 %v2087, %v2085
    %v2142 = vpack.c.bf16 %v2088, %v2086
    %v2143 = vpack.c.bf16 %v2091, %v2089
    %v2144 = vpack.c.bf16 %v2092, %v2090
    %v2145 = vpack.c.bf16 %v2095, %v2093
    %v2146 = vpack.c.bf16 %v2096, %v2094
    %v2147 = vpack.c.bf16 %v2099, %v2097
    %v2148 = vpack.c.bf16 %v2100, %v2098
    %v2149 = vpack.c.bf16 %v2103, %v2101
    %v2150 = vpack.c.bf16 %v2104, %v2102
    %v2151 = vpack.c.bf16 %v2107, %v2105
    %v2152 = vpack.c.bf16 %v2108, %v2106
    %v2153 = vpack.c.bf16 %v2111, %v2109
    %v2154 = vpack.c.bf16 %v2112, %v2110
    %v2155 = vpack.c.bf16 %v2115, %v2113
    %v2156 = vpack.c.bf16 %v2116, %v2114
    %v2157 = vpack.c.bf16 %v2119, %v2117
    %v2158 = vpack.c.bf16 %v2120, %v2118
    %v2159 = vpack.c.bf16 %v2123, %v2121
    %v2160 = vpack.c.bf16 %v2124, %v2122
    %v2161 = vpack.c.bf16 %v2127, %v2125
    %v2162 = vpack.c.bf16 %v2128, %v2126
    %v2163 = vpack.c.bf16 %v2131, %v2129
    %v2164 = vpack.c.bf16 %v2132, %v2130
    %v2165 = vld [vmem:[%s12] sm:$0xf]
    %v2166 = vld [vmem:[%s12 + $0x4] sm:$0xf]
    %v2167 = vld [vmem:[%s12 + $0x8] sm:$0xf]
    %v2168 = vld [vmem:[%s12 + $0xc] sm:$0xf]
    %v2169 = vld [vmem:[%s12 + $0x10] sm:$0xf]
    %v2170 = vld [vmem:[%s12 + $0x14] sm:$0xf]
    %v2171 = vld [vmem:[%s12 + $0x18] sm:$0xf]
    %v2172 = vld [vmem:[%s12 + $0x1c] sm:$0xf]
    %v2173 = vld [vmem:[%s12 + $0x20] sm:$0xf]
    %v2174 = vld [vmem:[%s12 + $0x24] sm:$0xf]
    %v2175 = vld [vmem:[%s12 + $0x28] sm:$0xf]
    %v2176 = vld [vmem:[%s12 + $0x2c] sm:$0xf]
    %v2177 = vld [vmem:[%s12 + $0x30] sm:$0xf]
    %v2178 = vld [vmem:[%s12 + $0x34] sm:$0xf]
    %v2179 = vld [vmem:[%s12 + $0x38] sm:$0xf]
    %v2180 = vld [vmem:[%s12 + $0x3c] sm:$0xf]
    %v2181 = vld [vmem:[%s12 + $0x40] sm:$0xf]
    %v2182 = vld [vmem:[%s12 + $0x44] sm:$0xf]
    %v2183 = vld [vmem:[%s12 + $0x48] sm:$0xf]
    %v2184 = vld [vmem:[%s12 + $0x4c] sm:$0xf]
    %v2185 = vld [vmem:[%s12 + $0x50] sm:$0xf]
    %v2186 = vld [vmem:[%s12 + $0x54] sm:$0xf]
    %v2187 = vld [vmem:[%s12 + $0x58] sm:$0xf]
    %v2188 = vld [vmem:[%s12 + $0x5c] sm:$0xf]
    %v2189 = vld [vmem:[%s12 + $0x60] sm:$0xf]
    %v2190 = vld [vmem:[%s12 + $0x64] sm:$0xf]
    %v2191 = vld [vmem:[%s12 + $0x68] sm:$0xf]
    %v2192 = vld [vmem:[%s12 + $0x6c] sm:$0xf]
    %v2193 = vld [vmem:[%s12 + $0x70] sm:$0xf]
    %v2194 = vld [vmem:[%s12 + $0x74] sm:$0xf]
    %v2195 = vld [vmem:[%s12 + $0x78] sm:$0xf]
    %v2196 = vld [vmem:[%s12 + $0x7c] sm:$0xf]
    %v2197 = vld [vmem:[%s13] sm:$0x1]
    %v2199 = vlaneseq
    %v2200 = vshrl.u32 %v2199, 7
    %v2201 = vsub.s32 0, %v2200
    %v2202 = vrot.slane %v2197, %v2201
    %v2236 = vunpack.c.l.b16 %v2165
    %v2237 = vunpack.c.l.b16 %v2166
    %v2238 = vunpack.c.l.b16 %v2167
    %v2239 = vunpack.c.l.b16 %v2168
    %v2240 = vunpack.c.l.b16 %v2169
    %v2241 = vunpack.c.l.b16 %v2170
    %v2242 = vunpack.c.l.b16 %v2171
    %v2243 = vunpack.c.l.b16 %v2172
    %v2244 = vunpack.c.l.b16 %v2173
    %v2245 = vunpack.c.l.b16 %v2174
    %v2246 = vunpack.c.l.b16 %v2175
    %v2247 = vunpack.c.l.b16 %v2176
    %v2248 = vunpack.c.l.b16 %v2177
    %v2249 = vunpack.c.l.b16 %v2178
    %v2250 = vunpack.c.l.b16 %v2179
    %v2251 = vunpack.c.l.b16 %v2180
    %v2252 = vunpack.c.l.b16 %v2181
    %v2253 = vunpack.c.l.b16 %v2182
    %v2254 = vunpack.c.l.b16 %v2183
    %v2255 = vunpack.c.l.b16 %v2184
    %v2256 = vunpack.c.l.b16 %v2185
    %v2257 = vunpack.c.l.b16 %v2186
    %v2258 = vunpack.c.l.b16 %v2187
    %v2259 = vunpack.c.l.b16 %v2188
    %v2260 = vunpack.c.l.b16 %v2189
    %v2261 = vunpack.c.l.b16 %v2190
    %v2262 = vunpack.c.l.b16 %v2191
    %v2263 = vunpack.c.l.b16 %v2192
    %v2264 = vunpack.c.l.b16 %v2193
    %v2265 = vunpack.c.l.b16 %v2194
    %v2266 = vunpack.c.l.b16 %v2195
    %v2267 = vunpack.c.l.b16 %v2196
    %v2268 = vpack.c.b16 %v2237, %v2236
    %v2269 = vpack.c.b16 %v2239, %v2238
    %v2270 = vpack.c.b16 %v2241, %v2240
    %v2271 = vpack.c.b16 %v2243, %v2242
    %v2272 = vpack.c.b16 %v2245, %v2244
    %v2273 = vpack.c.b16 %v2247, %v2246
    %v2274 = vpack.c.b16 %v2249, %v2248
    %v2275 = vpack.c.b16 %v2251, %v2250
    %v2276 = vpack.c.b16 %v2253, %v2252
    %v2277 = vpack.c.b16 %v2255, %v2254
    %v2278 = vpack.c.b16 %v2257, %v2256
    %v2279 = vpack.c.b16 %v2259, %v2258
    %v2280 = vpack.c.b16 %v2261, %v2260
    %v2281 = vpack.c.b16 %v2263, %v2262
    %v2282 = vpack.c.b16 %v2265, %v2264
    %v2283 = vpack.c.b16 %v2267, %v2266
    %2300 = vmatprep.subr.bf16.mxu0 0
    %2301 = vmatpush1.bf16.msra.mxu0 %v2275
    %2302 = vmatprep.subr.bf16.mxu0 0
    %2303 = vmatpush1.bf16.msra.mxu0 %v2274
    %2304 = vmatprep.subr.bf16.mxu0 0
    %2305 = vmatpush1.bf16.msra.mxu0 %v2273
    %2306 = vmatprep.subr.bf16.mxu0 0
    %2307 = vmatpush1.bf16.msra.mxu0 %v2272
    %2308 = vmatprep.subr.bf16.mxu0 0
    %2309 = vmatpush1.bf16.msra.mxu0 %v2271
    %2310 = vmatprep.subr.bf16.mxu0 0
    %2311 = vmatpush1.bf16.msra.mxu0 %v2270
    %2312 = vmatprep.subr.bf16.mxu0 0
    %2313 = vmatpush1.bf16.msra.mxu0 %v2269
    %2314 = vmatprep.subr.bf16.mxu0 0
    %2315 = vmatpush1.bf16.msra.mxu0 %v2268
    %2316 = vmatprep.subr.bf16.mxu0 0
    %2317 = vmatpush2.bf16.msra.mxu0 %v2283
    %2318 = vmatprep.subr.bf16.mxu0 0
    %2319 = vmatpush2.bf16.msra.mxu0 %v2282
    %2320 = vmatprep.subr.bf16.mxu0 0
    %2321 = vmatpush2.bf16.msra.mxu0 %v2281
    %2322 = vmatprep.subr.bf16.mxu0 0
    %2323 = vmatpush2.bf16.msra.mxu0 %v2280
    %2324 = vmatprep.subr.bf16.mxu0 0
    %2325 = vmatpush2.bf16.msra.mxu0 %v2279
    %2326 = vmatprep.subr.bf16.mxu0 0
    %2327 = vmatpush2.bf16.msra.mxu0 %v2278
    %2328 = vmatprep.subr.bf16.mxu0 0
    %2329 = vmatpush2.bf16.msra.mxu0 %v2277
    %2330 = vmatprep.subr.bf16.mxu0 0
    %2331 = vmatpush2.bf16.msra.mxu0 %v2276
    %2332 = vmatprep.mubr.bf16.mxu0 %v2134
    %2333 = vmatmul.mubr.bf16.gmra.mxu0 %v2133
    %v2334 = vpop.f32.mrf.mxu0
    %v2335 = vadd.f32 %v2202, %v2334
    %v2336 = vpop.f32.mrf.mxu0
    %v2337 = vpop.f32.mrf.mxu0
    %v2338 = vadd.f32 %v2202, %v2337
    %v2339 = vpop.f32.mrf.mxu0
    %2340 = vmatprep.mubr.bf16.mxu0 %v2136
    %2341 = vmatmul.mubr.bf16.gmra.mxu0 %v2135
    %v2342 = vpop.f32.mrf.mxu0
    %v2343 = vadd.f32 %v2202, %v2342
    %v2344 = vpop.f32.mrf.mxu0
    %v2345 = vpop.f32.mrf.mxu0
    %v2346 = vadd.f32 %v2202, %v2345
    %v2347 = vpop.f32.mrf.mxu0
    %2348 = vmatprep.mubr.bf16.mxu0 %v2138
    %2349 = vmatmul.mubr.bf16.gmra.mxu0 %v2137
    %v2350 = vpop.f32.mrf.mxu0
    %v2351 = vadd.f32 %v2202, %v2350
    %v2352 = vpop.f32.mrf.mxu0
    %v2353 = vpop.f32.mrf.mxu0
    %v2354 = vadd.f32 %v2202, %v2353
    %v2355 = vpop.f32.mrf.mxu0
    %2356 = vmatprep.mubr.bf16.mxu0 %v2140
    %2357 = vmatmul.mubr.bf16.gmra.mxu0 %v2139
    %v2358 = vpop.f32.mrf.mxu0
    %v2359 = vadd.f32 %v2202, %v2358
    %v2360 = vpop.f32.mrf.mxu0
    %v2361 = vpop.f32.mrf.mxu0
    %v2362 = vadd.f32 %v2202, %v2361
    %v2363 = vpop.f32.mrf.mxu0
    %2364 = vmatprep.mubr.bf16.mxu0 %v2142
    %2365 = vmatmul.mubr.bf16.gmra.mxu0 %v2141
    %v2366 = vpop.f32.mrf.mxu0
    %v2367 = vadd.f32 %v2202, %v2366
    %v2368 = vpop.f32.mrf.mxu0
    %v2369 = vpop.f32.mrf.mxu0
    %v2370 = vadd.f32 %v2202, %v2369
    %v2371 = vpop.f32.mrf.mxu0
    %2372 = vmatprep.mubr.bf16.mxu0 %v2144
    %2373 = vmatmul.mubr.bf16.gmra.mxu0 %v2143
    %v2374 = vpop.f32.mrf.mxu0
    %v2375 = vadd.f32 %v2202, %v2374
    %v2376 = vpop.f32.mrf.mxu0
    %v2377 = vpop.f32.mrf.mxu0
    %v2378 = vadd.f32 %v2202, %v2377
    %v2379 = vpop.f32.mrf.mxu0
    %2380 = vmatprep.mubr.bf16.mxu0 %v2146
    %2381 = vmatmul.mubr.bf16.gmra.mxu0 %v2145
    %v2382 = vpop.f32.mrf.mxu0
    %v2383 = vadd.f32 %v2202, %v2382
    %v2384 = vpop.f32.mrf.mxu0
    %v2385 = vpop.f32.mrf.mxu0
    %v2386 = vadd.f32 %v2202, %v2385
    %v2387 = vpop.f32.mrf.mxu0
    %2388 = vmatprep.mubr.bf16.mxu0 %v2148
    %2389 = vmatmul.mubr.bf16.gmra.mxu0 %v2147
    %v2390 = vpop.f32.mrf.mxu0
    %v2391 = vadd.f32 %v2202, %v2390
    %v2392 = vpop.f32.mrf.mxu0
    %v2393 = vpop.f32.mrf.mxu0
    %v2394 = vadd.f32 %v2202, %v2393
    %v2395 = vpop.f32.mrf.mxu0
    %2396 = vmatprep.mubr.bf16.mxu0 %v2150
    %2397 = vmatmul.mubr.bf16.gmra.mxu0 %v2149
    %v2398 = vpop.f32.mrf.mxu0
    %v2399 = vadd.f32 %v2202, %v2398
    %v2400 = vpop.f32.mrf.mxu0
    %v2401 = vpop.f32.mrf.mxu0
    %v2402 = vadd.f32 %v2202, %v2401
    %v2403 = vpop.f32.mrf.mxu0
    %2404 = vmatprep.mubr.bf16.mxu0 %v2152
    %2405 = vmatmul.mubr.bf16.gmra.mxu0 %v2151
    %v2406 = vpop.f32.mrf.mxu0
    %v2407 = vadd.f32 %v2202, %v2406
    %v2408 = vpop.f32.mrf.mxu0
    %v2409 = vpop.f32.mrf.mxu0
    %v2410 = vadd.f32 %v2202, %v2409
    %v2411 = vpop.f32.mrf.mxu0
    %2412 = vmatprep.mubr.bf16.mxu0 %v2154
    %2413 = vmatmul.mubr.bf16.gmra.mxu0 %v2153
    %v2414 = vpop.f32.mrf.mxu0
    %v2415 = vadd.f32 %v2202, %v2414
    %v2416 = vpop.f32.mrf.mxu0
    %v2417 = vpop.f32.mrf.mxu0
    %v2418 = vadd.f32 %v2202, %v2417
    %v2419 = vpop.f32.mrf.mxu0
    %2420 = vmatprep.mubr.bf16.mxu0 %v2156
    %2421 = vmatmul.mubr.bf16.gmra.mxu0 %v2155
    %v2422 = vpop.f32.mrf.mxu0
    %v2423 = vadd.f32 %v2202, %v2422
    %v2424 = vpop.f32.mrf.mxu0
    %v2425 = vpop.f32.mrf.mxu0
    %v2426 = vadd.f32 %v2202, %v2425
    %v2427 = vpop.f32.mrf.mxu0
    %2428 = vmatprep.mubr.bf16.mxu0 %v2158
    %2429 = vmatmul.mubr.bf16.gmra.mxu0 %v2157
    %v2430 = vpop.f32.mrf.mxu0
    %v2431 = vadd.f32 %v2202, %v2430
    %v2432 = vpop.f32.mrf.mxu0
    %v2433 = vpop.f32.mrf.mxu0
    %v2434 = vadd.f32 %v2202, %v2433
    %v2435 = vpop.f32.mrf.mxu0
    %2436 = vmatprep.mubr.bf16.mxu0 %v2160
    %2437 = vmatmul.mubr.bf16.gmra.mxu0 %v2159
    %v2438 = vpop.f32.mrf.mxu0
    %v2439 = vadd.f32 %v2202, %v2438
    %v2440 = vpop.f32.mrf.mxu0
    %v2441 = vpop.f32.mrf.mxu0
    %v2442 = vadd.f32 %v2202, %v2441
    %v2443 = vpop.f32.mrf.mxu0
    %2444 = vmatprep.mubr.bf16.mxu0 %v2162
    %2445 = vmatmul.mubr.bf16.gmra.mxu0 %v2161
    %v2446 = vpop.f32.mrf.mxu0
    %v2447 = vadd.f32 %v2202, %v2446
    %v2448 = vpop.f32.mrf.mxu0
    %v2449 = vpop.f32.mrf.mxu0
    %v2450 = vadd.f32 %v2202, %v2449
    %v2451 = vpop.f32.mrf.mxu0
    %2452 = vmatprep.mubr.bf16.mxu0 %v2164
    %2453 = vmatmul.mubr.bf16.gmra.mxu0 %v2163
    %v2454 = vpop.f32.mrf.mxu0
    %v2455 = vadd.f32 %v2202, %v2454
    %v2456 = vpop.f32.mrf.mxu0
    %v2457 = vpop.f32.mrf.mxu0
    %v2458 = vadd.f32 %v2202, %v2457
    %v2459 = vpop.f32.mrf.mxu0
    %2460 = vdwg.mxu0
    %2493 = vrot.lane.b32.xlu0 %v930, 64
    %v2494 = vpop.permute.xlu0 %2493
    %2495 = vrot.lane.b32.xlu0 %v935, 64
    %v2496 = vpop.permute.xlu0 %2495
    %2497 = vrot.lane.b32.xlu0 %v940, 64
    %v2498 = vpop.permute.xlu0 %2497
    %2499 = vrot.lane.b32.xlu0 %v945, 64
    %v2500 = vpop.permute.xlu0 %2499
    %2501 = vrot.lane.b32.xlu0 %v950, 64
    %v2502 = vpop.permute.xlu0 %2501
    %2503 = vrot.lane.b32.xlu0 %v955, 64
    %v2504 = vpop.permute.xlu0 %2503
    %2505 = vrot.lane.b32.xlu0 %v960, 64
    %v2506 = vpop.permute.xlu0 %2505
    %2507 = vrot.lane.b32.xlu0 %v965, 64
    %v2508 = vpop.permute.xlu0 %2507
    %2509 = vrot.lane.b32.xlu0 %v970, 64
    %v2510 = vpop.permute.xlu0 %2509
    %2511 = vrot.lane.b32.xlu0 %v975, 64
    %v2512 = vpop.permute.xlu0 %2511
    %2513 = vrot.lane.b32.xlu0 %v980, 64
    %v2514 = vpop.permute.xlu0 %2513
    %2515 = vrot.lane.b32.xlu0 %v985, 64
    %v2516 = vpop.permute.xlu0 %2515
    %2517 = vrot.lane.b32.xlu0 %v990, 64
    %v2518 = vpop.permute.xlu0 %2517
    %2519 = vrot.lane.b32.xlu0 %v995, 64
    %v2520 = vpop.permute.xlu0 %2519
    %2521 = vrot.lane.b32.xlu0 %v1000, 64
    %v2522 = vpop.permute.xlu0 %2521
    %2523 = vrot.lane.b32.xlu0 %v1005, 64
    %v2524 = vpop.permute.xlu0 %2523
    %2525 = vrot.lane.b32.xlu0 %v1010, 64
    %v2526 = vpop.permute.xlu0 %2525
    %2527 = vrot.lane.b32.xlu0 %v1015, 64
    %v2528 = vpop.permute.xlu0 %2527
    %2529 = vrot.lane.b32.xlu0 %v1020, 64
    %v2530 = vpop.permute.xlu0 %2529
    %2531 = vrot.lane.b32.xlu0 %v1025, 64
    %v2532 = vpop.permute.xlu0 %2531
    %2533 = vrot.lane.b32.xlu0 %v1030, 64
    %v2534 = vpop.permute.xlu0 %2533
    %2535 = vrot.lane.b32.xlu0 %v1035, 64
    %v2536 = vpop.permute.xlu0 %2535
    %2537 = vrot.lane.b32.xlu0 %v1040, 64
    %v2538 = vpop.permute.xlu0 %2537
    %2539 = vrot.lane.b32.xlu0 %v1045, 64
    %v2540 = vpop.permute.xlu0 %2539
    %2541 = vrot.lane.b32.xlu0 %v1050, 64
    %v2542 = vpop.permute.xlu0 %2541
    %2543 = vrot.lane.b32.xlu0 %v1055, 64
    %v2544 = vpop.permute.xlu0 %2543
    %2545 = vrot.lane.b32.xlu0 %v1060, 64
    %v2546 = vpop.permute.xlu0 %2545
    %2547 = vrot.lane.b32.xlu0 %v1065, 64
    %v2548 = vpop.permute.xlu0 %2547
    %2549 = vrot.lane.b32.xlu0 %v1070, 64
    %v2550 = vpop.permute.xlu0 %2549
    %2551 = vrot.lane.b32.xlu0 %v1075, 64
    %v2552 = vpop.permute.xlu0 %2551
    %2553 = vrot.lane.b32.xlu0 %v1080, 64
    %v2554 = vpop.permute.xlu0 %2553
    %2555 = vrot.lane.b32.xlu0 %v1085, 64
    %v2556 = vpop.permute.xlu0 %2555
    %vm2589 = vcmask 523264
    %v2590 = vsel %vm2589, %v2335, %v2494
    %v2591 = vsel %vm2589, %v2338, %v2496
    %v2592 = vsel %vm2589, %v2343, %v2498
    %v2593 = vsel %vm2589, %v2346, %v2500
    %v2594 = vsel %vm2589, %v2351, %v2502
    %v2595 = vsel %vm2589, %v2354, %v2504
    %v2596 = vsel %vm2589, %v2359, %v2506
    %v2597 = vsel %vm2589, %v2362, %v2508
    %v2598 = vsel %vm2589, %v2367, %v2510
    %v2599 = vsel %vm2589, %v2370, %v2512
    %v2600 = vsel %vm2589, %v2375, %v2514
    %v2601 = vsel %vm2589, %v2378, %v2516
    %v2602 = vsel %vm2589, %v2383, %v2518
    %v2603 = vsel %vm2589, %v2386, %v2520
    %v2604 = vsel %vm2589, %v2391, %v2522
    %v2605 = vsel %vm2589, %v2394, %v2524
    %v2606 = vsel %vm2589, %v2399, %v2526
    %v2607 = vsel %vm2589, %v2402, %v2528
    %v2608 = vsel %vm2589, %v2407, %v2530
    %v2609 = vsel %vm2589, %v2410, %v2532
    %v2610 = vsel %vm2589, %v2415, %v2534
    %v2611 = vsel %vm2589, %v2418, %v2536
    %v2612 = vsel %vm2589, %v2423, %v2538
    %v2613 = vsel %vm2589, %v2426, %v2540
    %v2614 = vsel %vm2589, %v2431, %v2542
    %v2615 = vsel %vm2589, %v2434, %v2544
    %v2616 = vsel %vm2589, %v2439, %v2546
    %v2617 = vsel %vm2589, %v2442, %v2548
    %v2618 = vsel %vm2589, %v2447, %v2550
    %v2619 = vsel %vm2589, %v2450, %v2552
    %v2620 = vsel %vm2589, %v2455, %v2554
    %v2621 = vsel %vm2589, %v2458, %v2556
    %vm2622 = vcmask 654336
    %v2623 = vsel %vm2622, %v2590, 0.0
    %v2624 = vsel %vm2622, %v2591, 0.0
    %v2625 = vsel %vm2622, %v2592, 0.0
    %v2626 = vsel %vm2622, %v2593, 0.0
    %v2627 = vsel %vm2622, %v2594, 0.0
    %v2628 = vsel %vm2622, %v2595, 0.0
    %v2629 = vsel %vm2622, %v2596, 0.0
    %v2630 = vsel %vm2622, %v2597, 0.0
    %v2631 = vsel %vm2622, %v2598, 0.0
    %v2632 = vsel %vm2622, %v2599, 0.0
    %v2633 = vsel %vm2622, %v2600, 0.0
    %v2634 = vsel %vm2622, %v2601, 0.0
    %v2635 = vsel %vm2622, %v2602, 0.0
    %v2636 = vsel %vm2622, %v2603, 0.0
    %v2637 = vsel %vm2622, %v2604, 0.0
    %v2638 = vsel %vm2622, %v2605, 0.0
    %v2639 = vsel %vm2622, %v2606, 0.0
    %v2640 = vsel %vm2622, %v2607, 0.0
    %v2641 = vsel %vm2622, %v2608, 0.0
    %v2642 = vsel %vm2622, %v2609, 0.0
    %v2643 = vsel %vm2622, %v2610, 0.0
    %v2644 = vsel %vm2622, %v2611, 0.0
    %v2645 = vsel %vm2622, %v2612, 0.0
    %v2646 = vsel %vm2622, %v2613, 0.0
    %v2647 = vsel %vm2622, %v2614, 0.0
    %v2648 = vsel %vm2622, %v2615, 0.0
    %v2649 = vsel %vm2622, %v2616, 0.0
    %v2650 = vsel %vm2622, %v2617, 0.0
    %v2651 = vsel %vm2622, %v2618, 0.0
    %v2652 = vsel %vm2622, %v2619, 0.0
    %v2653 = vsel %vm2622, %v2620, 0.0
    %v2654 = vsel %vm2622, %v2621, 0.0
    %2655 = vst [vmem:[#allocation8] sm:$0xff] %v2623
    %2656 = vst [vmem:[#allocation8 + $0x8] sm:$0xff] %v2624
    %2657 = vst [vmem:[#allocation8 + $0x10] sm:$0xff] %v2625
    %2658 = vst [vmem:[#allocation8 + $0x18] sm:$0xff] %v2626
    %2659 = vst [vmem:[#allocation8 + $0x20] sm:$0xff] %v2627
    %2660 = vst [vmem:[#allocation8 + $0x28] sm:$0xff] %v2628
    %2661 = vst [vmem:[#allocation8 + $0x30] sm:$0xff] %v2629
    %2662 = vst [vmem:[#allocation8 + $0x38] sm:$0xff] %v2630
    %2663 = vst [vmem:[#allocation8 + $0x40] sm:$0xff] %v2631
    %2664 = vst [vmem:[#allocation8 + $0x48] sm:$0xff] %v2632
    %2665 = vst [vmem:[#allocation8 + $0x50] sm:$0xff] %v2633
    %2666 = vst [vmem:[#allocation8 + $0x58] sm:$0xff] %v2634
    %2667 = vst [vmem:[#allocation8 + $0x60] sm:$0xff] %v2635
    %2668 = vst [vmem:[#allocation8 + $0x68] sm:$0xff] %v2636
    %2669 = vst [vmem:[#allocation8 + $0x70] sm:$0xff] %v2637
    %2670 = vst [vmem:[#allocation8 + $0x78] sm:$0xff] %v2638
    %2671 = vst [vmem:[#allocation8 + $0x80] sm:$0xff] %v2639
    %2672 = vst [vmem:[#allocation8 + $0x88] sm:$0xff] %v2640
    %2673 = vst [vmem:[#allocation8 + $0x90] sm:$0xff] %v2641
    %2674 = vst [vmem:[#allocation8 + $0x98] sm:$0xff] %v2642
    %2675 = vst [vmem:[#allocation8 + $0xa0] sm:$0xff] %v2643
    %2676 = vst [vmem:[#allocation8 + $0xa8] sm:$0xff] %v2644
    %2677 = vst [vmem:[#allocation8 + $0xb0] sm:$0xff] %v2645
    %2678 = vst [vmem:[#allocation8 + $0xb8] sm:$0xff] %v2646
    %2679 = vst [vmem:[#allocation8 + $0xc0] sm:$0xff] %v2647
    %2680 = vst [vmem:[#allocation8 + $0xc8] sm:$0xff] %v2648
    %2681 = vst [vmem:[#allocation8 + $0xd0] sm:$0xff] %v2649
    %2682 = vst [vmem:[#allocation8 + $0xd8] sm:$0xff] %v2650
    %2683 = vst [vmem:[#allocation8 + $0xe0] sm:$0xff] %v2651
    %2684 = vst [vmem:[#allocation8 + $0xe8] sm:$0xff] %v2652
    %2685 = vst [vmem:[#allocation8 + $0xf0] sm:$0xff] %v2653
    %2686 = vst [vmem:[#allocation8 + $0xf8] sm:$0xff] %v2654
    // Predicated region
    $region70: #{tpu_custom_call.1} parent=1 // pred_check
      _
    $region71: #{tpu_custom_call.1} parent=1 // pred_check_branch
      %2688 = sbr.rel (0) target = $region73
    $region72: #{tpu_custom_call.1} parent=1 // pred_region
      %s2690 = ssub.s32 4096, 4096
      %2691 = vsyncadd [#allocation4], %s2690
      %s2692 = sshll.u32 [#allocation8], 4
      %s2693 = int_to_ptr.vmem [resolvable:$true] %s2692
      %2698 = dma.vmem_to_hbm [thread:$0]  %s2693, 4096, %s14, [#allocation4], 128, 128, 8
    $region73: #{tpu_custom_call.1} parent=1 // pred_fallthru
      _
    // Predicated region
    $region74: #{tpu_custom_call.1} parent=1 // pred_check
      _
    $region75: #{tpu_custom_call.1} parent=1 // pred_check_branch
      %2700 = sbr.rel (0) target = $region77
    $region76: #{tpu_custom_call.1} parent=1 // pred_region
      %2701 = dma.done [#allocation4], 4096
    $region77: #{tpu_custom_call.1} parent=1 // pred_fallthru
      _
    %2702 = vsyncpa [#allocation3], 1
    %2703 = vsyncpa [#allocation6], 1
    %2704 = vsyncpa [#allocation4], 1

</llo_original>
